<compile_context>
chip_gen: v7x
topology: tpu7x:2x2x1
jax: 0.10.0
libtpu: 0.0.40
codegen_flags: <defaults>
</compile_context>

<pallas_src>
import functools

import numpy as np
import jax
import jax.numpy as jnp
from jax import lax
from jax.experimental import pallas as pl
from jax.experimental.pallas import tpu as pltpu

_LANES = 128


def _round_up(a: int, b: int) -> int:
    return ((a + b - 1) // b) * b


def _rbf_kernel(x_ref, rmat_ref, gsc_ref, o_ref, *, inv_denom, compute_dtype):
    # x_ref:    (tm, 128)      lane-packed input rows, f32
    # rmat_ref: (128, 128*G)   0/1 one-hot replication matrix (exact)
    # gsc_ref:  (1, 128*G)     grid tiled 128x, pre-scaled by 1/denominator
    # o_ref:    (tm, 128*G)    lane-dense output tile
    x_scaled = x_ref[...] * inv_denom                       # VPU, small tile
    # One-hot MXU matmul replicates x_scaled[:, k] into lanes [k*G, (k+1)*G).
    # HIGHEST precision keeps the f32 x operand exact through the bf16 passes.
    x_rep = jnp.dot(
        x_scaled, rmat_ref[...],
        preferred_element_type=jnp.float32,
        precision=lax.Precision.HIGHEST,
    )                                                        # (tm, 128*G) f32
    diff = x_rep - gsc_ref[...]                              # (1,N) bcast over rows
    if compute_dtype != np.dtype(jnp.float32):
        # bf16 square + exp (packed VPU/EUP on v6e/v7x); only when the output
        # is bf16 anyway, so accuracy of the stored result is unchanged.
        diff = diff.astype(compute_dtype)
    o_ref[...] = jnp.exp(-(diff * diff)).astype(o_ref.dtype)


@functools.lru_cache(maxsize=None)
def _replication_matrix(num_grids: int):
    # Pure 0/1 one-hot: R[k, k*G + g] = 1.  Built once on the host, cached.
    r = np.kron(np.eye(_LANES, dtype=np.float32),
                np.ones((1, num_grids), dtype=np.float32))
    return jnp.asarray(r)                                    # (128, 128*G)


def rbf_forward(x: jax.Array,
                grid: jax.Array,
                denominator: float,
                *,
                tm: int = 2048,
                out_dtype=None) -> jax.Array:
    """Pallas RBF forward. Returns shape (*x.shape, num_grids).

    `tm` is the row tile in packed rows of 128 elements. Pass
    out_dtype=jnp.bfloat16 when the consumer is bf16: it halves the
    writeback-bound HBM traffic (~1.7-1.9x wall clock on v5e/v6e).
    """
    orig_shape = x.shape
    G = int(grid.shape[0])
    DG = _LANES * G
    out_dtype = np.dtype(out_dtype) if out_dtype is not None else np.dtype(x.dtype)
    compute_dtype = (np.dtype(jnp.bfloat16)
                     if out_dtype == np.dtype(jnp.bfloat16)
                     else np.dtype(jnp.float32))
    inv_denom = float(1.0 / denominator)

    # ---- flatten + lane-pack: (...,) -> (Mp, 128); padding <= 1023 elems ----
    N = int(np.prod(orig_shape)) if len(orig_shape) else 1
    x_flat = x.reshape(-1).astype(jnp.float32)
    N_pad = _round_up(max(N, 1), 8 * _LANES)      # multiple of 1024 -> Mp % 8 == 0
    if N_pad != N:
        x_flat = jnp.pad(x_flat, (0, N_pad - N))
    Mp = N_pad // _LANES
    x2 = x_flat.reshape(Mp, _LANES)

    # ---- row-tile selection: amortize per-step overhead, stay inside VMEM ----
    out_isz = out_dtype.itemsize
    per_row = 2 * (_LANES * 4 + _LANES * G * out_isz)              # dbl-buffered in+out
    const_b = 2 * (_LANES * _LANES * G * 4 + 8 * _LANES * G * 4)   # rmat + gsc buffers
    budget = 26 * 1024 * 1024                                      # < 32 MiB limit, < v7x 64 MiB
    tm_cap = max(8, ((budget - const_b) // per_row) // 8 * 8)
    tm_eff = max(8, min(_round_up(tm, 8), tm_cap, Mp))
    if Mp >= 16 and pl.cdiv(Mp, tm_eff) < 2:
        # Keep both v7x TensorCores busy: at least 2 grid steps when possible.
        tm_eff = _round_up(pl.cdiv(Mp, 2), 8)
    n_steps = pl.cdiv(Mp, tm_eff)                 # partial last block is clipped

    # ---- constant operands ----
    rmat = _replication_matrix(G)                                       # (128, DG)
    gsc = (jnp.tile(grid.astype(jnp.float32), _LANES) * inv_denom).reshape(1, DG)

    kernel = functools.partial(_rbf_kernel, inv_denom=inv_denom,
                               compute_dtype=compute_dtype)

    out = pl.pallas_call(
        kernel,
        out_shape=jax.ShapeDtypeStruct((Mp, DG), out_dtype),
        grid=(n_steps,),
        in_specs=[
            pl.BlockSpec((tm_eff, _LANES), lambda i: (i, 0)),
            pl.BlockSpec((_LANES, DG), lambda i: (0, 0)),   # resident constant
            pl.BlockSpec((1, DG), lambda i: (0, 0)),        # resident constant
        ],
        out_specs=pl.BlockSpec((tm_eff, DG), lambda i: (i, 0)),
        compiler_params=pltpu.CompilerParams(
            dimension_semantics=("parallel",),
            vmem_limit_bytes=32 * 1024 * 1024,
        ),
    )(x2, rmat, gsc)

    # Flat (Mp, 128*G) row-major == (..., D, G) row-major on the first N*G elems.
    out = out.reshape(-1)[: N * G].reshape(*orig_shape, G)
    return out


if __name__ == "__main__":
    # Module hyper-parameters (defaults from __init__)
    grid_min, grid_max, num_grids = -1.5, 1.5, 8
    denominator = (grid_max - grid_min) / (num_grids - 1)

    # Deterministic fixed grid (non-trainable parameter) and example input.
    grid = jnp.linspace(grid_min, grid_max, num_grids, dtype=jnp.float32)

    key = jax.random.PRNGKey(0)
    x = jax.random.normal(key, (2, 4, 16, 16), dtype=jnp.float32)

    # f32 path (matches the PyTorch module's numerics).
    out = jax.block_until_ready(rbf_forward(x, grid, denominator))

    # Pure-JAX reference (mirrors the PyTorch forward exactly).
    ref = jnp.exp(-(((x[..., None] - grid) / denominator) ** 2))

    assert out.shape == (2, 4, 16, 16, num_grids), out.shape
    assert out.dtype == x.dtype, out.dtype
    np.testing.assert_allclose(np.asarray(out), np.asarray(ref),
                               rtol=1e-5, atol=1e-5)

    # bf16 output path (what a bf16 downstream consumer should request; halves
    # the dominant HBM writeback). Checked with bf16-appropriate tolerances.
    out_bf16 = jax.block_until_ready(
        rbf_forward(x, grid, denominator, out_dtype=jnp.bfloat16))
    assert out_bf16.dtype == jnp.bfloat16
    np.testing.assert_allclose(np.asarray(out_bf16.astype(jnp.float32)),
                               np.asarray(ref), rtol=5e-2, atol=2e-2)

    print("KERNEL_OK")
</pallas_src>

<mosaic_0001>
module attributes {stable_mosaic.version = 11 : i64} {
  func.func @_rbf_kernel(%arg0: i32, %arg1: memref<8x128xf32, #tpu.memory_space<vmem>>, %arg2: memref<128x1024xf32, #tpu.memory_space<vmem>>, %arg3: memref<1x1024xf32, #tpu.memory_space<vmem>>, %arg4: memref<8x1024xf32, #tpu.memory_space<vmem>>) attributes {dimension_semantics = [#tpu.dimension_semantics<parallel>], iteration_bounds = array<i64: 2>, scalar_prefetch = 0 : i64, scratch_operands = 0 : i64, tpu.core_type = #tpu.core_type<tc>, window_params = [{transform_indices = @transform_0, window_bounds = array<i64: 8, 128>}, {pipeline_mode = #tpu.pipeline_mode<synchronous>, transform_indices = @transform_1, window_bounds = array<i64: 128, 1024>}, {pipeline_mode = #tpu.pipeline_mode<synchronous>, transform_indices = @transform_2, window_bounds = array<i64: 1, 1024>}, {transform_indices = @transform_3, window_bounds = array<i64: 8, 1024>}]} {
    %c0 = arith.constant 0 : index
    %c0_0 = arith.constant 0 : index
    %0 = vector.load %arg1[%c0, %c0_0] : memref<8x128xf32, #tpu.memory_space<vmem>>, vector<8x128xf32>
    %cst = arith.constant 2.33333325 : f32
    %1 = vector.broadcast %cst : f32 to vector<8x128xf32>
    %2 = arith.mulf %0, %1 : vector<8x128xf32>
    %c0_1 = arith.constant 0 : index
    %c0_2 = arith.constant 0 : index
    %3 = vector.load %arg2[%c0_1, %c0_2] : memref<128x1024xf32, #tpu.memory_space<vmem>>, vector<128x1024xf32>
    %cst_3 = arith.constant dense<0.000000e+00> : vector<8x1024xf32>
    %4 = tpu.matmul %2, %3, %cst_3 {dimension_numbers = #tpu.dot_dimension_numbers<[1], [0], [0], [1], [0, 0, 1, 1], [], []>, precision = #tpu.contract_precision<fp32>} : vector<8x128xf32>, vector<128x1024xf32>, vector<8x1024xf32> -> vector<8x1024xf32>
    %c0_4 = arith.constant 0 : index
    %c0_5 = arith.constant 0 : index
    %5 = vector.load %arg3[%c0_4, %c0_5] : memref<1x1024xf32, #tpu.memory_space<vmem>>, vector<1x1024xf32>
    %6 = vector.broadcast %5 : vector<1x1024xf32> to vector<8x1024xf32>
    %7 = arith.subf %4, %6 : vector<8x1024xf32>
    %8 = arith.mulf %7, %7 : vector<8x1024xf32>
    %cst_6 = arith.constant 0.000000e+00 : f32
    %9 = vector.broadcast %cst_6 : f32 to vector<8x1024xf32>
    %10 = arith.subf %9, %8 : vector<8x1024xf32>
    %11 = math.exp %10 : vector<8x1024xf32>
    %c0_7 = arith.constant 0 : index
    %c0_8 = arith.constant 0 : index
    %12 = vector.load %arg4[%c0_7, %c0_8] : memref<8x1024xf32, #tpu.memory_space<vmem>>, vector<8x1024xf32>
    tpu.vector_store %arg4[%c0_7, %c0_8], %11 {strides = array<i32>} : memref<8x1024xf32, #tpu.memory_space<vmem>>, vector<8x1024xf32>,
    return
  }
  func.func @transform_0(%arg0: i32) -> (i32, i32) {
    %c0_i32 = arith.constant 0 : i32
    %c0_i32_0 = arith.constant 0 : i32
    return %arg0, %c0_i32 : i32, i32
  }
  func.func @transform_1(%arg0: i32) -> (i32, i32) {
    %c0_i32 = arith.constant 0 : i32
    %c0_i32_0 = arith.constant 0 : i32
    %c0_i32_1 = arith.constant 0 : i32
    return %c0_i32, %c0_i32_0 : i32, i32
  }
  func.func @transform_2(%arg0: i32) -> (i32, i32) {
    %c0_i32 = arith.constant 0 : i32
    %c0_i32_0 = arith.constant 0 : i32
    %c0_i32_1 = arith.constant 0 : i32
    return %c0_i32, %c0_i32_0 : i32, i32
  }
  func.func @transform_3(%arg0: i32) -> (i32, i32) {
    %c0_i32 = arith.constant 0 : i32
    %c0_i32_0 = arith.constant 0 : i32
    return %arg0, %c0_i32 : i32, i32
  }
}

</mosaic_0001>

<llo_original>
// kernel: tpu_custom_call.1
$region0: #{tpu_custom_call.1}
  #allocation0 [shape = 'u32[]', space=smem, size = 0x4, offset = 0x4, fixed_abs, tag = 'smem constant byte address 0x4 - core index']
  #allocation1 [shape = 'u32[144,128]{1,0:T(1,128)}', space=vmem, size = 0x12000, scoped, tag = 'internal scratch']
  %s0 = inlined_call_operand.hbm [shape: f32[16,128], index: 0, kind: input, shape index: {}]
  %s1 = inlined_call_operand.hbm [shape: f32[128,1024], index: 1, kind: input, shape index: {}]
  %s2 = inlined_call_operand.hbm [shape: f32[1,1024], index: 2, kind: input, shape index: {}]
  %s3 = inlined_call_operand.hbm [shape: f32[16,1024], index: 3, kind: output, shape index: {}]
  %s4 = sld [smem:[#allocation0]]
  $region57: #{tpu_custom_call.1} parent=0
    _
  %s6 = ssub.s32 1, %s4
  %s7 = scalar_select 0, %s6, %s4
  $region1: #{tpu_custom_call.1} parent=0
    #allocation2 [shape = 'u8[8192]{0}', space=vmem, size = 0x2000, scoped, tag = 'input window, operand 0']
    #allocation3 [shape = 's32[2]{0}', space=sflag, size = 0x8, scoped, tag = 'scoped memory for tpu_custom_call.1']
    #allocation4 [shape = 's32[2]{0}', space=sflag, size = 0x8, scoped, tag = 'scoped memory for tpu_custom_call.1']
    #allocation5 [shape = 'u8[524288]{0}', space=vmem, size = 0x80000, scoped, tag = 'input window, operand 1, single buffered']
    #allocation6 [shape = 's32[1]{0}', space=sflag, size = 0x4, scoped, tag = 'scoped memory for tpu_custom_call.1']
    #allocation7 [shape = 'u8[4096]{0}', space=vmem, size = 0x1000, scoped, tag = 'input window, operand 2, single buffered']
    #allocation8 [shape = 'u8[65536]{0}', space=vmem, size = 0x10000, scoped, tag = 'output window, operand 0']
    %8 = vsyncpa [#allocation3], 0
    %s9 = scalar_lea.sflag [#allocation3], 1
    %10 = vsyncpa %s9, 0
    %11 = vsyncpa [#allocation6], 0
    %12 = vsyncpa [#allocation4], 0
    %s13 = scalar_lea.sflag [#allocation4], 1
    %14 = vsyncpa %s13, 0
    loop: start=0, step=1, limit=4
    $region2: #{tpu_custom_call.1} parent=1 // loop_pre_header
      _
    $region3: #{tpu_custom_call.1} parent=1 // loop_header
      %s16 = sphi 0, %s20
      %p17 = scmp.ge.s32.totalorder %s16, 4
      %s26 = sphi 0, %s28
      %s29 = sphi 0, %s26
      %s30 = sphi 0, %s29
      %s46 = sphi 0, %s30
      %s50 = sphi 0, %s50
      %s52 = sphi 0, %s50
      %s53 = sphi 0, %s52
      %s67 = sphi 0, %s53
      %s71 = sphi 0, %s71
      %s73 = sphi 0, %s71
      %s74 = sphi 0, %s73
      %s88 = sphi 0, %s74
      %s94 = sphi 0, %s96
      %s97 = sphi 0, %s94
      %s98 = sphi 0, %s97
      %s114 = sphi 0, %s98
    $region4: #{tpu_custom_call.1} parent=1 // loop_header_branch
      %19 = sbr.rel (%p17) target = $region8
    $region5: #{tpu_custom_call.1} parent=1 // loop_body
      %s21 = ssub.s32 %s16, 1
      %s22 = ssub.s32 %s16, 2
      %s23 = sadd.s32 %s16, 1
      %s24 = ssub.s32 %s16, %s23
      %p25 = scmp.eq.s32.totalorder %s24, 0
      %s27 = sadd.s32 %s26, 1
      %s28 = scalar_select %p25, %s26, %s27
      %p31 = pneg %p25
      %p32 = scmp.eq.s32.totalorder %s16, 1
      %p33 = por %p31, %p32
      %p34 = scmp.ne.s32.totalorder %s26, %s29
      %p35 = scmp.eq.s32.totalorder %s16, 0
      %p36 = por %p34, %p35
      %p37 = scmp.ne.s32.totalorder %s26, %s29
      %p38 = scmp.eq.s32.totalorder %s21, 1
      %p39 = por %p37, %p38
      %p40 = scmp.ne.s32.totalorder %s29, %s30
      %p41 = scmp.eq.s32.totalorder %s21, 0
      %p42 = por %p40, %p41
      %p43 = scmp.ne.s32.totalorder %s29, %s30
      %p44 = scmp.eq.s32.totalorder %s22, 1
      %p45 = por %p43, %p44
      %p47 = scmp.ne.s32.totalorder %s30, %s46
      %p48 = scmp.eq.s32.totalorder %s22, 0
      %p49 = por %p47, %p48
      %s51 = sadd.s32 %s50, 1
      %p54 = scmp.eq.s32.totalorder %s16, 1
      %p55 = scmp.ne.s32.totalorder %s50, %s52
      %p56 = scmp.eq.s32.totalorder %s16, 0
      %p57 = por %p55, %p56
      %p58 = scmp.ne.s32.totalorder %s50, %s52
      %p59 = scmp.eq.s32.totalorder %s21, 1
      %p60 = por %p58, %p59
      %p61 = scmp.ne.s32.totalorder %s52, %s53
      %p62 = scmp.eq.s32.totalorder %s21, 0
      %p63 = por %p61, %p62
      %p64 = scmp.ne.s32.totalorder %s52, %s53
      %p65 = scmp.eq.s32.totalorder %s22, 1
      %p66 = por %p64, %p65
      %p68 = scmp.ne.s32.totalorder %s53, %s67
      %p69 = scmp.eq.s32.totalorder %s22, 0
      %p70 = por %p68, %p69
      %s72 = sadd.s32 %s71, 1
      %p75 = scmp.eq.s32.totalorder %s16, 1
      %p76 = scmp.ne.s32.totalorder %s71, %s73
      %p77 = scmp.eq.s32.totalorder %s16, 0
      %p78 = por %p76, %p77
      %p79 = scmp.ne.s32.totalorder %s71, %s73
      %p80 = scmp.eq.s32.totalorder %s21, 1
      %p81 = por %p79, %p80
      %p82 = scmp.ne.s32.totalorder %s73, %s74
      %p83 = scmp.eq.s32.totalorder %s21, 0
      %p84 = por %p82, %p83
      %p85 = scmp.ne.s32.totalorder %s73, %s74
      %p86 = scmp.eq.s32.totalorder %s22, 1
      %p87 = por %p85, %p86
      %p89 = scmp.ne.s32.totalorder %s74, %s88
      %p90 = scmp.eq.s32.totalorder %s22, 0
      %p91 = por %p89, %p90
      %s92 = ssub.s32 %s16, %s23
      %p93 = scmp.eq.s32.totalorder %s92, 0
      %s95 = sadd.s32 %s94, 1
      %s96 = scalar_select %p93, %s94, %s95
      %p99 = pneg %p93
      %p100 = scmp.eq.s32.totalorder %s16, 1
      %p101 = por %p99, %p100
      %p102 = scmp.ne.s32.totalorder %s94, %s97
      %p103 = scmp.eq.s32.totalorder %s16, 0
      %p104 = por %p102, %p103
      %p105 = scmp.ne.s32.totalorder %s94, %s97
      %p106 = scmp.eq.s32.totalorder %s21, 1
      %p107 = por %p105, %p106
      %p108 = scmp.ne.s32.totalorder %s97, %s98
      %p109 = scmp.eq.s32.totalorder %s21, 0
      %p110 = por %p108, %p109
      %p111 = scmp.ne.s32.totalorder %s97, %s98
      %p112 = scmp.eq.s32.totalorder %s22, 1
      %p113 = por %p111, %p112
      %p115 = scmp.ne.s32.totalorder %s98, %s114
      %p116 = scmp.eq.s32.totalorder %s22, 0
      %p117 = por %p115, %p116
      %p118 = scmp.le.s32.totalorder 1, %s16
      %p119 = scmp.lt.s32.totalorder %s16, 3
      %p120 = pnand %p118, %p119
      %p121 = pneg %p120
      // Predicated region
      $region9: #{tpu_custom_call.1} parent=5 // pred_check
        _
      $region10: #{tpu_custom_call.1} parent=5 // pred_check_branch
        %123 = sbr.rel (%p120) target = $region12
      $region11: #{tpu_custom_call.1} parent=5 // pred_region
        %s124 = ssub.s32 %s16, 1
        // Predicated region
        $region13: #{tpu_custom_call.1} parent=11 // pred_check
          %p125 = pneg %p63
        $region14: #{tpu_custom_call.1} parent=11 // pred_check_branch
          %127 = sbr.rel (%p125) target = $region16
        $region15: #{tpu_custom_call.1} parent=11 // pred_region
          %s129 = ssub.s32 16384, 16384
          %130 = vsyncadd [#allocation6], %s129
          %s131 = sshll.u32 [#allocation5], 4
          %s132 = int_to_ptr.vmem [resolvable:$true] %s131
          %137 = dma.hbm_to_vmem [thread:$0]  %s1, 16384, %s132, [#allocation6], 1024, 1024, 64
        $region16: #{tpu_custom_call.1} parent=11 // pred_fallthru
          _
        // Predicated region
        $region17: #{tpu_custom_call.1} parent=11 // pred_check
          %p138 = pneg %p84
        $region18: #{tpu_custom_call.1} parent=11 // pred_check_branch
          %140 = sbr.rel (%p138) target = $region20
        $region19: #{tpu_custom_call.1} parent=11 // pred_region
          %s142 = ssub.s32 128, 128
          %143 = vsyncadd [#allocation6], %s142
          %s145 = sshll.u32 [#allocation7], 4
          %s146 = int_to_ptr.vmem [resolvable:$true] %s145
          %148 = dma.hbm_to_vmem [thread:$0]  %s2, 128, %s146, [#allocation6]
        $region20: #{tpu_custom_call.1} parent=11 // pred_fallthru
          _
      $region12: #{tpu_custom_call.1} parent=5 // pred_fallthru
        _
      %p149 = scmp.lt.s32.totalorder %s16, 2
      // Predicated region
      $region21: #{tpu_custom_call.1} parent=5 // pred_check
        %p150 = pneg %p149
      $region22: #{tpu_custom_call.1} parent=5 // pred_check_branch
        %152 = sbr.rel (%p150) target = $region24
      $region23: #{tpu_custom_call.1} parent=5 // pred_region
        // Predicated region
        $region25: #{tpu_custom_call.1} parent=23 // pred_check
          %p153 = pneg %p36
        $region26: #{tpu_custom_call.1} parent=23 // pred_check_branch
          %155 = sbr.rel (%p153) target = $region28
        $region27: #{tpu_custom_call.1} parent=23 // pred_region
          %s156 = sand.u32 %s26, 1
          %s157 = scalar_lea.sflag [#allocation3], %s156
          %s158 = sand.u32 %s26, 1
          %s159 = smul.addr %s158, 8
          %s160 = scalar_lea.vmem [#allocation2], %s159
          %s162 = ssub.s32 128, 128
          %163 = vsyncadd %s157, %s162
          %s164 = smul.addr %s16, 128
          %s165 = scalar_lea.hbm %s0, %s164
          %s167 = sshll.u32 %s160, 4
          %s168 = int_to_ptr.vmem [resolvable:$true] %s167
          %170 = dma.hbm_to_vmem [thread:$0]  %s165, 128, %s168, %s157
        $region28: #{tpu_custom_call.1} parent=23 // pred_fallthru
          _
      $region24: #{tpu_custom_call.1} parent=5 // pred_fallthru
        _
      %p171 = scmp.le.s32.totalorder 1, %s16
      %p172 = scmp.lt.s32.totalorder %s16, 3
      %p173 = pnand %p171, %p172
      %p174 = pneg %p173
      // Predicated region
      $region29: #{tpu_custom_call.1} parent=5 // pred_check
        _
      $region30: #{tpu_custom_call.1} parent=5 // pred_check_branch
        %176 = sbr.rel (%p173) target = $region32
      $region31: #{tpu_custom_call.1} parent=5 // pred_region
        %s177 = ssub.s32 %s16, 1
        %s178 = sand.u32 %s29, 1
        %s179 = scalar_lea.sflag [#allocation3], %s178
        %s180 = sand.u32 %s29, 1
        %s181 = smul.addr %s180, 8
        %s182 = scalar_lea.vmem [#allocation2], %s181
        // Predicated region
        $region33: #{tpu_custom_call.1} parent=31 // pred_check
          %p183 = pneg %p42
        $region34: #{tpu_custom_call.1} parent=31 // pred_check_branch
          %185 = sbr.rel (%p183) target = $region36
        $region35: #{tpu_custom_call.1} parent=31 // pred_region
          %186 = dma.done %s179, 128
        $region36: #{tpu_custom_call.1} parent=31 // pred_fallthru
          _
        // Predicated region
        $region37: #{tpu_custom_call.1} parent=31 // pred_check
          %p187 = pneg %p63
        $region38: #{tpu_custom_call.1} parent=31 // pred_check_branch
          %189 = sbr.rel (%p187) target = $region40
        $region39: #{tpu_custom_call.1} parent=31 // pred_region
          %190 = dma.done [#allocation6], 16384
        $region40: #{tpu_custom_call.1} parent=31 // pred_fallthru
          _
        // Predicated region
        $region41: #{tpu_custom_call.1} parent=31 // pred_check
          %p191 = pneg %p84
        $region42: #{tpu_custom_call.1} parent=31 // pred_check_branch
          %193 = sbr.rel (%p191) target = $region44
        $region43: #{tpu_custom_call.1} parent=31 // pred_region
          %194 = dma.done [#allocation6], 128
        $region44: #{tpu_custom_call.1} parent=31 // pred_fallthru
          _
        %s195 = sand.u32 %s29, 1
        %s196 = scalar_lea.sflag [#allocation3], %s195
        %s197 = sand.u32 %s29, 1
        %s198 = smul.addr %s197, 8
        %s199 = scalar_lea.vmem [#allocation2], %s198
        %p200 = pneg %p42
        %p201 = pneg %p39
        %p202 = pneg %p63
        %p203 = pneg %p60
        %p204 = pneg %p84
        %p205 = pneg %p81
        %p206 = pneg %p110
        %p207 = pneg %p107
        %s208 = sand.u32 %s97, 1
        %s209 = scalar_lea.sflag [#allocation4], %s208
        %s210 = sand.u32 %s97, 1
        %s211 = smul.addr %s210, 64
        %s212 = scalar_lea.vmem [#allocation8], %s211
        %v213 = vld [vmem:[%s182] sm:$0xff]
        %v214 = vmul.f32 %v213, 2.3333333
        %v215 = vld [vmem:[#allocation5] sm:$0xff]
        %v216 = vld [vmem:[#allocation5 + $0x8] sm:$0xff]
        %v217 = vld [vmem:[#allocation5 + $0x10] sm:$0xff]
        %v218 = vld [vmem:[#allocation5 + $0x18] sm:$0xff]
        %v219 = vld [vmem:[#allocation5 + $0x20] sm:$0xff]
        %v220 = vld [vmem:[#allocation5 + $0x28] sm:$0xff]
        %v221 = vld [vmem:[#allocation5 + $0x30] sm:$0xff]
        %v222 = vld [vmem:[#allocation5 + $0x38] sm:$0xff]
        %v223 = vld [vmem:[#allocation5 + $0x40] sm:$0xff]
        %v224 = vld [vmem:[#allocation5 + $0x48] sm:$0xff]
        %v225 = vld [vmem:[#allocation5 + $0x50] sm:$0xff]
        %v226 = vld [vmem:[#allocation5 + $0x58] sm:$0xff]
        %v227 = vld [vmem:[#allocation5 + $0x60] sm:$0xff]
        %v228 = vld [vmem:[#allocation5 + $0x68] sm:$0xff]
        %v229 = vld [vmem:[#allocation5 + $0x70] sm:$0xff]
        %v230 = vld [vmem:[#allocation5 + $0x78] sm:$0xff]
        %v231 = vld [vmem:[#allocation5 + $0x80] sm:$0xff]
        %v232 = vld [vmem:[#allocation5 + $0x88] sm:$0xff]
        %v233 = vld [vmem:[#allocation5 + $0x90] sm:$0xff]
        %v234 = vld [vmem:[#allocation5 + $0x98] sm:$0xff]
        %v235 = vld [vmem:[#allocation5 + $0xa0] sm:$0xff]
        %v236 = vld [vmem:[#allocation5 + $0xa8] sm:$0xff]
        %v237 = vld [vmem:[#allocation5 + $0xb0] sm:$0xff]
        %v238 = vld [vmem:[#allocation5 + $0xb8] sm:$0xff]
        %v239 = vld [vmem:[#allocation5 + $0xc0] sm:$0xff]
        %v240 = vld [vmem:[#allocation5 + $0xc8] sm:$0xff]
        %v241 = vld [vmem:[#allocation5 + $0xd0] sm:$0xff]
        %v242 = vld [vmem:[#allocation5 + $0xd8] sm:$0xff]
        %v243 = vld [vmem:[#allocation5 + $0xe0] sm:$0xff]
        %v244 = vld [vmem:[#allocation5 + $0xe8] sm:$0xff]
        %v245 = vld [vmem:[#allocation5 + $0xf0] sm:$0xff]
        %v246 = vld [vmem:[#allocation5 + $0xf8] sm:$0xff]
        %v247 = vld [vmem:[#allocation5 + $0x100] sm:$0xff]
        %v248 = vld [vmem:[#allocation5 + $0x108] sm:$0xff]
        %v249 = vld [vmem:[#allocation5 + $0x110] sm:$0xff]
        %v250 = vld [vmem:[#allocation5 + $0x118] sm:$0xff]
        %v251 = vld [vmem:[#allocation5 + $0x120] sm:$0xff]
        %v252 = vld [vmem:[#allocation5 + $0x128] sm:$0xff]
        %v253 = vld [vmem:[#allocation5 + $0x130] sm:$0xff]
        %v254 = vld [vmem:[#allocation5 + $0x138] sm:$0xff]
        %v255 = vld [vmem:[#allocation5 + $0x140] sm:$0xff]
        %v256 = vld [vmem:[#allocation5 + $0x148] sm:$0xff]
        %v257 = vld [vmem:[#allocation5 + $0x150] sm:$0xff]
        %v258 = vld [vmem:[#allocation5 + $0x158] sm:$0xff]
        %v259 = vld [vmem:[#allocation5 + $0x160] sm:$0xff]
        %v260 = vld [vmem:[#allocation5 + $0x168] sm:$0xff]
        %v261 = vld [vmem:[#allocation5 + $0x170] sm:$0xff]
        %v262 = vld [vmem:[#allocation5 + $0x178] sm:$0xff]
        %v263 = vld [vmem:[#allocation5 + $0x180] sm:$0xff]
        %v264 = vld [vmem:[#allocation5 + $0x188] sm:$0xff]
        %v265 = vld [vmem:[#allocation5 + $0x190] sm:$0xff]
        %v266 = vld [vmem:[#allocation5 + $0x198] sm:$0xff]
        %v267 = vld [vmem:[#allocation5 + $0x1a0] sm:$0xff]
        %v268 = vld [vmem:[#allocation5 + $0x1a8] sm:$0xff]
        %v269 = vld [vmem:[#allocation5 + $0x1b0] sm:$0xff]
        %v270 = vld [vmem:[#allocation5 + $0x1b8] sm:$0xff]
        %v271 = vld [vmem:[#allocation5 + $0x1c0] sm:$0xff]
        %v272 = vld [vmem:[#allocation5 + $0x1c8] sm:$0xff]
        %v273 = vld [vmem:[#allocation5 + $0x1d0] sm:$0xff]
        %v274 = vld [vmem:[#allocation5 + $0x1d8] sm:$0xff]
        %v275 = vld [vmem:[#allocation5 + $0x1e0] sm:$0xff]
        %v276 = vld [vmem:[#allocation5 + $0x1e8] sm:$0xff]
        %v277 = vld [vmem:[#allocation5 + $0x1f0] sm:$0xff]
        %v278 = vld [vmem:[#allocation5 + $0x1f8] sm:$0xff]
        %v279 = vld [vmem:[#allocation5 + $0x200] sm:$0xff]
        %v280 = vld [vmem:[#allocation5 + $0x208] sm:$0xff]
        %v281 = vld [vmem:[#allocation5 + $0x210] sm:$0xff]
        %v282 = vld [vmem:[#allocation5 + $0x218] sm:$0xff]
        %v283 = vld [vmem:[#allocation5 + $0x220] sm:$0xff]
        %v284 = vld [vmem:[#allocation5 + $0x228] sm:$0xff]
        %v285 = vld [vmem:[#allocation5 + $0x230] sm:$0xff]
        %v286 = vld [vmem:[#allocation5 + $0x238] sm:$0xff]
        %v287 = vld [vmem:[#allocation5 + $0x240] sm:$0xff]
        %v288 = vld [vmem:[#allocation5 + $0x248] sm:$0xff]
        %v289 = vld [vmem:[#allocation5 + $0x250] sm:$0xff]
        %v290 = vld [vmem:[#allocation5 + $0x258] sm:$0xff]
        %v291 = vld [vmem:[#allocation5 + $0x260] sm:$0xff]
        %v292 = vld [vmem:[#allocation5 + $0x268] sm:$0xff]
        %v293 = vld [vmem:[#allocation5 + $0x270] sm:$0xff]
        %v294 = vld [vmem:[#allocation5 + $0x278] sm:$0xff]
        %v295 = vld [vmem:[#allocation5 + $0x280] sm:$0xff]
        %v296 = vld [vmem:[#allocation5 + $0x288] sm:$0xff]
        %v297 = vld [vmem:[#allocation5 + $0x290] sm:$0xff]
        %v298 = vld [vmem:[#allocation5 + $0x298] sm:$0xff]
        %v299 = vld [vmem:[#allocation5 + $0x2a0] sm:$0xff]
        %v300 = vld [vmem:[#allocation5 + $0x2a8] sm:$0xff]
        %v301 = vld [vmem:[#allocation5 + $0x2b0] sm:$0xff]
        %v302 = vld [vmem:[#allocation5 + $0x2b8] sm:$0xff]
        %v303 = vld [vmem:[#allocation5 + $0x2c0] sm:$0xff]
        %v304 = vld [vmem:[#allocation5 + $0x2c8] sm:$0xff]
        %v305 = vld [vmem:[#allocation5 + $0x2d0] sm:$0xff]
        %v306 = vld [vmem:[#allocation5 + $0x2d8] sm:$0xff]
        %v307 = vld [vmem:[#allocation5 + $0x2e0] sm:$0xff]
        %v308 = vld [vmem:[#allocation5 + $0x2e8] sm:$0xff]
        %v309 = vld [vmem:[#allocation5 + $0x2f0] sm:$0xff]
        %v310 = vld [vmem:[#allocation5 + $0x2f8] sm:$0xff]
        %v311 = vld [vmem:[#allocation5 + $0x300] sm:$0xff]
        %v312 = vld [vmem:[#allocation5 + $0x308] sm:$0xff]
        %v313 = vld [vmem:[#allocation5 + $0x310] sm:$0xff]
        %v314 = vld [vmem:[#allocation5 + $0x318] sm:$0xff]
        %v315 = vld [vmem:[#allocation5 + $0x320] sm:$0xff]
        %v316 = vld [vmem:[#allocation5 + $0x328] sm:$0xff]
        %v317 = vld [vmem:[#allocation5 + $0x330] sm:$0xff]
        %v318 = vld [vmem:[#allocation5 + $0x338] sm:$0xff]
        %v319 = vld [vmem:[#allocation5 + $0x340] sm:$0xff]
        %v320 = vld [vmem:[#allocation5 + $0x348] sm:$0xff]
        %v321 = vld [vmem:[#allocation5 + $0x350] sm:$0xff]
        %v322 = vld [vmem:[#allocation5 + $0x358] sm:$0xff]
        %v323 = vld [vmem:[#allocation5 + $0x360] sm:$0xff]
        %v324 = vld [vmem:[#allocation5 + $0x368] sm:$0xff]
        %v325 = vld [vmem:[#allocation5 + $0x370] sm:$0xff]
        %v326 = vld [vmem:[#allocation5 + $0x378] sm:$0xff]
        %v327 = vld [vmem:[#allocation5 + $0x380] sm:$0xff]
        %v328 = vld [vmem:[#allocation5 + $0x388] sm:$0xff]
        %v329 = vld [vmem:[#allocation5 + $0x390] sm:$0xff]
        %v330 = vld [vmem:[#allocation5 + $0x398] sm:$0xff]
        %v331 = vld [vmem:[#allocation5 + $0x3a0] sm:$0xff]
        %v332 = vld [vmem:[#allocation5 + $0x3a8] sm:$0xff]
        %v333 = vld [vmem:[#allocation5 + $0x3b0] sm:$0xff]
        %v334 = vld [vmem:[#allocation5 + $0x3b8] sm:$0xff]
        %v335 = vld [vmem:[#allocation5 + $0x3c0] sm:$0xff]
        %v336 = vld [vmem:[#allocation5 + $0x3c8] sm:$0xff]
        %v337 = vld [vmem:[#allocation5 + $0x3d0] sm:$0xff]
        %v338 = vld [vmem:[#allocation5 + $0x3d8] sm:$0xff]
        %v339 = vld [vmem:[#allocation5 + $0x3e0] sm:$0xff]
        %v340 = vld [vmem:[#allocation5 + $0x3e8] sm:$0xff]
        %v341 = vld [vmem:[#allocation5 + $0x3f0] sm:$0xff]
        %v342 = vld [vmem:[#allocation5 + $0x3f8] sm:$0xff]
        %v343 = vand.u32 %v216, 4294901760
        %344 = vmatprep.subr.mxu0 %v343
        %v345 = vand.u32 %v215, 4294901760
        %346 = vmatpush1.msra.mxu0 %v345
        %v347 = vand.u32 %v224, 4294901760
        %348 = vmatprep.subr.mxu0 %v347
        %v349 = vand.u32 %v223, 4294901760
        %350 = vmatpush1.msra.mxu0 %v349
        %v351 = vand.u32 %v232, 4294901760
        %352 = vmatprep.subr.mxu0 %v351
        %v353 = vand.u32 %v231, 4294901760
        %354 = vmatpush1.msra.mxu0 %v353
        %v355 = vand.u32 %v240, 4294901760
        %356 = vmatprep.subr.mxu0 %v355
        %v357 = vand.u32 %v239, 4294901760
        %358 = vmatpush1.msra.mxu0 %v357
        %v359 = vand.u32 %v248, 4294901760
        %360 = vmatprep.subr.mxu0 %v359
        %v361 = vand.u32 %v247, 4294901760
        %362 = vmatpush1.msra.mxu0 %v361
        %v363 = vand.u32 %v256, 4294901760
        %364 = vmatprep.subr.mxu0 %v363
        %v365 = vand.u32 %v255, 4294901760
        %366 = vmatpush1.msra.mxu0 %v365
        %v367 = vand.u32 %v264, 4294901760
        %368 = vmatprep.subr.mxu0 %v367
        %v369 = vand.u32 %v263, 4294901760
        %370 = vmatpush1.msra.mxu0 %v369
        %v371 = vand.u32 %v272, 4294901760
        %372 = vmatprep.subr.mxu0 %v371
        %v373 = vand.u32 %v271, 4294901760
        %374 = vmatpush1.msra.mxu0 %v373
        %v375 = vand.u32 %v280, 4294901760
        %376 = vmatprep.subr.mxu0 %v375
        %v377 = vand.u32 %v279, 4294901760
        %378 = vmatpush1.msra.mxu0 %v377
        %v379 = vand.u32 %v288, 4294901760
        %380 = vmatprep.subr.mxu0 %v379
        %v381 = vand.u32 %v287, 4294901760
        %382 = vmatpush1.msra.mxu0 %v381
        %v383 = vand.u32 %v296, 4294901760
        %384 = vmatprep.subr.mxu0 %v383
        %v385 = vand.u32 %v295, 4294901760
        %386 = vmatpush1.msra.mxu0 %v385
        %v387 = vand.u32 %v304, 4294901760
        %388 = vmatprep.subr.mxu0 %v387
        %v389 = vand.u32 %v303, 4294901760
        %390 = vmatpush1.msra.mxu0 %v389
        %v391 = vand.u32 %v312, 4294901760
        %392 = vmatprep.subr.mxu0 %v391
        %v393 = vand.u32 %v311, 4294901760
        %394 = vmatpush1.msra.mxu0 %v393
        %v395 = vand.u32 %v320, 4294901760
        %396 = vmatprep.subr.mxu0 %v395
        %v397 = vand.u32 %v319, 4294901760
        %398 = vmatpush1.msra.mxu0 %v397
        %v399 = vand.u32 %v328, 4294901760
        %400 = vmatprep.subr.mxu0 %v399
        %v401 = vand.u32 %v327, 4294901760
        %402 = vmatpush1.msra.mxu0 %v401
        %v403 = vand.u32 %v336, 4294901760
        %404 = vmatprep.subr.mxu0 %v403
        %v405 = vand.u32 %v335, 4294901760
        %406 = vmatpush1.msra.mxu0 %v405
        %407 = vmatprep.subr.mxu0 0.0
        %408 = vmatpush1.msra.mxu0 0.0
        %409 = vmatprep.subr.mxu0 0.0
        %410 = vmatpush1.msra.mxu0 0.0
        %411 = vmatprep.subr.mxu0 0.0
        %412 = vmatpush1.msra.mxu0 0.0
        %413 = vmatprep.subr.mxu0 0.0
        %414 = vmatpush1.msra.mxu0 0.0
        %415 = vmatprep.subr.mxu0 0.0
        %416 = vmatpush1.msra.mxu0 0.0
        %417 = vmatprep.subr.mxu0 0.0
        %418 = vmatpush1.msra.mxu0 0.0
        %419 = vmatprep.subr.mxu0 0.0
        %420 = vmatpush1.msra.mxu0 0.0
        %421 = vmatprep.subr.mxu0 0.0
        %422 = vmatpush1.msra.mxu0 0.0
        %423 = vmatprep.subr.mxu0 0.0
        %424 = vmatpush1.msra.mxu0 0.0
        %425 = vmatprep.subr.mxu0 0.0
        %426 = vmatpush1.msra.mxu0 0.0
        %427 = vmatprep.subr.mxu0 0.0
        %428 = vmatpush1.msra.mxu0 0.0
        %429 = vmatprep.subr.mxu0 0.0
        %430 = vmatpush1.msra.mxu0 0.0
        %431 = vmatprep.subr.mxu0 0.0
        %432 = vmatpush1.msra.mxu0 0.0
        %433 = vmatprep.subr.mxu0 0.0
        %434 = vmatpush1.msra.mxu0 0.0
        %435 = vmatprep.subr.mxu0 0.0
        %436 = vmatpush1.msra.mxu0 0.0
        %437 = vmatprep.subr.mxu0 0.0
        %438 = vmatpush1.msra.mxu0 0.0
        %439 = vmatprep.mubr.f32.mxu0 0.0
        %v440 = vand.u32 %v214, 4294901760
        %v441 = vsub.f32 %v214, %v440
        %v442 = vand.u32 %v441, 4294901760
        %v443 = vsub.f32 %v441, %v442
        %v444 = vand.u32 %v443, 4294901760
        %445 = vmatmul.mubr.f32.gmra.mrb[0].mxu0 %v444
        %v446 = vpop.f32.mrb[0].mxu0
        %v447 = vadd.f32 0.0, %v446
        %v448 = vpop.f32.mrb[0].mxu0
        %v449 = vadd.f32 0.0, %v448
        %450 = vdwg.mxu0
        %v451 = vand.u32 %v216, 4294901760
        %v452 = vsub.f32 %v216, %v451
        %v453 = vand.u32 %v452, 4294901760
        %v454 = vsub.f32 %v452, %v453
        %v455 = vand.u32 %v454, 4294901760
        %456 = vmatprep.subr.mxu0 %v455
        %v457 = vand.u32 %v215, 4294901760
        %v458 = vsub.f32 %v215, %v457
        %v459 = vand.u32 %v458, 4294901760
        %v460 = vsub.f32 %v458, %v459
        %v461 = vand.u32 %v460, 4294901760
        %462 = vmatpush1.msra.mxu0 %v461
        %v463 = vand.u32 %v224, 4294901760
        %v464 = vsub.f32 %v224, %v463
        %v465 = vand.u32 %v464, 4294901760
        %v466 = vsub.f32 %v464, %v465
        %v467 = vand.u32 %v466, 4294901760
        %468 = vmatprep.subr.mxu0 %v467
        %v469 = vand.u32 %v223, 4294901760
        %v470 = vsub.f32 %v223, %v469
        %v471 = vand.u32 %v470, 4294901760
        %v472 = vsub.f32 %v470, %v471
        %v473 = vand.u32 %v472, 4294901760
        %474 = vmatpush1.msra.mxu0 %v473
        %v475 = vand.u32 %v232, 4294901760
        %v476 = vsub.f32 %v232, %v475
        %v477 = vand.u32 %v476, 4294901760
        %v478 = vsub.f32 %v476, %v477
        %v479 = vand.u32 %v478, 4294901760
        %480 = vmatprep.subr.mxu0 %v479
        %v481 = vand.u32 %v231, 4294901760
        %v482 = vsub.f32 %v231, %v481
        %v483 = vand.u32 %v482, 4294901760
        %v484 = vsub.f32 %v482, %v483
        %v485 = vand.u32 %v484, 4294901760
        %486 = vmatpush1.msra.mxu0 %v485
        %v487 = vand.u32 %v240, 4294901760
        %v488 = vsub.f32 %v240, %v487
        %v489 = vand.u32 %v488, 4294901760
        %v490 = vsub.f32 %v488, %v489
        %v491 = vand.u32 %v490, 4294901760
        %492 = vmatprep.subr.mxu0 %v491
        %v493 = vand.u32 %v239, 4294901760
        %v494 = vsub.f32 %v239, %v493
        %v495 = vand.u32 %v494, 4294901760
        %v496 = vsub.f32 %v494, %v495
        %v497 = vand.u32 %v496, 4294901760
        %498 = vmatpush1.msra.mxu0 %v497
        %v499 = vand.u32 %v248, 4294901760
        %v500 = vsub.f32 %v248, %v499
        %v501 = vand.u32 %v500, 4294901760
        %v502 = vsub.f32 %v500, %v501
        %v503 = vand.u32 %v502, 4294901760
        %504 = vmatprep.subr.mxu0 %v503
        %v505 = vand.u32 %v247, 4294901760
        %v506 = vsub.f32 %v247, %v505
        %v507 = vand.u32 %v506, 4294901760
        %v508 = vsub.f32 %v506, %v507
        %v509 = vand.u32 %v508, 4294901760
        %510 = vmatpush1.msra.mxu0 %v509
        %v511 = vand.u32 %v256, 4294901760
        %v512 = vsub.f32 %v256, %v511
        %v513 = vand.u32 %v512, 4294901760
        %v514 = vsub.f32 %v512, %v513
        %v515 = vand.u32 %v514, 4294901760
        %516 = vmatprep.subr.mxu0 %v515
        %v517 = vand.u32 %v255, 4294901760
        %v518 = vsub.f32 %v255, %v517
        %v519 = vand.u32 %v518, 4294901760
        %v520 = vsub.f32 %v518, %v519
        %v521 = vand.u32 %v520, 4294901760
        %522 = vmatpush1.msra.mxu0 %v521
        %v523 = vand.u32 %v264, 4294901760
        %v524 = vsub.f32 %v264, %v523
        %v525 = vand.u32 %v524, 4294901760
        %v526 = vsub.f32 %v524, %v525
        %v527 = vand.u32 %v526, 4294901760
        %528 = vmatprep.subr.mxu0 %v527
        %v529 = vand.u32 %v263, 4294901760
        %v530 = vsub.f32 %v263, %v529
        %v531 = vand.u32 %v530, 4294901760
        %v532 = vsub.f32 %v530, %v531
        %v533 = vand.u32 %v532, 4294901760
        %534 = vmatpush1.msra.mxu0 %v533
        %v535 = vand.u32 %v272, 4294901760
        %v536 = vsub.f32 %v272, %v535
        %v537 = vand.u32 %v536, 4294901760
        %v538 = vsub.f32 %v536, %v537
        %v539 = vand.u32 %v538, 4294901760
        %540 = vmatprep.subr.mxu0 %v539
        %v541 = vand.u32 %v271, 4294901760
        %v542 = vsub.f32 %v271, %v541
        %v543 = vand.u32 %v542, 4294901760
        %v544 = vsub.f32 %v542, %v543
        %v545 = vand.u32 %v544, 4294901760
        %546 = vmatpush1.msra.mxu0 %v545
        %v547 = vand.u32 %v280, 4294901760
        %v548 = vsub.f32 %v280, %v547
        %v549 = vand.u32 %v548, 4294901760
        %v550 = vsub.f32 %v548, %v549
        %v551 = vand.u32 %v550, 4294901760
        %552 = vmatprep.subr.mxu0 %v551
        %v553 = vand.u32 %v279, 4294901760
        %v554 = vsub.f32 %v279, %v553
        %v555 = vand.u32 %v554, 4294901760
        %v556 = vsub.f32 %v554, %v555
        %v557 = vand.u32 %v556, 4294901760
        %558 = vmatpush1.msra.mxu0 %v557
        %v559 = vand.u32 %v288, 4294901760
        %v560 = vsub.f32 %v288, %v559
        %v561 = vand.u32 %v560, 4294901760
        %v562 = vsub.f32 %v560, %v561
        %v563 = vand.u32 %v562, 4294901760
        %564 = vmatprep.subr.mxu0 %v563
        %v565 = vand.u32 %v287, 4294901760
        %v566 = vsub.f32 %v287, %v565
        %v567 = vand.u32 %v566, 4294901760
        %v568 = vsub.f32 %v566, %v567
        %v569 = vand.u32 %v568, 4294901760
        %570 = vmatpush1.msra.mxu0 %v569
        %v571 = vand.u32 %v296, 4294901760
        %v572 = vsub.f32 %v296, %v571
        %v573 = vand.u32 %v572, 4294901760
        %v574 = vsub.f32 %v572, %v573
        %v575 = vand.u32 %v574, 4294901760
        %576 = vmatprep.subr.mxu0 %v575
        %v577 = vand.u32 %v295, 4294901760
        %v578 = vsub.f32 %v295, %v577
        %v579 = vand.u32 %v578, 4294901760
        %v580 = vsub.f32 %v578, %v579
        %v581 = vand.u32 %v580, 4294901760
        %582 = vmatpush1.msra.mxu0 %v581
        %v583 = vand.u32 %v304, 4294901760
        %v584 = vsub.f32 %v304, %v583
        %v585 = vand.u32 %v584, 4294901760
        %v586 = vsub.f32 %v584, %v585
        %v587 = vand.u32 %v586, 4294901760
        %588 = vmatprep.subr.mxu0 %v587
        %v589 = vand.u32 %v303, 4294901760
        %v590 = vsub.f32 %v303, %v589
        %v591 = vand.u32 %v590, 4294901760
        %v592 = vsub.f32 %v590, %v591
        %v593 = vand.u32 %v592, 4294901760
        %594 = vmatpush1.msra.mxu0 %v593
        %v595 = vand.u32 %v312, 4294901760
        %v596 = vsub.f32 %v312, %v595
        %v597 = vand.u32 %v596, 4294901760
        %v598 = vsub.f32 %v596, %v597
        %v599 = vand.u32 %v598, 4294901760
        %600 = vmatprep.subr.mxu0 %v599
        %v601 = vand.u32 %v311, 4294901760
        %v602 = vsub.f32 %v311, %v601
        %v603 = vand.u32 %v602, 4294901760
        %v604 = vsub.f32 %v602, %v603
        %v605 = vand.u32 %v604, 4294901760
        %606 = vmatpush1.msra.mxu0 %v605
        %v607 = vand.u32 %v320, 4294901760
        %v608 = vsub.f32 %v320, %v607
        %v609 = vand.u32 %v608, 4294901760
        %v610 = vsub.f32 %v608, %v609
        %v611 = vand.u32 %v610, 4294901760
        %612 = vmatprep.subr.mxu0 %v611
        %v613 = vand.u32 %v319, 4294901760
        %v614 = vsub.f32 %v319, %v613
        %v615 = vand.u32 %v614, 4294901760
        %v616 = vsub.f32 %v614, %v615
        %v617 = vand.u32 %v616, 4294901760
        %618 = vmatpush1.msra.mxu0 %v617
        %v619 = vand.u32 %v328, 4294901760
        %v620 = vsub.f32 %v328, %v619
        %v621 = vand.u32 %v620, 4294901760
        %v622 = vsub.f32 %v620, %v621
        %v623 = vand.u32 %v622, 4294901760
        %624 = vmatprep.subr.mxu0 %v623
        %v625 = vand.u32 %v327, 4294901760
        %v626 = vsub.f32 %v327, %v625
        %v627 = vand.u32 %v626, 4294901760
        %v628 = vsub.f32 %v626, %v627
        %v629 = vand.u32 %v628, 4294901760
        %630 = vmatpush1.msra.mxu0 %v629
        %v631 = vand.u32 %v336, 4294901760
        %v632 = vsub.f32 %v336, %v631
        %v633 = vand.u32 %v632, 4294901760
        %v634 = vsub.f32 %v632, %v633
        %v635 = vand.u32 %v634, 4294901760
        %636 = vmatprep.subr.mxu0 %v635
        %v637 = vand.u32 %v335, 4294901760
        %v638 = vsub.f32 %v335, %v637
        %v639 = vand.u32 %v638, 4294901760
        %v640 = vsub.f32 %v638, %v639
        %v641 = vand.u32 %v640, 4294901760
        %642 = vmatpush1.msra.mxu0 %v641
        %643 = vmatprep.subr.mxu0 0.0
        %644 = vmatpush1.msra.mxu0 0.0
        %645 = vmatprep.subr.mxu0 0.0
        %646 = vmatpush1.msra.mxu0 0.0
        %647 = vmatprep.subr.mxu0 0.0
        %648 = vmatpush1.msra.mxu0 0.0
        %649 = vmatprep.subr.mxu0 0.0
        %650 = vmatpush1.msra.mxu0 0.0
        %651 = vmatprep.subr.mxu0 0.0
        %652 = vmatpush1.msra.mxu0 0.0
        %653 = vmatprep.subr.mxu0 0.0
        %654 = vmatpush1.msra.mxu0 0.0
        %655 = vmatprep.subr.mxu0 0.0
        %656 = vmatpush1.msra.mxu0 0.0
        %657 = vmatprep.subr.mxu0 0.0
        %658 = vmatpush1.msra.mxu0 0.0
        %659 = vmatprep.subr.mxu0 0.0
        %660 = vmatpush1.msra.mxu0 0.0
        %661 = vmatprep.subr.mxu0 0.0
        %662 = vmatpush1.msra.mxu0 0.0
        %663 = vmatprep.subr.mxu0 0.0
        %664 = vmatpush1.msra.mxu0 0.0
        %665 = vmatprep.subr.mxu0 0.0
        %666 = vmatpush1.msra.mxu0 0.0
        %667 = vmatprep.subr.mxu0 0.0
        %668 = vmatpush1.msra.mxu0 0.0
        %669 = vmatprep.subr.mxu0 0.0
        %670 = vmatpush1.msra.mxu0 0.0
        %671 = vmatprep.subr.mxu0 0.0
        %672 = vmatpush1.msra.mxu0 0.0
        %673 = vmatprep.subr.mxu0 0.0
        %674 = vmatpush1.msra.mxu0 0.0
        %675 = vmatprep.mubr.f32.mxu0 0.0
        %v676 = vand.u32 %v214, 4294901760
        %677 = vmatmul.mubr.f32.gmra.mrb[0].mxu0 %v676
        %v678 = vpop.f32.mrb[0].mxu0
        %v679 = vadd.f32 %v447, %v678
        %v680 = vpop.f32.mrb[0].mxu0
        %v681 = vadd.f32 %v449, %v680
        %682 = vdwg.mxu0
        %v683 = vand.u32 %v216, 4294901760
        %v684 = vsub.f32 %v216, %v683
        %685 = vmatprep.subr.mxu0 %v684
        %v686 = vand.u32 %v215, 4294901760
        %v687 = vsub.f32 %v215, %v686
        %688 = vmatpush1.msra.mxu0 %v687
        %v689 = vand.u32 %v224, 4294901760
        %v690 = vsub.f32 %v224, %v689
        %691 = vmatprep.subr.mxu0 %v690
        %v692 = vand.u32 %v223, 4294901760
        %v693 = vsub.f32 %v223, %v692
        %694 = vmatpush1.msra.mxu0 %v693
        %v695 = vand.u32 %v232, 4294901760
        %v696 = vsub.f32 %v232, %v695
        %697 = vmatprep.subr.mxu0 %v696
        %v698 = vand.u32 %v231, 4294901760
        %v699 = vsub.f32 %v231, %v698
        %700 = vmatpush1.msra.mxu0 %v699
        %v701 = vand.u32 %v240, 4294901760
        %v702 = vsub.f32 %v240, %v701
        %703 = vmatprep.subr.mxu0 %v702
        %v704 = vand.u32 %v239, 4294901760
        %v705 = vsub.f32 %v239, %v704
        %706 = vmatpush1.msra.mxu0 %v705
        %v707 = vand.u32 %v248, 4294901760
        %v708 = vsub.f32 %v248, %v707
        %709 = vmatprep.subr.mxu0 %v708
        %v710 = vand.u32 %v247, 4294901760
        %v711 = vsub.f32 %v247, %v710
        %712 = vmatpush1.msra.mxu0 %v711
        %v713 = vand.u32 %v256, 4294901760
        %v714 = vsub.f32 %v256, %v713
        %715 = vmatprep.subr.mxu0 %v714
        %v716 = vand.u32 %v255, 4294901760
        %v717 = vsub.f32 %v255, %v716
        %718 = vmatpush1.msra.mxu0 %v717
        %v719 = vand.u32 %v264, 4294901760
        %v720 = vsub.f32 %v264, %v719
        %721 = vmatprep.subr.mxu0 %v720
        %v722 = vand.u32 %v263, 4294901760
        %v723 = vsub.f32 %v263, %v722
        %724 = vmatpush1.msra.mxu0 %v723
        %v725 = vand.u32 %v272, 4294901760
        %v726 = vsub.f32 %v272, %v725
        %727 = vmatprep.subr.mxu0 %v726
        %v728 = vand.u32 %v271, 4294901760
        %v729 = vsub.f32 %v271, %v728
        %730 = vmatpush1.msra.mxu0 %v729
        %v731 = vand.u32 %v280, 4294901760
        %v732 = vsub.f32 %v280, %v731
        %733 = vmatprep.subr.mxu0 %v732
        %v734 = vand.u32 %v279, 4294901760
        %v735 = vsub.f32 %v279, %v734
        %736 = vmatpush1.msra.mxu0 %v735
        %v737 = vand.u32 %v288, 4294901760
        %v738 = vsub.f32 %v288, %v737
        %739 = vmatprep.subr.mxu0 %v738
        %v740 = vand.u32 %v287, 4294901760
        %v741 = vsub.f32 %v287, %v740
        %742 = vmatpush1.msra.mxu0 %v741
        %v743 = vand.u32 %v296, 4294901760
        %v744 = vsub.f32 %v296, %v743
        %745 = vmatprep.subr.mxu0 %v744
        %v746 = vand.u32 %v295, 4294901760
        %v747 = vsub.f32 %v295, %v746
        %748 = vmatpush1.msra.mxu0 %v747
        %v749 = vand.u32 %v304, 4294901760
        %v750 = vsub.f32 %v304, %v749
        %751 = vmatprep.subr.mxu0 %v750
        %v752 = vand.u32 %v303, 4294901760
        %v753 = vsub.f32 %v303, %v752
        %754 = vmatpush1.msra.mxu0 %v753
        %v755 = vand.u32 %v312, 4294901760
        %v756 = vsub.f32 %v312, %v755
        %757 = vmatprep.subr.mxu0 %v756
        %v758 = vand.u32 %v311, 4294901760
        %v759 = vsub.f32 %v311, %v758
        %760 = vmatpush1.msra.mxu0 %v759
        %v761 = vand.u32 %v320, 4294901760
        %v762 = vsub.f32 %v320, %v761
        %763 = vmatprep.subr.mxu0 %v762
        %v764 = vand.u32 %v319, 4294901760
        %v765 = vsub.f32 %v319, %v764
        %766 = vmatpush1.msra.mxu0 %v765
        %v767 = vand.u32 %v328, 4294901760
        %v768 = vsub.f32 %v328, %v767
        %769 = vmatprep.subr.mxu0 %v768
        %v770 = vand.u32 %v327, 4294901760
        %v771 = vsub.f32 %v327, %v770
        %772 = vmatpush1.msra.mxu0 %v771
        %v773 = vand.u32 %v336, 4294901760
        %v774 = vsub.f32 %v336, %v773
        %775 = vmatprep.subr.mxu0 %v774
        %v776 = vand.u32 %v335, 4294901760
        %v777 = vsub.f32 %v335, %v776
        %778 = vmatpush1.msra.mxu0 %v777
        %779 = vmatprep.subr.mxu0 0.0
        %780 = vmatpush1.msra.mxu0 0.0
        %781 = vmatprep.subr.mxu0 0.0
        %782 = vmatpush1.msra.mxu0 0.0
        %783 = vmatprep.subr.mxu0 0.0
        %784 = vmatpush1.msra.mxu0 0.0
        %785 = vmatprep.subr.mxu0 0.0
        %786 = vmatpush1.msra.mxu0 0.0
        %787 = vmatprep.subr.mxu0 0.0
        %788 = vmatpush1.msra.mxu0 0.0
        %789 = vmatprep.subr.mxu0 0.0
        %790 = vmatpush1.msra.mxu0 0.0
        %791 = vmatprep.subr.mxu0 0.0
        %792 = vmatpush1.msra.mxu0 0.0
        %793 = vmatprep.subr.mxu0 0.0
        %794 = vmatpush1.msra.mxu0 0.0
        %795 = vmatprep.subr.mxu0 0.0
        %796 = vmatpush1.msra.mxu0 0.0
        %797 = vmatprep.subr.mxu0 0.0
        %798 = vmatpush1.msra.mxu0 0.0
        %799 = vmatprep.subr.mxu0 0.0
        %800 = vmatpush1.msra.mxu0 0.0
        %801 = vmatprep.subr.mxu0 0.0
        %802 = vmatpush1.msra.mxu0 0.0
        %803 = vmatprep.subr.mxu0 0.0
        %804 = vmatpush1.msra.mxu0 0.0
        %805 = vmatprep.subr.mxu0 0.0
        %806 = vmatpush1.msra.mxu0 0.0
        %807 = vmatprep.subr.mxu0 0.0
        %808 = vmatpush1.msra.mxu0 0.0
        %809 = vmatprep.subr.mxu0 0.0
        %810 = vmatpush1.msra.mxu0 0.0
        %811 = vmatprep.mubr.f32.mxu0 0.0
        %v812 = vand.u32 %v214, 4294901760
        %v813 = vsub.f32 %v214, %v812
        %814 = vmatmul.mubr.f32.gmra.mrb[0].mxu0 %v813
        %v815 = vpop.f32.mrb[0].mxu0
        %v816 = vadd.f32 %v679, %v815
        %v817 = vpop.f32.mrb[0].mxu0
        %v818 = vadd.f32 %v681, %v817
        %819 = vdwg.mxu0
        %v820 = vand.u32 %v216, 4294901760
        %821 = vmatprep.subr.mxu0 %v820
        %v822 = vand.u32 %v215, 4294901760
        %823 = vmatpush1.msra.mxu0 %v822
        %v824 = vand.u32 %v224, 4294901760
        %825 = vmatprep.subr.mxu0 %v824
        %v826 = vand.u32 %v223, 4294901760
        %827 = vmatpush1.msra.mxu0 %v826
        %v828 = vand.u32 %v232, 4294901760
        %829 = vmatprep.subr.mxu0 %v828
        %v830 = vand.u32 %v231, 4294901760
        %831 = vmatpush1.msra.mxu0 %v830
        %v832 = vand.u32 %v240, 4294901760
        %833 = vmatprep.subr.mxu0 %v832
        %v834 = vand.u32 %v239, 4294901760
        %835 = vmatpush1.msra.mxu0 %v834
        %v836 = vand.u32 %v248, 4294901760
        %837 = vmatprep.subr.mxu0 %v836
        %v838 = vand.u32 %v247, 4294901760
        %839 = vmatpush1.msra.mxu0 %v838
        %v840 = vand.u32 %v256, 4294901760
        %841 = vmatprep.subr.mxu0 %v840
        %v842 = vand.u32 %v255, 4294901760
        %843 = vmatpush1.msra.mxu0 %v842
        %v844 = vand.u32 %v264, 4294901760
        %845 = vmatprep.subr.mxu0 %v844
        %v846 = vand.u32 %v263, 4294901760
        %847 = vmatpush1.msra.mxu0 %v846
        %v848 = vand.u32 %v272, 4294901760
        %849 = vmatprep.subr.mxu0 %v848
        %v850 = vand.u32 %v271, 4294901760
        %851 = vmatpush1.msra.mxu0 %v850
        %v852 = vand.u32 %v280, 4294901760
        %853 = vmatprep.subr.mxu0 %v852
        %v854 = vand.u32 %v279, 4294901760
        %855 = vmatpush1.msra.mxu0 %v854
        %v856 = vand.u32 %v288, 4294901760
        %857 = vmatprep.subr.mxu0 %v856
        %v858 = vand.u32 %v287, 4294901760
        %859 = vmatpush1.msra.mxu0 %v858
        %v860 = vand.u32 %v296, 4294901760
        %861 = vmatprep.subr.mxu0 %v860
        %v862 = vand.u32 %v295, 4294901760
        %863 = vmatpush1.msra.mxu0 %v862
        %v864 = vand.u32 %v304, 4294901760
        %865 = vmatprep.subr.mxu0 %v864
        %v866 = vand.u32 %v303, 4294901760
        %867 = vmatpush1.msra.mxu0 %v866
        %v868 = vand.u32 %v312, 4294901760
        %869 = vmatprep.subr.mxu0 %v868
        %v870 = vand.u32 %v311, 4294901760
        %871 = vmatpush1.msra.mxu0 %v870
        %v872 = vand.u32 %v320, 4294901760
        %873 = vmatprep.subr.mxu0 %v872
        %v874 = vand.u32 %v319, 4294901760
        %875 = vmatpush1.msra.mxu0 %v874
        %v876 = vand.u32 %v328, 4294901760
        %877 = vmatprep.subr.mxu0 %v876
        %v878 = vand.u32 %v327, 4294901760
        %879 = vmatpush1.msra.mxu0 %v878
        %v880 = vand.u32 %v336, 4294901760
        %881 = vmatprep.subr.mxu0 %v880
        %v882 = vand.u32 %v335, 4294901760
        %883 = vmatpush1.msra.mxu0 %v882
        %884 = vmatprep.subr.mxu0 0.0
        %885 = vmatpush1.msra.mxu0 0.0
        %886 = vmatprep.subr.mxu0 0.0
        %887 = vmatpush1.msra.mxu0 0.0
        %888 = vmatprep.subr.mxu0 0.0
        %889 = vmatpush1.msra.mxu0 0.0
        %890 = vmatprep.subr.mxu0 0.0
        %891 = vmatpush1.msra.mxu0 0.0
        %892 = vmatprep.subr.mxu0 0.0
        %893 = vmatpush1.msra.mxu0 0.0
        %894 = vmatprep.subr.mxu0 0.0
        %895 = vmatpush1.msra.mxu0 0.0
        %896 = vmatprep.subr.mxu0 0.0
        %897 = vmatpush1.msra.mxu0 0.0
        %898 = vmatprep.subr.mxu0 0.0
        %899 = vmatpush1.msra.mxu0 0.0
        %900 = vmatprep.subr.mxu0 0.0
        %901 = vmatpush1.msra.mxu0 0.0
        %902 = vmatprep.subr.mxu0 0.0
        %903 = vmatpush1.msra.mxu0 0.0
        %904 = vmatprep.subr.mxu0 0.0
        %905 = vmatpush1.msra.mxu0 0.0
        %906 = vmatprep.subr.mxu0 0.0
        %907 = vmatpush1.msra.mxu0 0.0
        %908 = vmatprep.subr.mxu0 0.0
        %909 = vmatpush1.msra.mxu0 0.0
        %910 = vmatprep.subr.mxu0 0.0
        %911 = vmatpush1.msra.mxu0 0.0
        %912 = vmatprep.subr.mxu0 0.0
        %913 = vmatpush1.msra.mxu0 0.0
        %914 = vmatprep.subr.mxu0 0.0
        %915 = vmatpush1.msra.mxu0 0.0
        %916 = vmatprep.mubr.f32.mxu0 0.0
        %v917 = vand.u32 %v214, 4294901760
        %v918 = vsub.f32 %v214, %v917
        %v919 = vand.u32 %v918, 4294901760
        %920 = vmatmul.mubr.f32.gmra.mrb[0].mxu0 %v919
        %v921 = vpop.f32.mrb[0].mxu0
        %v922 = vadd.f32 %v816, %v921
        %v923 = vpop.f32.mrb[0].mxu0
        %v924 = vadd.f32 %v818, %v923
        %925 = vdwg.mxu0
        %v926 = vand.u32 %v216, 4294901760
        %v927 = vsub.f32 %v216, %v926
        %v928 = vand.u32 %v927, 4294901760
        %929 = vmatprep.subr.mxu0 %v928
        %v930 = vand.u32 %v215, 4294901760
        %v931 = vsub.f32 %v215, %v930
        %v932 = vand.u32 %v931, 4294901760
        %933 = vmatpush1.msra.mxu0 %v932
        %v934 = vand.u32 %v224, 4294901760
        %v935 = vsub.f32 %v224, %v934
        %v936 = vand.u32 %v935, 4294901760
        %937 = vmatprep.subr.mxu0 %v936
        %v938 = vand.u32 %v223, 4294901760
        %v939 = vsub.f32 %v223, %v938
        %v940 = vand.u32 %v939, 4294901760
        %941 = vmatpush1.msra.mxu0 %v940
        %v942 = vand.u32 %v232, 4294901760
        %v943 = vsub.f32 %v232, %v942
        %v944 = vand.u32 %v943, 4294901760
        %945 = vmatprep.subr.mxu0 %v944
        %v946 = vand.u32 %v231, 4294901760
        %v947 = vsub.f32 %v231, %v946
        %v948 = vand.u32 %v947, 4294901760
        %949 = vmatpush1.msra.mxu0 %v948
        %v950 = vand.u32 %v240, 4294901760
        %v951 = vsub.f32 %v240, %v950
        %v952 = vand.u32 %v951, 4294901760
        %953 = vmatprep.subr.mxu0 %v952
        %v954 = vand.u32 %v239, 4294901760
        %v955 = vsub.f32 %v239, %v954
        %v956 = vand.u32 %v955, 4294901760
        %957 = vmatpush1.msra.mxu0 %v956
        %v958 = vand.u32 %v248, 4294901760
        %v959 = vsub.f32 %v248, %v958
        %v960 = vand.u32 %v959, 4294901760
        %961 = vmatprep.subr.mxu0 %v960
        %v962 = vand.u32 %v247, 4294901760
        %v963 = vsub.f32 %v247, %v962
        %v964 = vand.u32 %v963, 4294901760
        %965 = vmatpush1.msra.mxu0 %v964
        %v966 = vand.u32 %v256, 4294901760
        %v967 = vsub.f32 %v256, %v966
        %v968 = vand.u32 %v967, 4294901760
        %969 = vmatprep.subr.mxu0 %v968
        %v970 = vand.u32 %v255, 4294901760
        %v971 = vsub.f32 %v255, %v970
        %v972 = vand.u32 %v971, 4294901760
        %973 = vmatpush1.msra.mxu0 %v972
        %v974 = vand.u32 %v264, 4294901760
        %v975 = vsub.f32 %v264, %v974
        %v976 = vand.u32 %v975, 4294901760
        %977 = vmatprep.subr.mxu0 %v976
        %v978 = vand.u32 %v263, 4294901760
        %v979 = vsub.f32 %v263, %v978
        %v980 = vand.u32 %v979, 4294901760
        %981 = vmatpush1.msra.mxu0 %v980
        %v982 = vand.u32 %v272, 4294901760
        %v983 = vsub.f32 %v272, %v982
        %v984 = vand.u32 %v983, 4294901760
        %985 = vmatprep.subr.mxu0 %v984
        %v986 = vand.u32 %v271, 4294901760
        %v987 = vsub.f32 %v271, %v986
        %v988 = vand.u32 %v987, 4294901760
        %989 = vmatpush1.msra.mxu0 %v988
        %v990 = vand.u32 %v280, 4294901760
        %v991 = vsub.f32 %v280, %v990
        %v992 = vand.u32 %v991, 4294901760
        %993 = vmatprep.subr.mxu0 %v992
        %v994 = vand.u32 %v279, 4294901760
        %v995 = vsub.f32 %v279, %v994
        %v996 = vand.u32 %v995, 4294901760
        %997 = vmatpush1.msra.mxu0 %v996
        %v998 = vand.u32 %v288, 4294901760
        %v999 = vsub.f32 %v288, %v998
        %v1000 = vand.u32 %v999, 4294901760
        %1001 = vmatprep.subr.mxu0 %v1000
        %v1002 = vand.u32 %v287, 4294901760
        %v1003 = vsub.f32 %v287, %v1002
        %v1004 = vand.u32 %v1003, 4294901760
        %1005 = vmatpush1.msra.mxu0 %v1004
        %v1006 = vand.u32 %v296, 4294901760
        %v1007 = vsub.f32 %v296, %v1006
        %v1008 = vand.u32 %v1007, 4294901760
        %1009 = vmatprep.subr.mxu0 %v1008
        %v1010 = vand.u32 %v295, 4294901760
        %v1011 = vsub.f32 %v295, %v1010
        %v1012 = vand.u32 %v1011, 4294901760
        %1013 = vmatpush1.msra.mxu0 %v1012
        %v1014 = vand.u32 %v304, 4294901760
        %v1015 = vsub.f32 %v304, %v1014
        %v1016 = vand.u32 %v1015, 4294901760
        %1017 = vmatprep.subr.mxu0 %v1016
        %v1018 = vand.u32 %v303, 4294901760
        %v1019 = vsub.f32 %v303, %v1018
        %v1020 = vand.u32 %v1019, 4294901760
        %1021 = vmatpush1.msra.mxu0 %v1020
        %v1022 = vand.u32 %v312, 4294901760
        %v1023 = vsub.f32 %v312, %v1022
        %v1024 = vand.u32 %v1023, 4294901760
        %1025 = vmatprep.subr.mxu0 %v1024
        %v1026 = vand.u32 %v311, 4294901760
        %v1027 = vsub.f32 %v311, %v1026
        %v1028 = vand.u32 %v1027, 4294901760
        %1029 = vmatpush1.msra.mxu0 %v1028
        %v1030 = vand.u32 %v320, 4294901760
        %v1031 = vsub.f32 %v320, %v1030
        %v1032 = vand.u32 %v1031, 4294901760
        %1033 = vmatprep.subr.mxu0 %v1032
        %v1034 = vand.u32 %v319, 4294901760
        %v1035 = vsub.f32 %v319, %v1034
        %v1036 = vand.u32 %v1035, 4294901760
        %1037 = vmatpush1.msra.mxu0 %v1036
        %v1038 = vand.u32 %v328, 4294901760
        %v1039 = vsub.f32 %v328, %v1038
        %v1040 = vand.u32 %v1039, 4294901760
        %1041 = vmatprep.subr.mxu0 %v1040
        %v1042 = vand.u32 %v327, 4294901760
        %v1043 = vsub.f32 %v327, %v1042
        %v1044 = vand.u32 %v1043, 4294901760
        %1045 = vmatpush1.msra.mxu0 %v1044
        %v1046 = vand.u32 %v336, 4294901760
        %v1047 = vsub.f32 %v336, %v1046
        %v1048 = vand.u32 %v1047, 4294901760
        %1049 = vmatprep.subr.mxu0 %v1048
        %v1050 = vand.u32 %v335, 4294901760
        %v1051 = vsub.f32 %v335, %v1050
        %v1052 = vand.u32 %v1051, 4294901760
        %1053 = vmatpush1.msra.mxu0 %v1052
        %1054 = vmatprep.subr.mxu0 0.0
        %1055 = vmatpush1.msra.mxu0 0.0
        %1056 = vmatprep.subr.mxu0 0.0
        %1057 = vmatpush1.msra.mxu0 0.0
        %1058 = vmatprep.subr.mxu0 0.0
        %1059 = vmatpush1.msra.mxu0 0.0
        %1060 = vmatprep.subr.mxu0 0.0
        %1061 = vmatpush1.msra.mxu0 0.0
        %1062 = vmatprep.subr.mxu0 0.0
        %1063 = vmatpush1.msra.mxu0 0.0
        %1064 = vmatprep.subr.mxu0 0.0
        %1065 = vmatpush1.msra.mxu0 0.0
        %1066 = vmatprep.subr.mxu0 0.0
        %1067 = vmatpush1.msra.mxu0 0.0
        %1068 = vmatprep.subr.mxu0 0.0
        %1069 = vmatpush1.msra.mxu0 0.0
        %1070 = vmatprep.subr.mxu0 0.0
        %1071 = vmatpush1.msra.mxu0 0.0
        %1072 = vmatprep.subr.mxu0 0.0
        %1073 = vmatpush1.msra.mxu0 0.0
        %1074 = vmatprep.subr.mxu0 0.0
        %1075 = vmatpush1.msra.mxu0 0.0
        %1076 = vmatprep.subr.mxu0 0.0
        %1077 = vmatpush1.msra.mxu0 0.0
        %1078 = vmatprep.subr.mxu0 0.0
        %1079 = vmatpush1.msra.mxu0 0.0
        %1080 = vmatprep.subr.mxu0 0.0
        %1081 = vmatpush1.msra.mxu0 0.0
        %1082 = vmatprep.subr.mxu0 0.0
        %1083 = vmatpush1.msra.mxu0 0.0
        %1084 = vmatprep.subr.mxu0 0.0
        %1085 = vmatpush1.msra.mxu0 0.0
        %1086 = vmatprep.mubr.f32.mxu0 0.0
        %v1087 = vand.u32 %v214, 4294901760
        %1088 = vmatmul.mubr.f32.gmra.mrb[0].mxu0 %v1087
        %v1089 = vpop.f32.mrb[0].mxu0
        %v1090 = vadd.f32 %v922, %v1089
        %v1091 = vpop.f32.mrb[0].mxu0
        %v1092 = vadd.f32 %v924, %v1091
        %1093 = vdwg.mxu0
        %v1094 = vand.u32 %v216, 4294901760
        %1095 = vmatprep.subr.mxu0 %v1094
        %v1096 = vand.u32 %v215, 4294901760
        %1097 = vmatpush1.msra.mxu0 %v1096
        %v1098 = vand.u32 %v224, 4294901760
        %1099 = vmatprep.subr.mxu0 %v1098
        %v1100 = vand.u32 %v223, 4294901760
        %1101 = vmatpush1.msra.mxu0 %v1100
        %v1102 = vand.u32 %v232, 4294901760
        %1103 = vmatprep.subr.mxu0 %v1102
        %v1104 = vand.u32 %v231, 4294901760
        %1105 = vmatpush1.msra.mxu0 %v1104
        %v1106 = vand.u32 %v240, 4294901760
        %1107 = vmatprep.subr.mxu0 %v1106
        %v1108 = vand.u32 %v239, 4294901760
        %1109 = vmatpush1.msra.mxu0 %v1108
        %v1110 = vand.u32 %v248, 4294901760
        %1111 = vmatprep.subr.mxu0 %v1110
        %v1112 = vand.u32 %v247, 4294901760
        %1113 = vmatpush1.msra.mxu0 %v1112
        %v1114 = vand.u32 %v256, 4294901760
        %1115 = vmatprep.subr.mxu0 %v1114
        %v1116 = vand.u32 %v255, 4294901760
        %1117 = vmatpush1.msra.mxu0 %v1116
        %v1118 = vand.u32 %v264, 4294901760
        %1119 = vmatprep.subr.mxu0 %v1118
        %v1120 = vand.u32 %v263, 4294901760
        %1121 = vmatpush1.msra.mxu0 %v1120
        %v1122 = vand.u32 %v272, 4294901760
        %1123 = vmatprep.subr.mxu0 %v1122
        %v1124 = vand.u32 %v271, 4294901760
        %1125 = vmatpush1.msra.mxu0 %v1124
        %v1126 = vand.u32 %v280, 4294901760
        %1127 = vmatprep.subr.mxu0 %v1126
        %v1128 = vand.u32 %v279, 4294901760
        %1129 = vmatpush1.msra.mxu0 %v1128
        %v1130 = vand.u32 %v288, 4294901760
        %1131 = vmatprep.subr.mxu0 %v1130
        %v1132 = vand.u32 %v287, 4294901760
        %1133 = vmatpush1.msra.mxu0 %v1132
        %v1134 = vand.u32 %v296, 4294901760
        %1135 = vmatprep.subr.mxu0 %v1134
        %v1136 = vand.u32 %v295, 4294901760
        %1137 = vmatpush1.msra.mxu0 %v1136
        %v1138 = vand.u32 %v304, 4294901760
        %1139 = vmatprep.subr.mxu0 %v1138
        %v1140 = vand.u32 %v303, 4294901760
        %1141 = vmatpush1.msra.mxu0 %v1140
        %v1142 = vand.u32 %v312, 4294901760
        %1143 = vmatprep.subr.mxu0 %v1142
        %v1144 = vand.u32 %v311, 4294901760
        %1145 = vmatpush1.msra.mxu0 %v1144
        %v1146 = vand.u32 %v320, 4294901760
        %1147 = vmatprep.subr.mxu0 %v1146
        %v1148 = vand.u32 %v319, 4294901760
        %1149 = vmatpush1.msra.mxu0 %v1148
        %v1150 = vand.u32 %v328, 4294901760
        %1151 = vmatprep.subr.mxu0 %v1150
        %v1152 = vand.u32 %v327, 4294901760
        %1153 = vmatpush1.msra.mxu0 %v1152
        %v1154 = vand.u32 %v336, 4294901760
        %1155 = vmatprep.subr.mxu0 %v1154
        %v1156 = vand.u32 %v335, 4294901760
        %1157 = vmatpush1.msra.mxu0 %v1156
        %1158 = vmatprep.subr.mxu0 0.0
        %1159 = vmatpush1.msra.mxu0 0.0
        %1160 = vmatprep.subr.mxu0 0.0
        %1161 = vmatpush1.msra.mxu0 0.0
        %1162 = vmatprep.subr.mxu0 0.0
        %1163 = vmatpush1.msra.mxu0 0.0
        %1164 = vmatprep.subr.mxu0 0.0
        %1165 = vmatpush1.msra.mxu0 0.0
        %1166 = vmatprep.subr.mxu0 0.0
        %1167 = vmatpush1.msra.mxu0 0.0
        %1168 = vmatprep.subr.mxu0 0.0
        %1169 = vmatpush1.msra.mxu0 0.0
        %1170 = vmatprep.subr.mxu0 0.0
        %1171 = vmatpush1.msra.mxu0 0.0
        %1172 = vmatprep.subr.mxu0 0.0
        %1173 = vmatpush1.msra.mxu0 0.0
        %1174 = vmatprep.subr.mxu0 0.0
        %1175 = vmatpush1.msra.mxu0 0.0
        %1176 = vmatprep.subr.mxu0 0.0
        %1177 = vmatpush1.msra.mxu0 0.0
        %1178 = vmatprep.subr.mxu0 0.0
        %1179 = vmatpush1.msra.mxu0 0.0
        %1180 = vmatprep.subr.mxu0 0.0
        %1181 = vmatpush1.msra.mxu0 0.0
        %1182 = vmatprep.subr.mxu0 0.0
        %1183 = vmatpush1.msra.mxu0 0.0
        %1184 = vmatprep.subr.mxu0 0.0
        %1185 = vmatpush1.msra.mxu0 0.0
        %1186 = vmatprep.subr.mxu0 0.0
        %1187 = vmatpush1.msra.mxu0 0.0
        %1188 = vmatprep.subr.mxu0 0.0
        %1189 = vmatpush1.msra.mxu0 0.0
        %1190 = vmatprep.mubr.f32.mxu0 0.0
        %v1191 = vand.u32 %v214, 4294901760
        %1192 = vmatmul.mubr.f32.gmra.mrb[0].mxu0 %v1191
        %v1193 = vpop.f32.mrb[0].mxu0
        %v1194 = vadd.f32 %v1090, %v1193
        %v1195 = vpop.f32.mrb[0].mxu0
        %v1196 = vadd.f32 %v1092, %v1195
        %1197 = vdwg.mxu0
        %v1198 = vand.u32 %v218, 4294901760
        %1199 = vmatprep.subr.mxu0 %v1198
        %v1200 = vand.u32 %v217, 4294901760
        %1201 = vmatpush1.msra.mxu0 %v1200
        %v1202 = vand.u32 %v226, 4294901760
        %1203 = vmatprep.subr.mxu0 %v1202
        %v1204 = vand.u32 %v225, 4294901760
        %1205 = vmatpush1.msra.mxu0 %v1204
        %v1206 = vand.u32 %v234, 4294901760
        %1207 = vmatprep.subr.mxu0 %v1206
        %v1208 = vand.u32 %v233, 4294901760
        %1209 = vmatpush1.msra.mxu0 %v1208
        %v1210 = vand.u32 %v242, 4294901760
        %1211 = vmatprep.subr.mxu0 %v1210
        %v1212 = vand.u32 %v241, 4294901760
        %1213 = vmatpush1.msra.mxu0 %v1212
        %v1214 = vand.u32 %v250, 4294901760
        %1215 = vmatprep.subr.mxu0 %v1214
        %v1216 = vand.u32 %v249, 4294901760
        %1217 = vmatpush1.msra.mxu0 %v1216
        %v1218 = vand.u32 %v258, 4294901760
        %1219 = vmatprep.subr.mxu0 %v1218
        %v1220 = vand.u32 %v257, 4294901760
        %1221 = vmatpush1.msra.mxu0 %v1220
        %v1222 = vand.u32 %v266, 4294901760
        %1223 = vmatprep.subr.mxu0 %v1222
        %v1224 = vand.u32 %v265, 4294901760
        %1225 = vmatpush1.msra.mxu0 %v1224
        %v1226 = vand.u32 %v274, 4294901760
        %1227 = vmatprep.subr.mxu0 %v1226
        %v1228 = vand.u32 %v273, 4294901760
        %1229 = vmatpush1.msra.mxu0 %v1228
        %v1230 = vand.u32 %v282, 4294901760
        %1231 = vmatprep.subr.mxu0 %v1230
        %v1232 = vand.u32 %v281, 4294901760
        %1233 = vmatpush1.msra.mxu0 %v1232
        %v1234 = vand.u32 %v290, 4294901760
        %1235 = vmatprep.subr.mxu0 %v1234
        %v1236 = vand.u32 %v289, 4294901760
        %1237 = vmatpush1.msra.mxu0 %v1236
        %v1238 = vand.u32 %v298, 4294901760
        %1239 = vmatprep.subr.mxu0 %v1238
        %v1240 = vand.u32 %v297, 4294901760
        %1241 = vmatpush1.msra.mxu0 %v1240
        %v1242 = vand.u32 %v306, 4294901760
        %1243 = vmatprep.subr.mxu0 %v1242
        %v1244 = vand.u32 %v305, 4294901760
        %1245 = vmatpush1.msra.mxu0 %v1244
        %v1246 = vand.u32 %v314, 4294901760
        %1247 = vmatprep.subr.mxu0 %v1246
        %v1248 = vand.u32 %v313, 4294901760
        %1249 = vmatpush1.msra.mxu0 %v1248
        %v1250 = vand.u32 %v322, 4294901760
        %1251 = vmatprep.subr.mxu0 %v1250
        %v1252 = vand.u32 %v321, 4294901760
        %1253 = vmatpush1.msra.mxu0 %v1252
        %v1254 = vand.u32 %v330, 4294901760
        %1255 = vmatprep.subr.mxu0 %v1254
        %v1256 = vand.u32 %v329, 4294901760
        %1257 = vmatpush1.msra.mxu0 %v1256
        %v1258 = vand.u32 %v338, 4294901760
        %1259 = vmatprep.subr.mxu0 %v1258
        %v1260 = vand.u32 %v337, 4294901760
        %1261 = vmatpush1.msra.mxu0 %v1260
        %1262 = vmatprep.subr.mxu0 0.0
        %1263 = vmatpush1.msra.mxu0 0.0
        %1264 = vmatprep.subr.mxu0 0.0
        %1265 = vmatpush1.msra.mxu0 0.0
        %1266 = vmatprep.subr.mxu0 0.0
        %1267 = vmatpush1.msra.mxu0 0.0
        %1268 = vmatprep.subr.mxu0 0.0
        %1269 = vmatpush1.msra.mxu0 0.0
        %1270 = vmatprep.subr.mxu0 0.0
        %1271 = vmatpush1.msra.mxu0 0.0
        %1272 = vmatprep.subr.mxu0 0.0
        %1273 = vmatpush1.msra.mxu0 0.0
        %1274 = vmatprep.subr.mxu0 0.0
        %1275 = vmatpush1.msra.mxu0 0.0
        %1276 = vmatprep.subr.mxu0 0.0
        %1277 = vmatpush1.msra.mxu0 0.0
        %1278 = vmatprep.subr.mxu0 0.0
        %1279 = vmatpush1.msra.mxu0 0.0
        %1280 = vmatprep.subr.mxu0 0.0
        %1281 = vmatpush1.msra.mxu0 0.0
        %1282 = vmatprep.subr.mxu0 0.0
        %1283 = vmatpush1.msra.mxu0 0.0
        %1284 = vmatprep.subr.mxu0 0.0
        %1285 = vmatpush1.msra.mxu0 0.0
        %1286 = vmatprep.subr.mxu0 0.0
        %1287 = vmatpush1.msra.mxu0 0.0
        %1288 = vmatprep.subr.mxu0 0.0
        %1289 = vmatpush1.msra.mxu0 0.0
        %1290 = vmatprep.subr.mxu0 0.0
        %1291 = vmatpush1.msra.mxu0 0.0
        %1292 = vmatprep.subr.mxu0 0.0
        %1293 = vmatpush1.msra.mxu0 0.0
        %1294 = vmatprep.mubr.f32.mxu0 0.0
        %v1295 = vand.u32 %v214, 4294901760
        %v1296 = vsub.f32 %v214, %v1295
        %v1297 = vand.u32 %v1296, 4294901760
        %v1298 = vsub.f32 %v1296, %v1297
        %v1299 = vand.u32 %v1298, 4294901760
        %1300 = vmatmul.mubr.f32.gmra.mrb[0].mxu0 %v1299
        %v1301 = vpop.f32.mrb[0].mxu0
        %v1302 = vadd.f32 0.0, %v1301
        %v1303 = vpop.f32.mrb[0].mxu0
        %v1304 = vadd.f32 0.0, %v1303
        %1305 = vdwg.mxu0
        %v1306 = vand.u32 %v218, 4294901760
        %v1307 = vsub.f32 %v218, %v1306
        %v1308 = vand.u32 %v1307, 4294901760
        %v1309 = vsub.f32 %v1307, %v1308
        %v1310 = vand.u32 %v1309, 4294901760
        %1311 = vmatprep.subr.mxu0 %v1310
        %v1312 = vand.u32 %v217, 4294901760
        %v1313 = vsub.f32 %v217, %v1312
        %v1314 = vand.u32 %v1313, 4294901760
        %v1315 = vsub.f32 %v1313, %v1314
        %v1316 = vand.u32 %v1315, 4294901760
        %1317 = vmatpush1.msra.mxu0 %v1316
        %v1318 = vand.u32 %v226, 4294901760
        %v1319 = vsub.f32 %v226, %v1318
        %v1320 = vand.u32 %v1319, 4294901760
        %v1321 = vsub.f32 %v1319, %v1320
        %v1322 = vand.u32 %v1321, 4294901760
        %1323 = vmatprep.subr.mxu0 %v1322
        %v1324 = vand.u32 %v225, 4294901760
        %v1325 = vsub.f32 %v225, %v1324
        %v1326 = vand.u32 %v1325, 4294901760
        %v1327 = vsub.f32 %v1325, %v1326
        %v1328 = vand.u32 %v1327, 4294901760
        %1329 = vmatpush1.msra.mxu0 %v1328
        %v1330 = vand.u32 %v234, 4294901760
        %v1331 = vsub.f32 %v234, %v1330
        %v1332 = vand.u32 %v1331, 4294901760
        %v1333 = vsub.f32 %v1331, %v1332
        %v1334 = vand.u32 %v1333, 4294901760
        %1335 = vmatprep.subr.mxu0 %v1334
        %v1336 = vand.u32 %v233, 4294901760
        %v1337 = vsub.f32 %v233, %v1336
        %v1338 = vand.u32 %v1337, 4294901760
        %v1339 = vsub.f32 %v1337, %v1338
        %v1340 = vand.u32 %v1339, 4294901760
        %1341 = vmatpush1.msra.mxu0 %v1340
        %v1342 = vand.u32 %v242, 4294901760
        %v1343 = vsub.f32 %v242, %v1342
        %v1344 = vand.u32 %v1343, 4294901760
        %v1345 = vsub.f32 %v1343, %v1344
        %v1346 = vand.u32 %v1345, 4294901760
        %1347 = vmatprep.subr.mxu0 %v1346
        %v1348 = vand.u32 %v241, 4294901760
        %v1349 = vsub.f32 %v241, %v1348
        %v1350 = vand.u32 %v1349, 4294901760
        %v1351 = vsub.f32 %v1349, %v1350
        %v1352 = vand.u32 %v1351, 4294901760
        %1353 = vmatpush1.msra.mxu0 %v1352
        %v1354 = vand.u32 %v250, 4294901760
        %v1355 = vsub.f32 %v250, %v1354
        %v1356 = vand.u32 %v1355, 4294901760
        %v1357 = vsub.f32 %v1355, %v1356
        %v1358 = vand.u32 %v1357, 4294901760
        %1359 = vmatprep.subr.mxu0 %v1358
        %v1360 = vand.u32 %v249, 4294901760
        %v1361 = vsub.f32 %v249, %v1360
        %v1362 = vand.u32 %v1361, 4294901760
        %v1363 = vsub.f32 %v1361, %v1362
        %v1364 = vand.u32 %v1363, 4294901760
        %1365 = vmatpush1.msra.mxu0 %v1364
        %v1366 = vand.u32 %v258, 4294901760
        %v1367 = vsub.f32 %v258, %v1366
        %v1368 = vand.u32 %v1367, 4294901760
        %v1369 = vsub.f32 %v1367, %v1368
        %v1370 = vand.u32 %v1369, 4294901760
        %1371 = vmatprep.subr.mxu0 %v1370
        %v1372 = vand.u32 %v257, 4294901760
        %v1373 = vsub.f32 %v257, %v1372
        %v1374 = vand.u32 %v1373, 4294901760
        %v1375 = vsub.f32 %v1373, %v1374
        %v1376 = vand.u32 %v1375, 4294901760
        %1377 = vmatpush1.msra.mxu0 %v1376
        %v1378 = vand.u32 %v266, 4294901760
        %v1379 = vsub.f32 %v266, %v1378
        %v1380 = vand.u32 %v1379, 4294901760
        %v1381 = vsub.f32 %v1379, %v1380
        %v1382 = vand.u32 %v1381, 4294901760
        %1383 = vmatprep.subr.mxu0 %v1382
        %v1384 = vand.u32 %v265, 4294901760
        %v1385 = vsub.f32 %v265, %v1384
        %v1386 = vand.u32 %v1385, 4294901760
        %v1387 = vsub.f32 %v1385, %v1386
        %v1388 = vand.u32 %v1387, 4294901760
        %1389 = vmatpush1.msra.mxu0 %v1388
        %v1390 = vand.u32 %v274, 4294901760
        %v1391 = vsub.f32 %v274, %v1390
        %v1392 = vand.u32 %v1391, 4294901760
        %v1393 = vsub.f32 %v1391, %v1392
        %v1394 = vand.u32 %v1393, 4294901760
        %1395 = vmatprep.subr.mxu0 %v1394
        %v1396 = vand.u32 %v273, 4294901760
        %v1397 = vsub.f32 %v273, %v1396
        %v1398 = vand.u32 %v1397, 4294901760
        %v1399 = vsub.f32 %v1397, %v1398
        %v1400 = vand.u32 %v1399, 4294901760
        %1401 = vmatpush1.msra.mxu0 %v1400
        %v1402 = vand.u32 %v282, 4294901760
        %v1403 = vsub.f32 %v282, %v1402
        %v1404 = vand.u32 %v1403, 4294901760
        %v1405 = vsub.f32 %v1403, %v1404
        %v1406 = vand.u32 %v1405, 4294901760
        %1407 = vmatprep.subr.mxu0 %v1406
        %v1408 = vand.u32 %v281, 4294901760
        %v1409 = vsub.f32 %v281, %v1408
        %v1410 = vand.u32 %v1409, 4294901760
        %v1411 = vsub.f32 %v1409, %v1410
        %v1412 = vand.u32 %v1411, 4294901760
        %1413 = vmatpush1.msra.mxu0 %v1412
        %v1414 = vand.u32 %v290, 4294901760
        %v1415 = vsub.f32 %v290, %v1414
        %v1416 = vand.u32 %v1415, 4294901760
        %v1417 = vsub.f32 %v1415, %v1416
        %v1418 = vand.u32 %v1417, 4294901760
        %1419 = vmatprep.subr.mxu0 %v1418
        %v1420 = vand.u32 %v289, 4294901760
        %v1421 = vsub.f32 %v289, %v1420
        %v1422 = vand.u32 %v1421, 4294901760
        %v1423 = vsub.f32 %v1421, %v1422
        %v1424 = vand.u32 %v1423, 4294901760
        %1425 = vmatpush1.msra.mxu0 %v1424
        %v1426 = vand.u32 %v298, 4294901760
        %v1427 = vsub.f32 %v298, %v1426
        %v1428 = vand.u32 %v1427, 4294901760
        %v1429 = vsub.f32 %v1427, %v1428
        %v1430 = vand.u32 %v1429, 4294901760
        %1431 = vmatprep.subr.mxu0 %v1430
        %v1432 = vand.u32 %v297, 4294901760
        %v1433 = vsub.f32 %v297, %v1432
        %v1434 = vand.u32 %v1433, 4294901760
        %v1435 = vsub.f32 %v1433, %v1434
        %v1436 = vand.u32 %v1435, 4294901760
        %1437 = vmatpush1.msra.mxu0 %v1436
        %v1438 = vand.u32 %v306, 4294901760
        %v1439 = vsub.f32 %v306, %v1438
        %v1440 = vand.u32 %v1439, 4294901760
        %v1441 = vsub.f32 %v1439, %v1440
        %v1442 = vand.u32 %v1441, 4294901760
        %1443 = vmatprep.subr.mxu0 %v1442
        %v1444 = vand.u32 %v305, 4294901760
        %v1445 = vsub.f32 %v305, %v1444
        %v1446 = vand.u32 %v1445, 4294901760
        %v1447 = vsub.f32 %v1445, %v1446
        %v1448 = vand.u32 %v1447, 4294901760
        %1449 = vmatpush1.msra.mxu0 %v1448
        %v1450 = vand.u32 %v314, 4294901760
        %v1451 = vsub.f32 %v314, %v1450
        %v1452 = vand.u32 %v1451, 4294901760
        %v1453 = vsub.f32 %v1451, %v1452
        %v1454 = vand.u32 %v1453, 4294901760
        %1455 = vmatprep.subr.mxu0 %v1454
        %v1456 = vand.u32 %v313, 4294901760
        %v1457 = vsub.f32 %v313, %v1456
        %v1458 = vand.u32 %v1457, 4294901760
        %v1459 = vsub.f32 %v1457, %v1458
        %v1460 = vand.u32 %v1459, 4294901760
        %1461 = vmatpush1.msra.mxu0 %v1460
        %v1462 = vand.u32 %v322, 4294901760
        %v1463 = vsub.f32 %v322, %v1462
        %v1464 = vand.u32 %v1463, 4294901760
        %v1465 = vsub.f32 %v1463, %v1464
        %v1466 = vand.u32 %v1465, 4294901760
        %1467 = vmatprep.subr.mxu0 %v1466
        %v1468 = vand.u32 %v321, 4294901760
        %v1469 = vsub.f32 %v321, %v1468
        %v1470 = vand.u32 %v1469, 4294901760
        %v1471 = vsub.f32 %v1469, %v1470
        %v1472 = vand.u32 %v1471, 4294901760
        %1473 = vmatpush1.msra.mxu0 %v1472
        %v1474 = vand.u32 %v330, 4294901760
        %v1475 = vsub.f32 %v330, %v1474
        %v1476 = vand.u32 %v1475, 4294901760
        %v1477 = vsub.f32 %v1475, %v1476
        %v1478 = vand.u32 %v1477, 4294901760
        %1479 = vmatprep.subr.mxu0 %v1478
        %v1480 = vand.u32 %v329, 4294901760
        %v1481 = vsub.f32 %v329, %v1480
        %v1482 = vand.u32 %v1481, 4294901760
        %v1483 = vsub.f32 %v1481, %v1482
        %v1484 = vand.u32 %v1483, 4294901760
        %1485 = vmatpush1.msra.mxu0 %v1484
        %v1486 = vand.u32 %v338, 4294901760
        %v1487 = vsub.f32 %v338, %v1486
        %v1488 = vand.u32 %v1487, 4294901760
        %v1489 = vsub.f32 %v1487, %v1488
        %v1490 = vand.u32 %v1489, 4294901760
        %1491 = vmatprep.subr.mxu0 %v1490
        %v1492 = vand.u32 %v337, 4294901760
        %v1493 = vsub.f32 %v337, %v1492
        %v1494 = vand.u32 %v1493, 4294901760
        %v1495 = vsub.f32 %v1493, %v1494
        %v1496 = vand.u32 %v1495, 4294901760
        %1497 = vmatpush1.msra.mxu0 %v1496
        %1498 = vmatprep.subr.mxu0 0.0
        %1499 = vmatpush1.msra.mxu0 0.0
        %1500 = vmatprep.subr.mxu0 0.0
        %1501 = vmatpush1.msra.mxu0 0.0
        %1502 = vmatprep.subr.mxu0 0.0
        %1503 = vmatpush1.msra.mxu0 0.0
        %1504 = vmatprep.subr.mxu0 0.0
        %1505 = vmatpush1.msra.mxu0 0.0
        %1506 = vmatprep.subr.mxu0 0.0
        %1507 = vmatpush1.msra.mxu0 0.0
        %1508 = vmatprep.subr.mxu0 0.0
        %1509 = vmatpush1.msra.mxu0 0.0
        %1510 = vmatprep.subr.mxu0 0.0
        %1511 = vmatpush1.msra.mxu0 0.0
        %1512 = vmatprep.subr.mxu0 0.0
        %1513 = vmatpush1.msra.mxu0 0.0
        %1514 = vmatprep.subr.mxu0 0.0
        %1515 = vmatpush1.msra.mxu0 0.0
        %1516 = vmatprep.subr.mxu0 0.0
        %1517 = vmatpush1.msra.mxu0 0.0
        %1518 = vmatprep.subr.mxu0 0.0
        %1519 = vmatpush1.msra.mxu0 0.0
        %1520 = vmatprep.subr.mxu0 0.0
        %1521 = vmatpush1.msra.mxu0 0.0
        %1522 = vmatprep.subr.mxu0 0.0
        %1523 = vmatpush1.msra.mxu0 0.0
        %1524 = vmatprep.subr.mxu0 0.0
        %1525 = vmatpush1.msra.mxu0 0.0
        %1526 = vmatprep.subr.mxu0 0.0
        %1527 = vmatpush1.msra.mxu0 0.0
        %1528 = vmatprep.subr.mxu0 0.0
        %1529 = vmatpush1.msra.mxu0 0.0
        %1530 = vmatprep.mubr.f32.mxu0 0.0
        %v1531 = vand.u32 %v214, 4294901760
        %1532 = vmatmul.mubr.f32.gmra.mrb[0].mxu0 %v1531
        %v1533 = vpop.f32.mrb[0].mxu0
        %v1534 = vadd.f32 %v1302, %v1533
        %v1535 = vpop.f32.mrb[0].mxu0
        %v1536 = vadd.f32 %v1304, %v1535
        %1537 = vdwg.mxu0
        %v1538 = vand.u32 %v218, 4294901760
        %v1539 = vsub.f32 %v218, %v1538
        %1540 = vmatprep.subr.mxu0 %v1539
        %v1541 = vand.u32 %v217, 4294901760
        %v1542 = vsub.f32 %v217, %v1541
        %1543 = vmatpush1.msra.mxu0 %v1542
        %v1544 = vand.u32 %v226, 4294901760
        %v1545 = vsub.f32 %v226, %v1544
        %1546 = vmatprep.subr.mxu0 %v1545
        %v1547 = vand.u32 %v225, 4294901760
        %v1548 = vsub.f32 %v225, %v1547
        %1549 = vmatpush1.msra.mxu0 %v1548
        %v1550 = vand.u32 %v234, 4294901760
        %v1551 = vsub.f32 %v234, %v1550
        %1552 = vmatprep.subr.mxu0 %v1551
        %v1553 = vand.u32 %v233, 4294901760
        %v1554 = vsub.f32 %v233, %v1553
        %1555 = vmatpush1.msra.mxu0 %v1554
        %v1556 = vand.u32 %v242, 4294901760
        %v1557 = vsub.f32 %v242, %v1556
        %1558 = vmatprep.subr.mxu0 %v1557
        %v1559 = vand.u32 %v241, 4294901760
        %v1560 = vsub.f32 %v241, %v1559
        %1561 = vmatpush1.msra.mxu0 %v1560
        %v1562 = vand.u32 %v250, 4294901760
        %v1563 = vsub.f32 %v250, %v1562
        %1564 = vmatprep.subr.mxu0 %v1563
        %v1565 = vand.u32 %v249, 4294901760
        %v1566 = vsub.f32 %v249, %v1565
        %1567 = vmatpush1.msra.mxu0 %v1566
        %v1568 = vand.u32 %v258, 4294901760
        %v1569 = vsub.f32 %v258, %v1568
        %1570 = vmatprep.subr.mxu0 %v1569
        %v1571 = vand.u32 %v257, 4294901760
        %v1572 = vsub.f32 %v257, %v1571
        %1573 = vmatpush1.msra.mxu0 %v1572
        %v1574 = vand.u32 %v266, 4294901760
        %v1575 = vsub.f32 %v266, %v1574
        %1576 = vmatprep.subr.mxu0 %v1575
        %v1577 = vand.u32 %v265, 4294901760
        %v1578 = vsub.f32 %v265, %v1577
        %1579 = vmatpush1.msra.mxu0 %v1578
        %v1580 = vand.u32 %v274, 4294901760
        %v1581 = vsub.f32 %v274, %v1580
        %1582 = vmatprep.subr.mxu0 %v1581
        %v1583 = vand.u32 %v273, 4294901760
        %v1584 = vsub.f32 %v273, %v1583
        %1585 = vmatpush1.msra.mxu0 %v1584
        %v1586 = vand.u32 %v282, 4294901760
        %v1587 = vsub.f32 %v282, %v1586
        %1588 = vmatprep.subr.mxu0 %v1587
        %v1589 = vand.u32 %v281, 4294901760
        %v1590 = vsub.f32 %v281, %v1589
        %1591 = vmatpush1.msra.mxu0 %v1590
        %v1592 = vand.u32 %v290, 4294901760
        %v1593 = vsub.f32 %v290, %v1592
        %1594 = vmatprep.subr.mxu0 %v1593
        %v1595 = vand.u32 %v289, 4294901760
        %v1596 = vsub.f32 %v289, %v1595
        %1597 = vmatpush1.msra.mxu0 %v1596
        %v1598 = vand.u32 %v298, 4294901760
        %v1599 = vsub.f32 %v298, %v1598
        %1600 = vmatprep.subr.mxu0 %v1599
        %v1601 = vand.u32 %v297, 4294901760
        %v1602 = vsub.f32 %v297, %v1601
        %1603 = vmatpush1.msra.mxu0 %v1602
        %v1604 = vand.u32 %v306, 4294901760
        %v1605 = vsub.f32 %v306, %v1604
        %1606 = vmatprep.subr.mxu0 %v1605
        %v1607 = vand.u32 %v305, 4294901760
        %v1608 = vsub.f32 %v305, %v1607
        %1609 = vmatpush1.msra.mxu0 %v1608
        %v1610 = vand.u32 %v314, 4294901760
        %v1611 = vsub.f32 %v314, %v1610
        %1612 = vmatprep.subr.mxu0 %v1611
        %v1613 = vand.u32 %v313, 4294901760
        %v1614 = vsub.f32 %v313, %v1613
        %1615 = vmatpush1.msra.mxu0 %v1614
        %v1616 = vand.u32 %v322, 4294901760
        %v1617 = vsub.f32 %v322, %v1616
        %1618 = vmatprep.subr.mxu0 %v1617
        %v1619 = vand.u32 %v321, 4294901760
        %v1620 = vsub.f32 %v321, %v1619
        %1621 = vmatpush1.msra.mxu0 %v1620
        %v1622 = vand.u32 %v330, 4294901760
        %v1623 = vsub.f32 %v330, %v1622
        %1624 = vmatprep.subr.mxu0 %v1623
        %v1625 = vand.u32 %v329, 4294901760
        %v1626 = vsub.f32 %v329, %v1625
        %1627 = vmatpush1.msra.mxu0 %v1626
        %v1628 = vand.u32 %v338, 4294901760
        %v1629 = vsub.f32 %v338, %v1628
        %1630 = vmatprep.subr.mxu0 %v1629
        %v1631 = vand.u32 %v337, 4294901760
        %v1632 = vsub.f32 %v337, %v1631
        %1633 = vmatpush1.msra.mxu0 %v1632
        %1634 = vmatprep.subr.mxu0 0.0
        %1635 = vmatpush1.msra.mxu0 0.0
        %1636 = vmatprep.subr.mxu0 0.0
        %1637 = vmatpush1.msra.mxu0 0.0
        %1638 = vmatprep.subr.mxu0 0.0
        %1639 = vmatpush1.msra.mxu0 0.0
        %1640 = vmatprep.subr.mxu0 0.0
        %1641 = vmatpush1.msra.mxu0 0.0
        %1642 = vmatprep.subr.mxu0 0.0
        %1643 = vmatpush1.msra.mxu0 0.0
        %1644 = vmatprep.subr.mxu0 0.0
        %1645 = vmatpush1.msra.mxu0 0.0
        %1646 = vmatprep.subr.mxu0 0.0
        %1647 = vmatpush1.msra.mxu0 0.0
        %1648 = vmatprep.subr.mxu0 0.0
        %1649 = vmatpush1.msra.mxu0 0.0
        %1650 = vmatprep.subr.mxu0 0.0
        %1651 = vmatpush1.msra.mxu0 0.0
        %1652 = vmatprep.subr.mxu0 0.0
        %1653 = vmatpush1.msra.mxu0 0.0
        %1654 = vmatprep.subr.mxu0 0.0
        %1655 = vmatpush1.msra.mxu0 0.0
        %1656 = vmatprep.subr.mxu0 0.0
        %1657 = vmatpush1.msra.mxu0 0.0
        %1658 = vmatprep.subr.mxu0 0.0
        %1659 = vmatpush1.msra.mxu0 0.0
        %1660 = vmatprep.subr.mxu0 0.0
        %1661 = vmatpush1.msra.mxu0 0.0
        %1662 = vmatprep.subr.mxu0 0.0
        %1663 = vmatpush1.msra.mxu0 0.0
        %1664 = vmatprep.subr.mxu0 0.0
        %1665 = vmatpush1.msra.mxu0 0.0
        %1666 = vmatprep.mubr.f32.mxu0 0.0
        %v1667 = vand.u32 %v214, 4294901760
        %v1668 = vsub.f32 %v214, %v1667
        %1669 = vmatmul.mubr.f32.gmra.mrb[0].mxu0 %v1668
        %v1670 = vpop.f32.mrb[0].mxu0
        %v1671 = vadd.f32 %v1534, %v1670
        %v1672 = vpop.f32.mrb[0].mxu0
        %v1673 = vadd.f32 %v1536, %v1672
        %1674 = vdwg.mxu0
        %v1675 = vand.u32 %v218, 4294901760
        %1676 = vmatprep.subr.mxu0 %v1675
        %v1677 = vand.u32 %v217, 4294901760
        %1678 = vmatpush1.msra.mxu0 %v1677
        %v1679 = vand.u32 %v226, 4294901760
        %1680 = vmatprep.subr.mxu0 %v1679
        %v1681 = vand.u32 %v225, 4294901760
        %1682 = vmatpush1.msra.mxu0 %v1681
        %v1683 = vand.u32 %v234, 4294901760
        %1684 = vmatprep.subr.mxu0 %v1683
        %v1685 = vand.u32 %v233, 4294901760
        %1686 = vmatpush1.msra.mxu0 %v1685
        %v1687 = vand.u32 %v242, 4294901760
        %1688 = vmatprep.subr.mxu0 %v1687
        %v1689 = vand.u32 %v241, 4294901760
        %1690 = vmatpush1.msra.mxu0 %v1689
        %v1691 = vand.u32 %v250, 4294901760
        %1692 = vmatprep.subr.mxu0 %v1691
        %v1693 = vand.u32 %v249, 4294901760
        %1694 = vmatpush1.msra.mxu0 %v1693
        %v1695 = vand.u32 %v258, 4294901760
        %1696 = vmatprep.subr.mxu0 %v1695
        %v1697 = vand.u32 %v257, 4294901760
        %1698 = vmatpush1.msra.mxu0 %v1697
        %v1699 = vand.u32 %v266, 4294901760
        %1700 = vmatprep.subr.mxu0 %v1699
        %v1701 = vand.u32 %v265, 4294901760
        %1702 = vmatpush1.msra.mxu0 %v1701
        %v1703 = vand.u32 %v274, 4294901760
        %1704 = vmatprep.subr.mxu0 %v1703
        %v1705 = vand.u32 %v273, 4294901760
        %1706 = vmatpush1.msra.mxu0 %v1705
        %v1707 = vand.u32 %v282, 4294901760
        %1708 = vmatprep.subr.mxu0 %v1707
        %v1709 = vand.u32 %v281, 4294901760
        %1710 = vmatpush1.msra.mxu0 %v1709
        %v1711 = vand.u32 %v290, 4294901760
        %1712 = vmatprep.subr.mxu0 %v1711
        %v1713 = vand.u32 %v289, 4294901760
        %1714 = vmatpush1.msra.mxu0 %v1713
        %v1715 = vand.u32 %v298, 4294901760
        %1716 = vmatprep.subr.mxu0 %v1715
        %v1717 = vand.u32 %v297, 4294901760
        %1718 = vmatpush1.msra.mxu0 %v1717
        %v1719 = vand.u32 %v306, 4294901760
        %1720 = vmatprep.subr.mxu0 %v1719
        %v1721 = vand.u32 %v305, 4294901760
        %1722 = vmatpush1.msra.mxu0 %v1721
        %v1723 = vand.u32 %v314, 4294901760
        %1724 = vmatprep.subr.mxu0 %v1723
        %v1725 = vand.u32 %v313, 4294901760
        %1726 = vmatpush1.msra.mxu0 %v1725
        %v1727 = vand.u32 %v322, 4294901760
        %1728 = vmatprep.subr.mxu0 %v1727
        %v1729 = vand.u32 %v321, 4294901760
        %1730 = vmatpush1.msra.mxu0 %v1729
        %v1731 = vand.u32 %v330, 4294901760
        %1732 = vmatprep.subr.mxu0 %v1731
        %v1733 = vand.u32 %v329, 4294901760
        %1734 = vmatpush1.msra.mxu0 %v1733
        %v1735 = vand.u32 %v338, 4294901760
        %1736 = vmatprep.subr.mxu0 %v1735
        %v1737 = vand.u32 %v337, 4294901760
        %1738 = vmatpush1.msra.mxu0 %v1737
        %1739 = vmatprep.subr.mxu0 0.0
        %1740 = vmatpush1.msra.mxu0 0.0
        %1741 = vmatprep.subr.mxu0 0.0
        %1742 = vmatpush1.msra.mxu0 0.0
        %1743 = vmatprep.subr.mxu0 0.0
        %1744 = vmatpush1.msra.mxu0 0.0
        %1745 = vmatprep.subr.mxu0 0.0
        %1746 = vmatpush1.msra.mxu0 0.0
        %1747 = vmatprep.subr.mxu0 0.0
        %1748 = vmatpush1.msra.mxu0 0.0
        %1749 = vmatprep.subr.mxu0 0.0
        %1750 = vmatpush1.msra.mxu0 0.0
        %1751 = vmatprep.subr.mxu0 0.0
        %1752 = vmatpush1.msra.mxu0 0.0
        %1753 = vmatprep.subr.mxu0 0.0
        %1754 = vmatpush1.msra.mxu0 0.0
        %1755 = vmatprep.subr.mxu0 0.0
        %1756 = vmatpush1.msra.mxu0 0.0
        %1757 = vmatprep.subr.mxu0 0.0
        %1758 = vmatpush1.msra.mxu0 0.0
        %1759 = vmatprep.subr.mxu0 0.0
        %1760 = vmatpush1.msra.mxu0 0.0
        %1761 = vmatprep.subr.mxu0 0.0
        %1762 = vmatpush1.msra.mxu0 0.0
        %1763 = vmatprep.subr.mxu0 0.0
        %1764 = vmatpush1.msra.mxu0 0.0
        %1765 = vmatprep.subr.mxu0 0.0
        %1766 = vmatpush1.msra.mxu0 0.0
        %1767 = vmatprep.subr.mxu0 0.0
        %1768 = vmatpush1.msra.mxu0 0.0
        %1769 = vmatprep.subr.mxu0 0.0
        %1770 = vmatpush1.msra.mxu0 0.0
        %1771 = vmatprep.mubr.f32.mxu0 0.0
        %v1772 = vand.u32 %v214, 4294901760
        %v1773 = vsub.f32 %v214, %v1772
        %v1774 = vand.u32 %v1773, 4294901760
        %1775 = vmatmul.mubr.f32.gmra.mrb[0].mxu0 %v1774
        %v1776 = vpop.f32.mrb[0].mxu0
        %v1777 = vadd.f32 %v1671, %v1776
        %v1778 = vpop.f32.mrb[0].mxu0
        %v1779 = vadd.f32 %v1673, %v1778
        %1780 = vdwg.mxu0
        %v1781 = vand.u32 %v218, 4294901760
        %v1782 = vsub.f32 %v218, %v1781
        %v1783 = vand.u32 %v1782, 4294901760
        %1784 = vmatprep.subr.mxu0 %v1783
        %v1785 = vand.u32 %v217, 4294901760
        %v1786 = vsub.f32 %v217, %v1785
        %v1787 = vand.u32 %v1786, 4294901760
        %1788 = vmatpush1.msra.mxu0 %v1787
        %v1789 = vand.u32 %v226, 4294901760
        %v1790 = vsub.f32 %v226, %v1789
        %v1791 = vand.u32 %v1790, 4294901760
        %1792 = vmatprep.subr.mxu0 %v1791
        %v1793 = vand.u32 %v225, 4294901760
        %v1794 = vsub.f32 %v225, %v1793
        %v1795 = vand.u32 %v1794, 4294901760
        %1796 = vmatpush1.msra.mxu0 %v1795
        %v1797 = vand.u32 %v234, 4294901760
        %v1798 = vsub.f32 %v234, %v1797
        %v1799 = vand.u32 %v1798, 4294901760
        %1800 = vmatprep.subr.mxu0 %v1799
        %v1801 = vand.u32 %v233, 4294901760
        %v1802 = vsub.f32 %v233, %v1801
        %v1803 = vand.u32 %v1802, 4294901760
        %1804 = vmatpush1.msra.mxu0 %v1803
        %v1805 = vand.u32 %v242, 4294901760
        %v1806 = vsub.f32 %v242, %v1805
        %v1807 = vand.u32 %v1806, 4294901760
        %1808 = vmatprep.subr.mxu0 %v1807
        %v1809 = vand.u32 %v241, 4294901760
        %v1810 = vsub.f32 %v241, %v1809
        %v1811 = vand.u32 %v1810, 4294901760
        %1812 = vmatpush1.msra.mxu0 %v1811
        %v1813 = vand.u32 %v250, 4294901760
        %v1814 = vsub.f32 %v250, %v1813
        %v1815 = vand.u32 %v1814, 4294901760
        %1816 = vmatprep.subr.mxu0 %v1815
        %v1817 = vand.u32 %v249, 4294901760
        %v1818 = vsub.f32 %v249, %v1817
        %v1819 = vand.u32 %v1818, 4294901760
        %1820 = vmatpush1.msra.mxu0 %v1819
        %v1821 = vand.u32 %v258, 4294901760
        %v1822 = vsub.f32 %v258, %v1821
        %v1823 = vand.u32 %v1822, 4294901760
        %1824 = vmatprep.subr.mxu0 %v1823
        %v1825 = vand.u32 %v257, 4294901760
        %v1826 = vsub.f32 %v257, %v1825
        %v1827 = vand.u32 %v1826, 4294901760
        %1828 = vmatpush1.msra.mxu0 %v1827
        %v1829 = vand.u32 %v266, 4294901760
        %v1830 = vsub.f32 %v266, %v1829
        %v1831 = vand.u32 %v1830, 4294901760
        %1832 = vmatprep.subr.mxu0 %v1831
        %v1833 = vand.u32 %v265, 4294901760
        %v1834 = vsub.f32 %v265, %v1833
        %v1835 = vand.u32 %v1834, 4294901760
        %1836 = vmatpush1.msra.mxu0 %v1835
        %v1837 = vand.u32 %v274, 4294901760
        %v1838 = vsub.f32 %v274, %v1837
        %v1839 = vand.u32 %v1838, 4294901760
        %1840 = vmatprep.subr.mxu0 %v1839
        %v1841 = vand.u32 %v273, 4294901760
        %v1842 = vsub.f32 %v273, %v1841
        %v1843 = vand.u32 %v1842, 4294901760
        %1844 = vmatpush1.msra.mxu0 %v1843
        %v1845 = vand.u32 %v282, 4294901760
        %v1846 = vsub.f32 %v282, %v1845
        %v1847 = vand.u32 %v1846, 4294901760
        %1848 = vmatprep.subr.mxu0 %v1847
        %v1849 = vand.u32 %v281, 4294901760
        %v1850 = vsub.f32 %v281, %v1849
        %v1851 = vand.u32 %v1850, 4294901760
        %1852 = vmatpush1.msra.mxu0 %v1851
        %v1853 = vand.u32 %v290, 4294901760
        %v1854 = vsub.f32 %v290, %v1853
        %v1855 = vand.u32 %v1854, 4294901760
        %1856 = vmatprep.subr.mxu0 %v1855
        %v1857 = vand.u32 %v289, 4294901760
        %v1858 = vsub.f32 %v289, %v1857
        %v1859 = vand.u32 %v1858, 4294901760
        %1860 = vmatpush1.msra.mxu0 %v1859
        %v1861 = vand.u32 %v298, 4294901760
        %v1862 = vsub.f32 %v298, %v1861
        %v1863 = vand.u32 %v1862, 4294901760
        %1864 = vmatprep.subr.mxu0 %v1863
        %v1865 = vand.u32 %v297, 4294901760
        %v1866 = vsub.f32 %v297, %v1865
        %v1867 = vand.u32 %v1866, 4294901760
        %1868 = vmatpush1.msra.mxu0 %v1867
        %v1869 = vand.u32 %v306, 4294901760
        %v1870 = vsub.f32 %v306, %v1869
        %v1871 = vand.u32 %v1870, 4294901760
        %1872 = vmatprep.subr.mxu0 %v1871
        %v1873 = vand.u32 %v305, 4294901760
        %v1874 = vsub.f32 %v305, %v1873
        %v1875 = vand.u32 %v1874, 4294901760
        %1876 = vmatpush1.msra.mxu0 %v1875
        %v1877 = vand.u32 %v314, 4294901760
        %v1878 = vsub.f32 %v314, %v1877
        %v1879 = vand.u32 %v1878, 4294901760
        %1880 = vmatprep.subr.mxu0 %v1879
        %v1881 = vand.u32 %v313, 4294901760
        %v1882 = vsub.f32 %v313, %v1881
        %v1883 = vand.u32 %v1882, 4294901760
        %1884 = vmatpush1.msra.mxu0 %v1883
        %v1885 = vand.u32 %v322, 4294901760
        %v1886 = vsub.f32 %v322, %v1885
        %v1887 = vand.u32 %v1886, 4294901760
        %1888 = vmatprep.subr.mxu0 %v1887
        %v1889 = vand.u32 %v321, 4294901760
        %v1890 = vsub.f32 %v321, %v1889
        %v1891 = vand.u32 %v1890, 4294901760
        %1892 = vmatpush1.msra.mxu0 %v1891
        %v1893 = vand.u32 %v330, 4294901760
        %v1894 = vsub.f32 %v330, %v1893
        %v1895 = vand.u32 %v1894, 4294901760
        %1896 = vmatprep.subr.mxu0 %v1895
        %v1897 = vand.u32 %v329, 4294901760
        %v1898 = vsub.f32 %v329, %v1897
        %v1899 = vand.u32 %v1898, 4294901760
        %1900 = vmatpush1.msra.mxu0 %v1899
        %v1901 = vand.u32 %v338, 4294901760
        %v1902 = vsub.f32 %v338, %v1901
        %v1903 = vand.u32 %v1902, 4294901760
        %1904 = vmatprep.subr.mxu0 %v1903
        %v1905 = vand.u32 %v337, 4294901760
        %v1906 = vsub.f32 %v337, %v1905
        %v1907 = vand.u32 %v1906, 4294901760
        %1908 = vmatpush1.msra.mxu0 %v1907
        %1909 = vmatprep.subr.mxu0 0.0
        %1910 = vmatpush1.msra.mxu0 0.0
        %1911 = vmatprep.subr.mxu0 0.0
        %1912 = vmatpush1.msra.mxu0 0.0
        %1913 = vmatprep.subr.mxu0 0.0
        %1914 = vmatpush1.msra.mxu0 0.0
        %1915 = vmatprep.subr.mxu0 0.0
        %1916 = vmatpush1.msra.mxu0 0.0
        %1917 = vmatprep.subr.mxu0 0.0
        %1918 = vmatpush1.msra.mxu0 0.0
        %1919 = vmatprep.subr.mxu0 0.0
        %1920 = vmatpush1.msra.mxu0 0.0
        %1921 = vmatprep.subr.mxu0 0.0
        %1922 = vmatpush1.msra.mxu0 0.0
        %1923 = vmatprep.subr.mxu0 0.0
        %1924 = vmatpush1.msra.mxu0 0.0
        %1925 = vmatprep.subr.mxu0 0.0
        %1926 = vmatpush1.msra.mxu0 0.0
        %1927 = vmatprep.subr.mxu0 0.0
        %1928 = vmatpush1.msra.mxu0 0.0
        %1929 = vmatprep.subr.mxu0 0.0
        %1930 = vmatpush1.msra.mxu0 0.0
        %1931 = vmatprep.subr.mxu0 0.0
        %1932 = vmatpush1.msra.mxu0 0.0
        %1933 = vmatprep.subr.mxu0 0.0
        %1934 = vmatpush1.msra.mxu0 0.0
        %1935 = vmatprep.subr.mxu0 0.0
        %1936 = vmatpush1.msra.mxu0 0.0
        %1937 = vmatprep.subr.mxu0 0.0
        %1938 = vmatpush1.msra.mxu0 0.0
        %1939 = vmatprep.subr.mxu0 0.0
        %1940 = vmatpush1.msra.mxu0 0.0
        %1941 = vmatprep.mubr.f32.mxu0 0.0
        %v1942 = vand.u32 %v214, 4294901760
        %1943 = vmatmul.mubr.f32.gmra.mrb[0].mxu0 %v1942
        %v1944 = vpop.f32.mrb[0].mxu0
        %v1945 = vadd.f32 %v1777, %v1944
        %v1946 = vpop.f32.mrb[0].mxu0
        %v1947 = vadd.f32 %v1779, %v1946
        %1948 = vdwg.mxu0
        %v1949 = vand.u32 %v218, 4294901760
        %1950 = vmatprep.subr.mxu0 %v1949
        %v1951 = vand.u32 %v217, 4294901760
        %1952 = vmatpush1.msra.mxu0 %v1951
        %v1953 = vand.u32 %v226, 4294901760
        %1954 = vmatprep.subr.mxu0 %v1953
        %v1955 = vand.u32 %v225, 4294901760
        %1956 = vmatpush1.msra.mxu0 %v1955
        %v1957 = vand.u32 %v234, 4294901760
        %1958 = vmatprep.subr.mxu0 %v1957
        %v1959 = vand.u32 %v233, 4294901760
        %1960 = vmatpush1.msra.mxu0 %v1959
        %v1961 = vand.u32 %v242, 4294901760
        %1962 = vmatprep.subr.mxu0 %v1961
        %v1963 = vand.u32 %v241, 4294901760
        %1964 = vmatpush1.msra.mxu0 %v1963
        %v1965 = vand.u32 %v250, 4294901760
        %1966 = vmatprep.subr.mxu0 %v1965
        %v1967 = vand.u32 %v249, 4294901760
        %1968 = vmatpush1.msra.mxu0 %v1967
        %v1969 = vand.u32 %v258, 4294901760
        %1970 = vmatprep.subr.mxu0 %v1969
        %v1971 = vand.u32 %v257, 4294901760
        %1972 = vmatpush1.msra.mxu0 %v1971
        %v1973 = vand.u32 %v266, 4294901760
        %1974 = vmatprep.subr.mxu0 %v1973
        %v1975 = vand.u32 %v265, 4294901760
        %1976 = vmatpush1.msra.mxu0 %v1975
        %v1977 = vand.u32 %v274, 4294901760
        %1978 = vmatprep.subr.mxu0 %v1977
        %v1979 = vand.u32 %v273, 4294901760
        %1980 = vmatpush1.msra.mxu0 %v1979
        %v1981 = vand.u32 %v282, 4294901760
        %1982 = vmatprep.subr.mxu0 %v1981
        %v1983 = vand.u32 %v281, 4294901760
        %1984 = vmatpush1.msra.mxu0 %v1983
        %v1985 = vand.u32 %v290, 4294901760
        %1986 = vmatprep.subr.mxu0 %v1985
        %v1987 = vand.u32 %v289, 4294901760
        %1988 = vmatpush1.msra.mxu0 %v1987
        %v1989 = vand.u32 %v298, 4294901760
        %1990 = vmatprep.subr.mxu0 %v1989
        %v1991 = vand.u32 %v297, 4294901760
        %1992 = vmatpush1.msra.mxu0 %v1991
        %v1993 = vand.u32 %v306, 4294901760
        %1994 = vmatprep.subr.mxu0 %v1993
        %v1995 = vand.u32 %v305, 4294901760
        %1996 = vmatpush1.msra.mxu0 %v1995
        %v1997 = vand.u32 %v314, 4294901760
        %1998 = vmatprep.subr.mxu0 %v1997
        %v1999 = vand.u32 %v313, 4294901760
        %2000 = vmatpush1.msra.mxu0 %v1999
        %v2001 = vand.u32 %v322, 4294901760
        %2002 = vmatprep.subr.mxu0 %v2001
        %v2003 = vand.u32 %v321, 4294901760
        %2004 = vmatpush1.msra.mxu0 %v2003
        %v2005 = vand.u32 %v330, 4294901760
        %2006 = vmatprep.subr.mxu0 %v2005
        %v2007 = vand.u32 %v329, 4294901760
        %2008 = vmatpush1.msra.mxu0 %v2007
        %v2009 = vand.u32 %v338, 4294901760
        %2010 = vmatprep.subr.mxu0 %v2009
        %v2011 = vand.u32 %v337, 4294901760
        %2012 = vmatpush1.msra.mxu0 %v2011
        %2013 = vmatprep.subr.mxu0 0.0
        %2014 = vmatpush1.msra.mxu0 0.0
        %2015 = vmatprep.subr.mxu0 0.0
        %2016 = vmatpush1.msra.mxu0 0.0
        %2017 = vmatprep.subr.mxu0 0.0
        %2018 = vmatpush1.msra.mxu0 0.0
        %2019 = vmatprep.subr.mxu0 0.0
        %2020 = vmatpush1.msra.mxu0 0.0
        %2021 = vmatprep.subr.mxu0 0.0
        %2022 = vmatpush1.msra.mxu0 0.0
        %2023 = vmatprep.subr.mxu0 0.0
        %2024 = vmatpush1.msra.mxu0 0.0
        %2025 = vmatprep.subr.mxu0 0.0
        %2026 = vmatpush1.msra.mxu0 0.0
        %2027 = vmatprep.subr.mxu0 0.0
        %2028 = vmatpush1.msra.mxu0 0.0
        %2029 = vmatprep.subr.mxu0 0.0
        %2030 = vmatpush1.msra.mxu0 0.0
        %2031 = vmatprep.subr.mxu0 0.0
        %2032 = vmatpush1.msra.mxu0 0.0
        %2033 = vmatprep.subr.mxu0 0.0
        %2034 = vmatpush1.msra.mxu0 0.0
        %2035 = vmatprep.subr.mxu0 0.0
        %2036 = vmatpush1.msra.mxu0 0.0
        %2037 = vmatprep.subr.mxu0 0.0
        %2038 = vmatpush1.msra.mxu0 0.0
        %2039 = vmatprep.subr.mxu0 0.0
        %2040 = vmatpush1.msra.mxu0 0.0
        %2041 = vmatprep.subr.mxu0 0.0
        %2042 = vmatpush1.msra.mxu0 0.0
        %2043 = vmatprep.subr.mxu0 0.0
        %2044 = vmatpush1.msra.mxu0 0.0
        %2045 = vmatprep.mubr.f32.mxu0 0.0
        %v2046 = vand.u32 %v214, 4294901760
        %2047 = vmatmul.mubr.f32.gmra.mrb[0].mxu0 %v2046
        %v2048 = vpop.f32.mrb[0].mxu0
        %v2049 = vadd.f32 %v1945, %v2048
        %v2050 = vpop.f32.mrb[0].mxu0
        %v2051 = vadd.f32 %v1947, %v2050
        %2052 = vdwg.mxu0
        %v2053 = vand.u32 %v220, 4294901760
        %2054 = vmatprep.subr.mxu0 %v2053
        %v2055 = vand.u32 %v219, 4294901760
        %2056 = vmatpush1.msra.mxu0 %v2055
        %v2057 = vand.u32 %v228, 4294901760
        %2058 = vmatprep.subr.mxu0 %v2057
        %v2059 = vand.u32 %v227, 4294901760
        %2060 = vmatpush1.msra.mxu0 %v2059
        %v2061 = vand.u32 %v236, 4294901760
        %2062 = vmatprep.subr.mxu0 %v2061
        %v2063 = vand.u32 %v235, 4294901760
        %2064 = vmatpush1.msra.mxu0 %v2063
        %v2065 = vand.u32 %v244, 4294901760
        %2066 = vmatprep.subr.mxu0 %v2065
        %v2067 = vand.u32 %v243, 4294901760
        %2068 = vmatpush1.msra.mxu0 %v2067
        %v2069 = vand.u32 %v252, 4294901760
        %2070 = vmatprep.subr.mxu0 %v2069
        %v2071 = vand.u32 %v251, 4294901760
        %2072 = vmatpush1.msra.mxu0 %v2071
        %v2073 = vand.u32 %v260, 4294901760
        %2074 = vmatprep.subr.mxu0 %v2073
        %v2075 = vand.u32 %v259, 4294901760
        %2076 = vmatpush1.msra.mxu0 %v2075
        %v2077 = vand.u32 %v268, 4294901760
        %2078 = vmatprep.subr.mxu0 %v2077
        %v2079 = vand.u32 %v267, 4294901760
        %2080 = vmatpush1.msra.mxu0 %v2079
        %v2081 = vand.u32 %v276, 4294901760
        %2082 = vmatprep.subr.mxu0 %v2081
        %v2083 = vand.u32 %v275, 4294901760
        %2084 = vmatpush1.msra.mxu0 %v2083
        %v2085 = vand.u32 %v284, 4294901760
        %2086 = vmatprep.subr.mxu0 %v2085
        %v2087 = vand.u32 %v283, 4294901760
        %2088 = vmatpush1.msra.mxu0 %v2087
        %v2089 = vand.u32 %v292, 4294901760
        %2090 = vmatprep.subr.mxu0 %v2089
        %v2091 = vand.u32 %v291, 4294901760
        %2092 = vmatpush1.msra.mxu0 %v2091
        %v2093 = vand.u32 %v300, 4294901760
        %2094 = vmatprep.subr.mxu0 %v2093
        %v2095 = vand.u32 %v299, 4294901760
        %2096 = vmatpush1.msra.mxu0 %v2095
        %v2097 = vand.u32 %v308, 4294901760
        %2098 = vmatprep.subr.mxu0 %v2097
        %v2099 = vand.u32 %v307, 4294901760
        %2100 = vmatpush1.msra.mxu0 %v2099
        %v2101 = vand.u32 %v316, 4294901760
        %2102 = vmatprep.subr.mxu0 %v2101
        %v2103 = vand.u32 %v315, 4294901760
        %2104 = vmatpush1.msra.mxu0 %v2103
        %v2105 = vand.u32 %v324, 4294901760
        %2106 = vmatprep.subr.mxu0 %v2105
        %v2107 = vand.u32 %v323, 4294901760
        %2108 = vmatpush1.msra.mxu0 %v2107
        %v2109 = vand.u32 %v332, 4294901760
        %2110 = vmatprep.subr.mxu0 %v2109
        %v2111 = vand.u32 %v331, 4294901760
        %2112 = vmatpush1.msra.mxu0 %v2111
        %v2113 = vand.u32 %v340, 4294901760
        %2114 = vmatprep.subr.mxu0 %v2113
        %v2115 = vand.u32 %v339, 4294901760
        %2116 = vmatpush1.msra.mxu0 %v2115
        %2117 = vmatprep.subr.mxu0 0.0
        %2118 = vmatpush1.msra.mxu0 0.0
        %2119 = vmatprep.subr.mxu0 0.0
        %2120 = vmatpush1.msra.mxu0 0.0
        %2121 = vmatprep.subr.mxu0 0.0
        %2122 = vmatpush1.msra.mxu0 0.0
        %2123 = vmatprep.subr.mxu0 0.0
        %2124 = vmatpush1.msra.mxu0 0.0
        %2125 = vmatprep.subr.mxu0 0.0
        %2126 = vmatpush1.msra.mxu0 0.0
        %2127 = vmatprep.subr.mxu0 0.0
        %2128 = vmatpush1.msra.mxu0 0.0
        %2129 = vmatprep.subr.mxu0 0.0
        %2130 = vmatpush1.msra.mxu0 0.0
        %2131 = vmatprep.subr.mxu0 0.0
        %2132 = vmatpush1.msra.mxu0 0.0
        %2133 = vmatprep.subr.mxu0 0.0
        %2134 = vmatpush1.msra.mxu0 0.0
        %2135 = vmatprep.subr.mxu0 0.0
        %2136 = vmatpush1.msra.mxu0 0.0
        %2137 = vmatprep.subr.mxu0 0.0
        %2138 = vmatpush1.msra.mxu0 0.0
        %2139 = vmatprep.subr.mxu0 0.0
        %2140 = vmatpush1.msra.mxu0 0.0
        %2141 = vmatprep.subr.mxu0 0.0
        %2142 = vmatpush1.msra.mxu0 0.0
        %2143 = vmatprep.subr.mxu0 0.0
        %2144 = vmatpush1.msra.mxu0 0.0
        %2145 = vmatprep.subr.mxu0 0.0
        %2146 = vmatpush1.msra.mxu0 0.0
        %2147 = vmatprep.subr.mxu0 0.0
        %2148 = vmatpush1.msra.mxu0 0.0
        %2149 = vmatprep.mubr.f32.mxu0 0.0
        %v2150 = vand.u32 %v214, 4294901760
        %v2151 = vsub.f32 %v214, %v2150
        %v2152 = vand.u32 %v2151, 4294901760
        %v2153 = vsub.f32 %v2151, %v2152
        %v2154 = vand.u32 %v2153, 4294901760
        %2155 = vmatmul.mubr.f32.gmra.mrb[0].mxu0 %v2154
        %v2156 = vpop.f32.mrb[0].mxu0
        %v2157 = vadd.f32 0.0, %v2156
        %v2158 = vpop.f32.mrb[0].mxu0
        %v2159 = vadd.f32 0.0, %v2158
        %2160 = vdwg.mxu0
        %v2161 = vand.u32 %v220, 4294901760
        %v2162 = vsub.f32 %v220, %v2161
        %v2163 = vand.u32 %v2162, 4294901760
        %v2164 = vsub.f32 %v2162, %v2163
        %v2165 = vand.u32 %v2164, 4294901760
        %2166 = vmatprep.subr.mxu0 %v2165
        %v2167 = vand.u32 %v219, 4294901760
        %v2168 = vsub.f32 %v219, %v2167
        %v2169 = vand.u32 %v2168, 4294901760
        %v2170 = vsub.f32 %v2168, %v2169
        %v2171 = vand.u32 %v2170, 4294901760
        %2172 = vmatpush1.msra.mxu0 %v2171
        %v2173 = vand.u32 %v228, 4294901760
        %v2174 = vsub.f32 %v228, %v2173
        %v2175 = vand.u32 %v2174, 4294901760
        %v2176 = vsub.f32 %v2174, %v2175
        %v2177 = vand.u32 %v2176, 4294901760
        %2178 = vmatprep.subr.mxu0 %v2177
        %v2179 = vand.u32 %v227, 4294901760
        %v2180 = vsub.f32 %v227, %v2179
        %v2181 = vand.u32 %v2180, 4294901760
        %v2182 = vsub.f32 %v2180, %v2181
        %v2183 = vand.u32 %v2182, 4294901760
        %2184 = vmatpush1.msra.mxu0 %v2183
        %v2185 = vand.u32 %v236, 4294901760
        %v2186 = vsub.f32 %v236, %v2185
        %v2187 = vand.u32 %v2186, 4294901760
        %v2188 = vsub.f32 %v2186, %v2187
        %v2189 = vand.u32 %v2188, 4294901760
        %2190 = vmatprep.subr.mxu0 %v2189
        %v2191 = vand.u32 %v235, 4294901760
        %v2192 = vsub.f32 %v235, %v2191
        %v2193 = vand.u32 %v2192, 4294901760
        %v2194 = vsub.f32 %v2192, %v2193
        %v2195 = vand.u32 %v2194, 4294901760
        %2196 = vmatpush1.msra.mxu0 %v2195
        %v2197 = vand.u32 %v244, 4294901760
        %v2198 = vsub.f32 %v244, %v2197
        %v2199 = vand.u32 %v2198, 4294901760
        %v2200 = vsub.f32 %v2198, %v2199
        %v2201 = vand.u32 %v2200, 4294901760
        %2202 = vmatprep.subr.mxu0 %v2201
        %v2203 = vand.u32 %v243, 4294901760
        %v2204 = vsub.f32 %v243, %v2203
        %v2205 = vand.u32 %v2204, 4294901760
        %v2206 = vsub.f32 %v2204, %v2205
        %v2207 = vand.u32 %v2206, 4294901760
        %2208 = vmatpush1.msra.mxu0 %v2207
        %v2209 = vand.u32 %v252, 4294901760
        %v2210 = vsub.f32 %v252, %v2209
        %v2211 = vand.u32 %v2210, 4294901760
        %v2212 = vsub.f32 %v2210, %v2211
        %v2213 = vand.u32 %v2212, 4294901760
        %2214 = vmatprep.subr.mxu0 %v2213
        %v2215 = vand.u32 %v251, 4294901760
        %v2216 = vsub.f32 %v251, %v2215
        %v2217 = vand.u32 %v2216, 4294901760
        %v2218 = vsub.f32 %v2216, %v2217
        %v2219 = vand.u32 %v2218, 4294901760
        %2220 = vmatpush1.msra.mxu0 %v2219
        %v2221 = vand.u32 %v260, 4294901760
        %v2222 = vsub.f32 %v260, %v2221
        %v2223 = vand.u32 %v2222, 4294901760
        %v2224 = vsub.f32 %v2222, %v2223
        %v2225 = vand.u32 %v2224, 4294901760
        %2226 = vmatprep.subr.mxu0 %v2225
        %v2227 = vand.u32 %v259, 4294901760
        %v2228 = vsub.f32 %v259, %v2227
        %v2229 = vand.u32 %v2228, 4294901760
        %v2230 = vsub.f32 %v2228, %v2229
        %v2231 = vand.u32 %v2230, 4294901760
        %2232 = vmatpush1.msra.mxu0 %v2231
        %v2233 = vand.u32 %v268, 4294901760
        %v2234 = vsub.f32 %v268, %v2233
        %v2235 = vand.u32 %v2234, 4294901760
        %v2236 = vsub.f32 %v2234, %v2235
        %v2237 = vand.u32 %v2236, 4294901760
        %2238 = vmatprep.subr.mxu0 %v2237
        %v2239 = vand.u32 %v267, 4294901760
        %v2240 = vsub.f32 %v267, %v2239
        %v2241 = vand.u32 %v2240, 4294901760
        %v2242 = vsub.f32 %v2240, %v2241
        %v2243 = vand.u32 %v2242, 4294901760
        %2244 = vmatpush1.msra.mxu0 %v2243
        %v2245 = vand.u32 %v276, 4294901760
        %v2246 = vsub.f32 %v276, %v2245
        %v2247 = vand.u32 %v2246, 4294901760
        %v2248 = vsub.f32 %v2246, %v2247
        %v2249 = vand.u32 %v2248, 4294901760
        %2250 = vmatprep.subr.mxu0 %v2249
        %v2251 = vand.u32 %v275, 4294901760
        %v2252 = vsub.f32 %v275, %v2251
        %v2253 = vand.u32 %v2252, 4294901760
        %v2254 = vsub.f32 %v2252, %v2253
        %v2255 = vand.u32 %v2254, 4294901760
        %2256 = vmatpush1.msra.mxu0 %v2255
        %v2257 = vand.u32 %v284, 4294901760
        %v2258 = vsub.f32 %v284, %v2257
        %v2259 = vand.u32 %v2258, 4294901760
        %v2260 = vsub.f32 %v2258, %v2259
        %v2261 = vand.u32 %v2260, 4294901760
        %2262 = vmatprep.subr.mxu0 %v2261
        %v2263 = vand.u32 %v283, 4294901760
        %v2264 = vsub.f32 %v283, %v2263
        %v2265 = vand.u32 %v2264, 4294901760
        %v2266 = vsub.f32 %v2264, %v2265
        %v2267 = vand.u32 %v2266, 4294901760
        %2268 = vmatpush1.msra.mxu0 %v2267
        %v2269 = vand.u32 %v292, 4294901760
        %v2270 = vsub.f32 %v292, %v2269
        %v2271 = vand.u32 %v2270, 4294901760
        %v2272 = vsub.f32 %v2270, %v2271
        %v2273 = vand.u32 %v2272, 4294901760
        %2274 = vmatprep.subr.mxu0 %v2273
        %v2275 = vand.u32 %v291, 4294901760
        %v2276 = vsub.f32 %v291, %v2275
        %v2277 = vand.u32 %v2276, 4294901760
        %v2278 = vsub.f32 %v2276, %v2277
        %v2279 = vand.u32 %v2278, 4294901760
        %2280 = vmatpush1.msra.mxu0 %v2279
        %v2281 = vand.u32 %v300, 4294901760
        %v2282 = vsub.f32 %v300, %v2281
        %v2283 = vand.u32 %v2282, 4294901760
        %v2284 = vsub.f32 %v2282, %v2283
        %v2285 = vand.u32 %v2284, 4294901760
        %2286 = vmatprep.subr.mxu0 %v2285
        %v2287 = vand.u32 %v299, 4294901760
        %v2288 = vsub.f32 %v299, %v2287
        %v2289 = vand.u32 %v2288, 4294901760
        %v2290 = vsub.f32 %v2288, %v2289
        %v2291 = vand.u32 %v2290, 4294901760
        %2292 = vmatpush1.msra.mxu0 %v2291
        %v2293 = vand.u32 %v308, 4294901760
        %v2294 = vsub.f32 %v308, %v2293
        %v2295 = vand.u32 %v2294, 4294901760
        %v2296 = vsub.f32 %v2294, %v2295
        %v2297 = vand.u32 %v2296, 4294901760
        %2298 = vmatprep.subr.mxu0 %v2297
        %v2299 = vand.u32 %v307, 4294901760
        %v2300 = vsub.f32 %v307, %v2299
        %v2301 = vand.u32 %v2300, 4294901760
        %v2302 = vsub.f32 %v2300, %v2301
        %v2303 = vand.u32 %v2302, 4294901760
        %2304 = vmatpush1.msra.mxu0 %v2303
        %v2305 = vand.u32 %v316, 4294901760
        %v2306 = vsub.f32 %v316, %v2305
        %v2307 = vand.u32 %v2306, 4294901760
        %v2308 = vsub.f32 %v2306, %v2307
        %v2309 = vand.u32 %v2308, 4294901760
        %2310 = vmatprep.subr.mxu0 %v2309
        %v2311 = vand.u32 %v315, 4294901760
        %v2312 = vsub.f32 %v315, %v2311
        %v2313 = vand.u32 %v2312, 4294901760
        %v2314 = vsub.f32 %v2312, %v2313
        %v2315 = vand.u32 %v2314, 4294901760
        %2316 = vmatpush1.msra.mxu0 %v2315
        %v2317 = vand.u32 %v324, 4294901760
        %v2318 = vsub.f32 %v324, %v2317
        %v2319 = vand.u32 %v2318, 4294901760
        %v2320 = vsub.f32 %v2318, %v2319
        %v2321 = vand.u32 %v2320, 4294901760
        %2322 = vmatprep.subr.mxu0 %v2321
        %v2323 = vand.u32 %v323, 4294901760
        %v2324 = vsub.f32 %v323, %v2323
        %v2325 = vand.u32 %v2324, 4294901760
        %v2326 = vsub.f32 %v2324, %v2325
        %v2327 = vand.u32 %v2326, 4294901760
        %2328 = vmatpush1.msra.mxu0 %v2327
        %v2329 = vand.u32 %v332, 4294901760
        %v2330 = vsub.f32 %v332, %v2329
        %v2331 = vand.u32 %v2330, 4294901760
        %v2332 = vsub.f32 %v2330, %v2331
        %v2333 = vand.u32 %v2332, 4294901760
        %2334 = vmatprep.subr.mxu0 %v2333
        %v2335 = vand.u32 %v331, 4294901760
        %v2336 = vsub.f32 %v331, %v2335
        %v2337 = vand.u32 %v2336, 4294901760
        %v2338 = vsub.f32 %v2336, %v2337
        %v2339 = vand.u32 %v2338, 4294901760
        %2340 = vmatpush1.msra.mxu0 %v2339
        %v2341 = vand.u32 %v340, 4294901760
        %v2342 = vsub.f32 %v340, %v2341
        %v2343 = vand.u32 %v2342, 4294901760
        %v2344 = vsub.f32 %v2342, %v2343
        %v2345 = vand.u32 %v2344, 4294901760
        %2346 = vmatprep.subr.mxu0 %v2345
        %v2347 = vand.u32 %v339, 4294901760
        %v2348 = vsub.f32 %v339, %v2347
        %v2349 = vand.u32 %v2348, 4294901760
        %v2350 = vsub.f32 %v2348, %v2349
        %v2351 = vand.u32 %v2350, 4294901760
        %2352 = vmatpush1.msra.mxu0 %v2351
        %2353 = vmatprep.subr.mxu0 0.0
        %2354 = vmatpush1.msra.mxu0 0.0
        %2355 = vmatprep.subr.mxu0 0.0
        %2356 = vmatpush1.msra.mxu0 0.0
        %2357 = vmatprep.subr.mxu0 0.0
        %2358 = vmatpush1.msra.mxu0 0.0
        %2359 = vmatprep.subr.mxu0 0.0
        %2360 = vmatpush1.msra.mxu0 0.0
        %2361 = vmatprep.subr.mxu0 0.0
        %2362 = vmatpush1.msra.mxu0 0.0
        %2363 = vmatprep.subr.mxu0 0.0
        %2364 = vmatpush1.msra.mxu0 0.0
        %2365 = vmatprep.subr.mxu0 0.0
        %2366 = vmatpush1.msra.mxu0 0.0
        %2367 = vmatprep.subr.mxu0 0.0
        %2368 = vmatpush1.msra.mxu0 0.0
        %2369 = vmatprep.subr.mxu0 0.0
        %2370 = vmatpush1.msra.mxu0 0.0
        %2371 = vmatprep.subr.mxu0 0.0
        %2372 = vmatpush1.msra.mxu0 0.0
        %2373 = vmatprep.subr.mxu0 0.0
        %2374 = vmatpush1.msra.mxu0 0.0
        %2375 = vmatprep.subr.mxu0 0.0
        %2376 = vmatpush1.msra.mxu0 0.0
        %2377 = vmatprep.subr.mxu0 0.0
        %2378 = vmatpush1.msra.mxu0 0.0
        %2379 = vmatprep.subr.mxu0 0.0
        %2380 = vmatpush1.msra.mxu0 0.0
        %2381 = vmatprep.subr.mxu0 0.0
        %2382 = vmatpush1.msra.mxu0 0.0
        %2383 = vmatprep.subr.mxu0 0.0
        %2384 = vmatpush1.msra.mxu0 0.0
        %2385 = vmatprep.mubr.f32.mxu0 0.0
        %v2386 = vand.u32 %v214, 4294901760
        %2387 = vmatmul.mubr.f32.gmra.mrb[0].mxu0 %v2386
        %v2388 = vpop.f32.mrb[0].mxu0
        %v2389 = vadd.f32 %v2157, %v2388
        %v2390 = vpop.f32.mrb[0].mxu0
        %v2391 = vadd.f32 %v2159, %v2390
        %2392 = vdwg.mxu0
        %v2393 = vand.u32 %v220, 4294901760
        %v2394 = vsub.f32 %v220, %v2393
        %2395 = vmatprep.subr.mxu0 %v2394
        %v2396 = vand.u32 %v219, 4294901760
        %v2397 = vsub.f32 %v219, %v2396
        %2398 = vmatpush1.msra.mxu0 %v2397
        %v2399 = vand.u32 %v228, 4294901760
        %v2400 = vsub.f32 %v228, %v2399
        %2401 = vmatprep.subr.mxu0 %v2400
        %v2402 = vand.u32 %v227, 4294901760
        %v2403 = vsub.f32 %v227, %v2402
        %2404 = vmatpush1.msra.mxu0 %v2403
        %v2405 = vand.u32 %v236, 4294901760
        %v2406 = vsub.f32 %v236, %v2405
        %2407 = vmatprep.subr.mxu0 %v2406
        %v2408 = vand.u32 %v235, 4294901760
        %v2409 = vsub.f32 %v235, %v2408
        %2410 = vmatpush1.msra.mxu0 %v2409
        %v2411 = vand.u32 %v244, 4294901760
        %v2412 = vsub.f32 %v244, %v2411
        %2413 = vmatprep.subr.mxu0 %v2412
        %v2414 = vand.u32 %v243, 4294901760
        %v2415 = vsub.f32 %v243, %v2414
        %2416 = vmatpush1.msra.mxu0 %v2415
        %v2417 = vand.u32 %v252, 4294901760
        %v2418 = vsub.f32 %v252, %v2417
        %2419 = vmatprep.subr.mxu0 %v2418
        %v2420 = vand.u32 %v251, 4294901760
        %v2421 = vsub.f32 %v251, %v2420
        %2422 = vmatpush1.msra.mxu0 %v2421
        %v2423 = vand.u32 %v260, 4294901760
        %v2424 = vsub.f32 %v260, %v2423
        %2425 = vmatprep.subr.mxu0 %v2424
        %v2426 = vand.u32 %v259, 4294901760
        %v2427 = vsub.f32 %v259, %v2426
        %2428 = vmatpush1.msra.mxu0 %v2427
        %v2429 = vand.u32 %v268, 4294901760
        %v2430 = vsub.f32 %v268, %v2429
        %2431 = vmatprep.subr.mxu0 %v2430
        %v2432 = vand.u32 %v267, 4294901760
        %v2433 = vsub.f32 %v267, %v2432
        %2434 = vmatpush1.msra.mxu0 %v2433
        %v2435 = vand.u32 %v276, 4294901760
        %v2436 = vsub.f32 %v276, %v2435
        %2437 = vmatprep.subr.mxu0 %v2436
        %v2438 = vand.u32 %v275, 4294901760
        %v2439 = vsub.f32 %v275, %v2438
        %2440 = vmatpush1.msra.mxu0 %v2439
        %v2441 = vand.u32 %v284, 4294901760
        %v2442 = vsub.f32 %v284, %v2441
        %2443 = vmatprep.subr.mxu0 %v2442
        %v2444 = vand.u32 %v283, 4294901760
        %v2445 = vsub.f32 %v283, %v2444
        %2446 = vmatpush1.msra.mxu0 %v2445
        %v2447 = vand.u32 %v292, 4294901760
        %v2448 = vsub.f32 %v292, %v2447
        %2449 = vmatprep.subr.mxu0 %v2448
        %v2450 = vand.u32 %v291, 4294901760
        %v2451 = vsub.f32 %v291, %v2450
        %2452 = vmatpush1.msra.mxu0 %v2451
        %v2453 = vand.u32 %v300, 4294901760
        %v2454 = vsub.f32 %v300, %v2453
        %2455 = vmatprep.subr.mxu0 %v2454
        %v2456 = vand.u32 %v299, 4294901760
        %v2457 = vsub.f32 %v299, %v2456
        %2458 = vmatpush1.msra.mxu0 %v2457
        %v2459 = vand.u32 %v308, 4294901760
        %v2460 = vsub.f32 %v308, %v2459
        %2461 = vmatprep.subr.mxu0 %v2460
        %v2462 = vand.u32 %v307, 4294901760
        %v2463 = vsub.f32 %v307, %v2462
        %2464 = vmatpush1.msra.mxu0 %v2463
        %v2465 = vand.u32 %v316, 4294901760
        %v2466 = vsub.f32 %v316, %v2465
        %2467 = vmatprep.subr.mxu0 %v2466
        %v2468 = vand.u32 %v315, 4294901760
        %v2469 = vsub.f32 %v315, %v2468
        %2470 = vmatpush1.msra.mxu0 %v2469
        %v2471 = vand.u32 %v324, 4294901760
        %v2472 = vsub.f32 %v324, %v2471
        %2473 = vmatprep.subr.mxu0 %v2472
        %v2474 = vand.u32 %v323, 4294901760
        %v2475 = vsub.f32 %v323, %v2474
        %2476 = vmatpush1.msra.mxu0 %v2475
        %v2477 = vand.u32 %v332, 4294901760
        %v2478 = vsub.f32 %v332, %v2477
        %2479 = vmatprep.subr.mxu0 %v2478
        %v2480 = vand.u32 %v331, 4294901760
        %v2481 = vsub.f32 %v331, %v2480
        %2482 = vmatpush1.msra.mxu0 %v2481
        %v2483 = vand.u32 %v340, 4294901760
        %v2484 = vsub.f32 %v340, %v2483
        %2485 = vmatprep.subr.mxu0 %v2484
        %v2486 = vand.u32 %v339, 4294901760
        %v2487 = vsub.f32 %v339, %v2486
        %2488 = vmatpush1.msra.mxu0 %v2487
        %2489 = vmatprep.subr.mxu0 0.0
        %2490 = vmatpush1.msra.mxu0 0.0
        %2491 = vmatprep.subr.mxu0 0.0
        %2492 = vmatpush1.msra.mxu0 0.0
        %2493 = vmatprep.subr.mxu0 0.0
        %2494 = vmatpush1.msra.mxu0 0.0
        %2495 = vmatprep.subr.mxu0 0.0
        %2496 = vmatpush1.msra.mxu0 0.0
        %2497 = vmatprep.subr.mxu0 0.0
        %2498 = vmatpush1.msra.mxu0 0.0
        %2499 = vmatprep.subr.mxu0 0.0
        %2500 = vmatpush1.msra.mxu0 0.0
        %2501 = vmatprep.subr.mxu0 0.0
        %2502 = vmatpush1.msra.mxu0 0.0
        %2503 = vmatprep.subr.mxu0 0.0
        %2504 = vmatpush1.msra.mxu0 0.0
        %2505 = vmatprep.subr.mxu0 0.0
        %2506 = vmatpush1.msra.mxu0 0.0
        %2507 = vmatprep.subr.mxu0 0.0
        %2508 = vmatpush1.msra.mxu0 0.0
        %2509 = vmatprep.subr.mxu0 0.0
        %2510 = vmatpush1.msra.mxu0 0.0
        %2511 = vmatprep.subr.mxu0 0.0
        %2512 = vmatpush1.msra.mxu0 0.0
        %2513 = vmatprep.subr.mxu0 0.0
        %2514 = vmatpush1.msra.mxu0 0.0
        %2515 = vmatprep.subr.mxu0 0.0
        %2516 = vmatpush1.msra.mxu0 0.0
        %2517 = vmatprep.subr.mxu0 0.0
        %2518 = vmatpush1.msra.mxu0 0.0
        %2519 = vmatprep.subr.mxu0 0.0
        %2520 = vmatpush1.msra.mxu0 0.0
        %2521 = vmatprep.mubr.f32.mxu0 0.0
        %v2522 = vand.u32 %v214, 4294901760
        %v2523 = vsub.f32 %v214, %v2522
        %2524 = vmatmul.mubr.f32.gmra.mrb[0].mxu0 %v2523
        %v2525 = vpop.f32.mrb[0].mxu0
        %v2526 = vadd.f32 %v2389, %v2525
        %v2527 = vpop.f32.mrb[0].mxu0
        %v2528 = vadd.f32 %v2391, %v2527
        %2529 = vdwg.mxu0
        %v2530 = vand.u32 %v220, 4294901760
        %2531 = vmatprep.subr.mxu0 %v2530
        %v2532 = vand.u32 %v219, 4294901760
        %2533 = vmatpush1.msra.mxu0 %v2532
        %v2534 = vand.u32 %v228, 4294901760
        %2535 = vmatprep.subr.mxu0 %v2534
        %v2536 = vand.u32 %v227, 4294901760
        %2537 = vmatpush1.msra.mxu0 %v2536
        %v2538 = vand.u32 %v236, 4294901760
        %2539 = vmatprep.subr.mxu0 %v2538
        %v2540 = vand.u32 %v235, 4294901760
        %2541 = vmatpush1.msra.mxu0 %v2540
        %v2542 = vand.u32 %v244, 4294901760
        %2543 = vmatprep.subr.mxu0 %v2542
        %v2544 = vand.u32 %v243, 4294901760
        %2545 = vmatpush1.msra.mxu0 %v2544
        %v2546 = vand.u32 %v252, 4294901760
        %2547 = vmatprep.subr.mxu0 %v2546
        %v2548 = vand.u32 %v251, 4294901760
        %2549 = vmatpush1.msra.mxu0 %v2548
        %v2550 = vand.u32 %v260, 4294901760
        %2551 = vmatprep.subr.mxu0 %v2550
        %v2552 = vand.u32 %v259, 4294901760
        %2553 = vmatpush1.msra.mxu0 %v2552
        %v2554 = vand.u32 %v268, 4294901760
        %2555 = vmatprep.subr.mxu0 %v2554
        %v2556 = vand.u32 %v267, 4294901760
        %2557 = vmatpush1.msra.mxu0 %v2556
        %v2558 = vand.u32 %v276, 4294901760
        %2559 = vmatprep.subr.mxu0 %v2558
        %v2560 = vand.u32 %v275, 4294901760
        %2561 = vmatpush1.msra.mxu0 %v2560
        %v2562 = vand.u32 %v284, 4294901760
        %2563 = vmatprep.subr.mxu0 %v2562
        %v2564 = vand.u32 %v283, 4294901760
        %2565 = vmatpush1.msra.mxu0 %v2564
        %v2566 = vand.u32 %v292, 4294901760
        %2567 = vmatprep.subr.mxu0 %v2566
        %v2568 = vand.u32 %v291, 4294901760
        %2569 = vmatpush1.msra.mxu0 %v2568
        %v2570 = vand.u32 %v300, 4294901760
        %2571 = vmatprep.subr.mxu0 %v2570
        %v2572 = vand.u32 %v299, 4294901760
        %2573 = vmatpush1.msra.mxu0 %v2572
        %v2574 = vand.u32 %v308, 4294901760
        %2575 = vmatprep.subr.mxu0 %v2574
        %v2576 = vand.u32 %v307, 4294901760
        %2577 = vmatpush1.msra.mxu0 %v2576
        %v2578 = vand.u32 %v316, 4294901760
        %2579 = vmatprep.subr.mxu0 %v2578
        %v2580 = vand.u32 %v315, 4294901760
        %2581 = vmatpush1.msra.mxu0 %v2580
        %v2582 = vand.u32 %v324, 4294901760
        %2583 = vmatprep.subr.mxu0 %v2582
        %v2584 = vand.u32 %v323, 4294901760
        %2585 = vmatpush1.msra.mxu0 %v2584
        %v2586 = vand.u32 %v332, 4294901760
        %2587 = vmatprep.subr.mxu0 %v2586
        %v2588 = vand.u32 %v331, 4294901760
        %2589 = vmatpush1.msra.mxu0 %v2588
        %v2590 = vand.u32 %v340, 4294901760
        %2591 = vmatprep.subr.mxu0 %v2590
        %v2592 = vand.u32 %v339, 4294901760
        %2593 = vmatpush1.msra.mxu0 %v2592
        %2594 = vmatprep.subr.mxu0 0.0
        %2595 = vmatpush1.msra.mxu0 0.0
        %2596 = vmatprep.subr.mxu0 0.0
        %2597 = vmatpush1.msra.mxu0 0.0
        %2598 = vmatprep.subr.mxu0 0.0
        %2599 = vmatpush1.msra.mxu0 0.0
        %2600 = vmatprep.subr.mxu0 0.0
        %2601 = vmatpush1.msra.mxu0 0.0
        %2602 = vmatprep.subr.mxu0 0.0
        %2603 = vmatpush1.msra.mxu0 0.0
        %2604 = vmatprep.subr.mxu0 0.0
        %2605 = vmatpush1.msra.mxu0 0.0
        %2606 = vmatprep.subr.mxu0 0.0
        %2607 = vmatpush1.msra.mxu0 0.0
        %2608 = vmatprep.subr.mxu0 0.0
        %2609 = vmatpush1.msra.mxu0 0.0
        %2610 = vmatprep.subr.mxu0 0.0
        %2611 = vmatpush1.msra.mxu0 0.0
        %2612 = vmatprep.subr.mxu0 0.0
        %2613 = vmatpush1.msra.mxu0 0.0
        %2614 = vmatprep.subr.mxu0 0.0
        %2615 = vmatpush1.msra.mxu0 0.0
        %2616 = vmatprep.subr.mxu0 0.0
        %2617 = vmatpush1.msra.mxu0 0.0
        %2618 = vmatprep.subr.mxu0 0.0
        %2619 = vmatpush1.msra.mxu0 0.0
        %2620 = vmatprep.subr.mxu0 0.0
        %2621 = vmatpush1.msra.mxu0 0.0
        %2622 = vmatprep.subr.mxu0 0.0
        %2623 = vmatpush1.msra.mxu0 0.0
        %2624 = vmatprep.subr.mxu0 0.0
        %2625 = vmatpush1.msra.mxu0 0.0
        %2626 = vmatprep.mubr.f32.mxu0 0.0
        %v2627 = vand.u32 %v214, 4294901760
        %v2628 = vsub.f32 %v214, %v2627
        %v2629 = vand.u32 %v2628, 4294901760
        %2630 = vmatmul.mubr.f32.gmra.mrb[0].mxu0 %v2629
        %v2631 = vpop.f32.mrb[0].mxu0
        %v2632 = vadd.f32 %v2526, %v2631
        %v2633 = vpop.f32.mrb[0].mxu0
        %v2634 = vadd.f32 %v2528, %v2633
        %2635 = vdwg.mxu0
        %v2636 = vand.u32 %v220, 4294901760
        %v2637 = vsub.f32 %v220, %v2636
        %v2638 = vand.u32 %v2637, 4294901760
        %2639 = vmatprep.subr.mxu0 %v2638
        %v2640 = vand.u32 %v219, 4294901760
        %v2641 = vsub.f32 %v219, %v2640
        %v2642 = vand.u32 %v2641, 4294901760
        %2643 = vmatpush1.msra.mxu0 %v2642
        %v2644 = vand.u32 %v228, 4294901760
        %v2645 = vsub.f32 %v228, %v2644
        %v2646 = vand.u32 %v2645, 4294901760
        %2647 = vmatprep.subr.mxu0 %v2646
        %v2648 = vand.u32 %v227, 4294901760
        %v2649 = vsub.f32 %v227, %v2648
        %v2650 = vand.u32 %v2649, 4294901760
        %2651 = vmatpush1.msra.mxu0 %v2650
        %v2652 = vand.u32 %v236, 4294901760
        %v2653 = vsub.f32 %v236, %v2652
        %v2654 = vand.u32 %v2653, 4294901760
        %2655 = vmatprep.subr.mxu0 %v2654
        %v2656 = vand.u32 %v235, 4294901760
        %v2657 = vsub.f32 %v235, %v2656
        %v2658 = vand.u32 %v2657, 4294901760
        %2659 = vmatpush1.msra.mxu0 %v2658
        %v2660 = vand.u32 %v244, 4294901760
        %v2661 = vsub.f32 %v244, %v2660
        %v2662 = vand.u32 %v2661, 4294901760
        %2663 = vmatprep.subr.mxu0 %v2662
        %v2664 = vand.u32 %v243, 4294901760
        %v2665 = vsub.f32 %v243, %v2664
        %v2666 = vand.u32 %v2665, 4294901760
        %2667 = vmatpush1.msra.mxu0 %v2666
        %v2668 = vand.u32 %v252, 4294901760
        %v2669 = vsub.f32 %v252, %v2668
        %v2670 = vand.u32 %v2669, 4294901760
        %2671 = vmatprep.subr.mxu0 %v2670
        %v2672 = vand.u32 %v251, 4294901760
        %v2673 = vsub.f32 %v251, %v2672
        %v2674 = vand.u32 %v2673, 4294901760
        %2675 = vmatpush1.msra.mxu0 %v2674
        %v2676 = vand.u32 %v260, 4294901760
        %v2677 = vsub.f32 %v260, %v2676
        %v2678 = vand.u32 %v2677, 4294901760
        %2679 = vmatprep.subr.mxu0 %v2678
        %v2680 = vand.u32 %v259, 4294901760
        %v2681 = vsub.f32 %v259, %v2680
        %v2682 = vand.u32 %v2681, 4294901760
        %2683 = vmatpush1.msra.mxu0 %v2682
        %v2684 = vand.u32 %v268, 4294901760
        %v2685 = vsub.f32 %v268, %v2684
        %v2686 = vand.u32 %v2685, 4294901760
        %2687 = vmatprep.subr.mxu0 %v2686
        %v2688 = vand.u32 %v267, 4294901760
        %v2689 = vsub.f32 %v267, %v2688
        %v2690 = vand.u32 %v2689, 4294901760
        %2691 = vmatpush1.msra.mxu0 %v2690
        %v2692 = vand.u32 %v276, 4294901760
        %v2693 = vsub.f32 %v276, %v2692
        %v2694 = vand.u32 %v2693, 4294901760
        %2695 = vmatprep.subr.mxu0 %v2694
        %v2696 = vand.u32 %v275, 4294901760
        %v2697 = vsub.f32 %v275, %v2696
        %v2698 = vand.u32 %v2697, 4294901760
        %2699 = vmatpush1.msra.mxu0 %v2698
        %v2700 = vand.u32 %v284, 4294901760
        %v2701 = vsub.f32 %v284, %v2700
        %v2702 = vand.u32 %v2701, 4294901760
        %2703 = vmatprep.subr.mxu0 %v2702
        %v2704 = vand.u32 %v283, 4294901760
        %v2705 = vsub.f32 %v283, %v2704
        %v2706 = vand.u32 %v2705, 4294901760
        %2707 = vmatpush1.msra.mxu0 %v2706
        %v2708 = vand.u32 %v292, 4294901760
        %v2709 = vsub.f32 %v292, %v2708
        %v2710 = vand.u32 %v2709, 4294901760
        %2711 = vmatprep.subr.mxu0 %v2710
        %v2712 = vand.u32 %v291, 4294901760
        %v2713 = vsub.f32 %v291, %v2712
        %v2714 = vand.u32 %v2713, 4294901760
        %2715 = vmatpush1.msra.mxu0 %v2714
        %v2716 = vand.u32 %v300, 4294901760
        %v2717 = vsub.f32 %v300, %v2716
        %v2718 = vand.u32 %v2717, 4294901760
        %2719 = vmatprep.subr.mxu0 %v2718
        %v2720 = vand.u32 %v299, 4294901760
        %v2721 = vsub.f32 %v299, %v2720
        %v2722 = vand.u32 %v2721, 4294901760
        %2723 = vmatpush1.msra.mxu0 %v2722
        %v2724 = vand.u32 %v308, 4294901760
        %v2725 = vsub.f32 %v308, %v2724
        %v2726 = vand.u32 %v2725, 4294901760
        %2727 = vmatprep.subr.mxu0 %v2726
        %v2728 = vand.u32 %v307, 4294901760
        %v2729 = vsub.f32 %v307, %v2728
        %v2730 = vand.u32 %v2729, 4294901760
        %2731 = vmatpush1.msra.mxu0 %v2730
        %v2732 = vand.u32 %v316, 4294901760
        %v2733 = vsub.f32 %v316, %v2732
        %v2734 = vand.u32 %v2733, 4294901760
        %2735 = vmatprep.subr.mxu0 %v2734
        %v2736 = vand.u32 %v315, 4294901760
        %v2737 = vsub.f32 %v315, %v2736
        %v2738 = vand.u32 %v2737, 4294901760
        %2739 = vmatpush1.msra.mxu0 %v2738
        %v2740 = vand.u32 %v324, 4294901760
        %v2741 = vsub.f32 %v324, %v2740
        %v2742 = vand.u32 %v2741, 4294901760
        %2743 = vmatprep.subr.mxu0 %v2742
        %v2744 = vand.u32 %v323, 4294901760
        %v2745 = vsub.f32 %v323, %v2744
        %v2746 = vand.u32 %v2745, 4294901760
        %2747 = vmatpush1.msra.mxu0 %v2746
        %v2748 = vand.u32 %v332, 4294901760
        %v2749 = vsub.f32 %v332, %v2748
        %v2750 = vand.u32 %v2749, 4294901760
        %2751 = vmatprep.subr.mxu0 %v2750
        %v2752 = vand.u32 %v331, 4294901760
        %v2753 = vsub.f32 %v331, %v2752
        %v2754 = vand.u32 %v2753, 4294901760
        %2755 = vmatpush1.msra.mxu0 %v2754
        %v2756 = vand.u32 %v340, 4294901760
        %v2757 = vsub.f32 %v340, %v2756
        %v2758 = vand.u32 %v2757, 4294901760
        %2759 = vmatprep.subr.mxu0 %v2758
        %v2760 = vand.u32 %v339, 4294901760
        %v2761 = vsub.f32 %v339, %v2760
        %v2762 = vand.u32 %v2761, 4294901760
        %2763 = vmatpush1.msra.mxu0 %v2762
        %2764 = vmatprep.subr.mxu0 0.0
        %2765 = vmatpush1.msra.mxu0 0.0
        %2766 = vmatprep.subr.mxu0 0.0
        %2767 = vmatpush1.msra.mxu0 0.0
        %2768 = vmatprep.subr.mxu0 0.0
        %2769 = vmatpush1.msra.mxu0 0.0
        %2770 = vmatprep.subr.mxu0 0.0
        %2771 = vmatpush1.msra.mxu0 0.0
        %2772 = vmatprep.subr.mxu0 0.0
        %2773 = vmatpush1.msra.mxu0 0.0
        %2774 = vmatprep.subr.mxu0 0.0
        %2775 = vmatpush1.msra.mxu0 0.0
        %2776 = vmatprep.subr.mxu0 0.0
        %2777 = vmatpush1.msra.mxu0 0.0
        %2778 = vmatprep.subr.mxu0 0.0
        %2779 = vmatpush1.msra.mxu0 0.0
        %2780 = vmatprep.subr.mxu0 0.0
        %2781 = vmatpush1.msra.mxu0 0.0
        %2782 = vmatprep.subr.mxu0 0.0
        %2783 = vmatpush1.msra.mxu0 0.0
        %2784 = vmatprep.subr.mxu0 0.0
        %2785 = vmatpush1.msra.mxu0 0.0
        %2786 = vmatprep.subr.mxu0 0.0
        %2787 = vmatpush1.msra.mxu0 0.0
        %2788 = vmatprep.subr.mxu0 0.0
        %2789 = vmatpush1.msra.mxu0 0.0
        %2790 = vmatprep.subr.mxu0 0.0
        %2791 = vmatpush1.msra.mxu0 0.0
        %2792 = vmatprep.subr.mxu0 0.0
        %2793 = vmatpush1.msra.mxu0 0.0
        %2794 = vmatprep.subr.mxu0 0.0
        %2795 = vmatpush1.msra.mxu0 0.0
        %2796 = vmatprep.mubr.f32.mxu0 0.0
        %v2797 = vand.u32 %v214, 4294901760
        %2798 = vmatmul.mubr.f32.gmra.mrb[0].mxu0 %v2797
        %v2799 = vpop.f32.mrb[0].mxu0
        %v2800 = vadd.f32 %v2632, %v2799
        %v2801 = vpop.f32.mrb[0].mxu0
        %v2802 = vadd.f32 %v2634, %v2801
        %2803 = vdwg.mxu0
        %v2804 = vand.u32 %v220, 4294901760
        %2805 = vmatprep.subr.mxu0 %v2804
        %v2806 = vand.u32 %v219, 4294901760
        %2807 = vmatpush1.msra.mxu0 %v2806
        %v2808 = vand.u32 %v228, 4294901760
        %2809 = vmatprep.subr.mxu0 %v2808
        %v2810 = vand.u32 %v227, 4294901760
        %2811 = vmatpush1.msra.mxu0 %v2810
        %v2812 = vand.u32 %v236, 4294901760
        %2813 = vmatprep.subr.mxu0 %v2812
        %v2814 = vand.u32 %v235, 4294901760
        %2815 = vmatpush1.msra.mxu0 %v2814
        %v2816 = vand.u32 %v244, 4294901760
        %2817 = vmatprep.subr.mxu0 %v2816
        %v2818 = vand.u32 %v243, 4294901760
        %2819 = vmatpush1.msra.mxu0 %v2818
        %v2820 = vand.u32 %v252, 4294901760
        %2821 = vmatprep.subr.mxu0 %v2820
        %v2822 = vand.u32 %v251, 4294901760
        %2823 = vmatpush1.msra.mxu0 %v2822
        %v2824 = vand.u32 %v260, 4294901760
        %2825 = vmatprep.subr.mxu0 %v2824
        %v2826 = vand.u32 %v259, 4294901760
        %2827 = vmatpush1.msra.mxu0 %v2826
        %v2828 = vand.u32 %v268, 4294901760
        %2829 = vmatprep.subr.mxu0 %v2828
        %v2830 = vand.u32 %v267, 4294901760
        %2831 = vmatpush1.msra.mxu0 %v2830
        %v2832 = vand.u32 %v276, 4294901760
        %2833 = vmatprep.subr.mxu0 %v2832
        %v2834 = vand.u32 %v275, 4294901760
        %2835 = vmatpush1.msra.mxu0 %v2834
        %v2836 = vand.u32 %v284, 4294901760
        %2837 = vmatprep.subr.mxu0 %v2836
        %v2838 = vand.u32 %v283, 4294901760
        %2839 = vmatpush1.msra.mxu0 %v2838
        %v2840 = vand.u32 %v292, 4294901760
        %2841 = vmatprep.subr.mxu0 %v2840
        %v2842 = vand.u32 %v291, 4294901760
        %2843 = vmatpush1.msra.mxu0 %v2842
        %v2844 = vand.u32 %v300, 4294901760
        %2845 = vmatprep.subr.mxu0 %v2844
        %v2846 = vand.u32 %v299, 4294901760
        %2847 = vmatpush1.msra.mxu0 %v2846
        %v2848 = vand.u32 %v308, 4294901760
        %2849 = vmatprep.subr.mxu0 %v2848
        %v2850 = vand.u32 %v307, 4294901760
        %2851 = vmatpush1.msra.mxu0 %v2850
        %v2852 = vand.u32 %v316, 4294901760
        %2853 = vmatprep.subr.mxu0 %v2852
        %v2854 = vand.u32 %v315, 4294901760
        %2855 = vmatpush1.msra.mxu0 %v2854
        %v2856 = vand.u32 %v324, 4294901760
        %2857 = vmatprep.subr.mxu0 %v2856
        %v2858 = vand.u32 %v323, 4294901760
        %2859 = vmatpush1.msra.mxu0 %v2858
        %v2860 = vand.u32 %v332, 4294901760
        %2861 = vmatprep.subr.mxu0 %v2860
        %v2862 = vand.u32 %v331, 4294901760
        %2863 = vmatpush1.msra.mxu0 %v2862
        %v2864 = vand.u32 %v340, 4294901760
        %2865 = vmatprep.subr.mxu0 %v2864
        %v2866 = vand.u32 %v339, 4294901760
        %2867 = vmatpush1.msra.mxu0 %v2866
        %2868 = vmatprep.subr.mxu0 0.0
        %2869 = vmatpush1.msra.mxu0 0.0
        %2870 = vmatprep.subr.mxu0 0.0
        %2871 = vmatpush1.msra.mxu0 0.0
        %2872 = vmatprep.subr.mxu0 0.0
        %2873 = vmatpush1.msra.mxu0 0.0
        %2874 = vmatprep.subr.mxu0 0.0
        %2875 = vmatpush1.msra.mxu0 0.0
        %2876 = vmatprep.subr.mxu0 0.0
        %2877 = vmatpush1.msra.mxu0 0.0
        %2878 = vmatprep.subr.mxu0 0.0
        %2879 = vmatpush1.msra.mxu0 0.0
        %2880 = vmatprep.subr.mxu0 0.0
        %2881 = vmatpush1.msra.mxu0 0.0
        %2882 = vmatprep.subr.mxu0 0.0
        %2883 = vmatpush1.msra.mxu0 0.0
        %2884 = vmatprep.subr.mxu0 0.0
        %2885 = vmatpush1.msra.mxu0 0.0
        %2886 = vmatprep.subr.mxu0 0.0
        %2887 = vmatpush1.msra.mxu0 0.0
        %2888 = vmatprep.subr.mxu0 0.0
        %2889 = vmatpush1.msra.mxu0 0.0
        %2890 = vmatprep.subr.mxu0 0.0
        %2891 = vmatpush1.msra.mxu0 0.0
        %2892 = vmatprep.subr.mxu0 0.0
        %2893 = vmatpush1.msra.mxu0 0.0
        %2894 = vmatprep.subr.mxu0 0.0
        %2895 = vmatpush1.msra.mxu0 0.0
        %2896 = vmatprep.subr.mxu0 0.0
        %2897 = vmatpush1.msra.mxu0 0.0
        %2898 = vmatprep.subr.mxu0 0.0
        %2899 = vmatpush1.msra.mxu0 0.0
        %2900 = vmatprep.mubr.f32.mxu0 0.0
        %v2901 = vand.u32 %v214, 4294901760
        %2902 = vmatmul.mubr.f32.gmra.mrb[0].mxu0 %v2901
        %v2903 = vpop.f32.mrb[0].mxu0
        %v2904 = vadd.f32 %v2800, %v2903
        %v2905 = vpop.f32.mrb[0].mxu0
        %v2906 = vadd.f32 %v2802, %v2905
        %2907 = vdwg.mxu0
        %v2908 = vand.u32 %v222, 4294901760
        %2909 = vmatprep.subr.mxu0 %v2908
        %v2910 = vand.u32 %v221, 4294901760
        %2911 = vmatpush1.msra.mxu0 %v2910
        %v2912 = vand.u32 %v230, 4294901760
        %2913 = vmatprep.subr.mxu0 %v2912
        %v2914 = vand.u32 %v229, 4294901760
        %2915 = vmatpush1.msra.mxu0 %v2914
        %v2916 = vand.u32 %v238, 4294901760
        %2917 = vmatprep.subr.mxu0 %v2916
        %v2918 = vand.u32 %v237, 4294901760
        %2919 = vmatpush1.msra.mxu0 %v2918
        %v2920 = vand.u32 %v246, 4294901760
        %2921 = vmatprep.subr.mxu0 %v2920
        %v2922 = vand.u32 %v245, 4294901760
        %2923 = vmatpush1.msra.mxu0 %v2922
        %v2924 = vand.u32 %v254, 4294901760
        %2925 = vmatprep.subr.mxu0 %v2924
        %v2926 = vand.u32 %v253, 4294901760
        %2927 = vmatpush1.msra.mxu0 %v2926
        %v2928 = vand.u32 %v262, 4294901760
        %2929 = vmatprep.subr.mxu0 %v2928
        %v2930 = vand.u32 %v261, 4294901760
        %2931 = vmatpush1.msra.mxu0 %v2930
        %v2932 = vand.u32 %v270, 4294901760
        %2933 = vmatprep.subr.mxu0 %v2932
        %v2934 = vand.u32 %v269, 4294901760
        %2935 = vmatpush1.msra.mxu0 %v2934
        %v2936 = vand.u32 %v278, 4294901760
        %2937 = vmatprep.subr.mxu0 %v2936
        %v2938 = vand.u32 %v277, 4294901760
        %2939 = vmatpush1.msra.mxu0 %v2938
        %v2940 = vand.u32 %v286, 4294901760
        %2941 = vmatprep.subr.mxu0 %v2940
        %v2942 = vand.u32 %v285, 4294901760
        %2943 = vmatpush1.msra.mxu0 %v2942
        %v2944 = vand.u32 %v294, 4294901760
        %2945 = vmatprep.subr.mxu0 %v2944
        %v2946 = vand.u32 %v293, 4294901760
        %2947 = vmatpush1.msra.mxu0 %v2946
        %v2948 = vand.u32 %v302, 4294901760
        %2949 = vmatprep.subr.mxu0 %v2948
        %v2950 = vand.u32 %v301, 4294901760
        %2951 = vmatpush1.msra.mxu0 %v2950
        %v2952 = vand.u32 %v310, 4294901760
        %2953 = vmatprep.subr.mxu0 %v2952
        %v2954 = vand.u32 %v309, 4294901760
        %2955 = vmatpush1.msra.mxu0 %v2954
        %v2956 = vand.u32 %v318, 4294901760
        %2957 = vmatprep.subr.mxu0 %v2956
        %v2958 = vand.u32 %v317, 4294901760
        %2959 = vmatpush1.msra.mxu0 %v2958
        %v2960 = vand.u32 %v326, 4294901760
        %2961 = vmatprep.subr.mxu0 %v2960
        %v2962 = vand.u32 %v325, 4294901760
        %2963 = vmatpush1.msra.mxu0 %v2962
        %v2964 = vand.u32 %v334, 4294901760
        %2965 = vmatprep.subr.mxu0 %v2964
        %v2966 = vand.u32 %v333, 4294901760
        %2967 = vmatpush1.msra.mxu0 %v2966
        %v2968 = vand.u32 %v342, 4294901760
        %2969 = vmatprep.subr.mxu0 %v2968
        %v2970 = vand.u32 %v341, 4294901760
        %2971 = vmatpush1.msra.mxu0 %v2970
        %2972 = vmatprep.subr.mxu0 0.0
        %2973 = vmatpush1.msra.mxu0 0.0
        %2974 = vmatprep.subr.mxu0 0.0
        %2975 = vmatpush1.msra.mxu0 0.0
        %2976 = vmatprep.subr.mxu0 0.0
        %2977 = vmatpush1.msra.mxu0 0.0
        %2978 = vmatprep.subr.mxu0 0.0
        %2979 = vmatpush1.msra.mxu0 0.0
        %2980 = vmatprep.subr.mxu0 0.0
        %2981 = vmatpush1.msra.mxu0 0.0
        %2982 = vmatprep.subr.mxu0 0.0
        %2983 = vmatpush1.msra.mxu0 0.0
        %2984 = vmatprep.subr.mxu0 0.0
        %2985 = vmatpush1.msra.mxu0 0.0
        %2986 = vmatprep.subr.mxu0 0.0
        %2987 = vmatpush1.msra.mxu0 0.0
        %2988 = vmatprep.subr.mxu0 0.0
        %2989 = vmatpush1.msra.mxu0 0.0
        %2990 = vmatprep.subr.mxu0 0.0
        %2991 = vmatpush1.msra.mxu0 0.0
        %2992 = vmatprep.subr.mxu0 0.0
        %2993 = vmatpush1.msra.mxu0 0.0
        %2994 = vmatprep.subr.mxu0 0.0
        %2995 = vmatpush1.msra.mxu0 0.0
        %2996 = vmatprep.subr.mxu0 0.0
        %2997 = vmatpush1.msra.mxu0 0.0
        %2998 = vmatprep.subr.mxu0 0.0
        %2999 = vmatpush1.msra.mxu0 0.0
        %3000 = vmatprep.subr.mxu0 0.0
        %3001 = vmatpush1.msra.mxu0 0.0
        %3002 = vmatprep.subr.mxu0 0.0
        %3003 = vmatpush1.msra.mxu0 0.0
        %3004 = vmatprep.mubr.f32.mxu0 0.0
        %v3005 = vand.u32 %v214, 4294901760
        %v3006 = vsub.f32 %v214, %v3005
        %v3007 = vand.u32 %v3006, 4294901760
        %v3008 = vsub.f32 %v3006, %v3007
        %v3009 = vand.u32 %v3008, 4294901760
        %3010 = vmatmul.mubr.f32.gmra.mrb[0].mxu0 %v3009
        %v3011 = vpop.f32.mrb[0].mxu0
        %v3012 = vadd.f32 0.0, %v3011
        %v3013 = vpop.f32.mrb[0].mxu0
        %v3014 = vadd.f32 0.0, %v3013
        %3015 = vdwg.mxu0
        %v3016 = vand.u32 %v222, 4294901760
        %v3017 = vsub.f32 %v222, %v3016
        %v3018 = vand.u32 %v3017, 4294901760
        %v3019 = vsub.f32 %v3017, %v3018
        %v3020 = vand.u32 %v3019, 4294901760
        %3021 = vmatprep.subr.mxu0 %v3020
        %v3022 = vand.u32 %v221, 4294901760
        %v3023 = vsub.f32 %v221, %v3022
        %v3024 = vand.u32 %v3023, 4294901760
        %v3025 = vsub.f32 %v3023, %v3024
        %v3026 = vand.u32 %v3025, 4294901760
        %3027 = vmatpush1.msra.mxu0 %v3026
        %v3028 = vand.u32 %v230, 4294901760
        %v3029 = vsub.f32 %v230, %v3028
        %v3030 = vand.u32 %v3029, 4294901760
        %v3031 = vsub.f32 %v3029, %v3030
        %v3032 = vand.u32 %v3031, 4294901760
        %3033 = vmatprep.subr.mxu0 %v3032
        %v3034 = vand.u32 %v229, 4294901760
        %v3035 = vsub.f32 %v229, %v3034
        %v3036 = vand.u32 %v3035, 4294901760
        %v3037 = vsub.f32 %v3035, %v3036
        %v3038 = vand.u32 %v3037, 4294901760
        %3039 = vmatpush1.msra.mxu0 %v3038
        %v3040 = vand.u32 %v238, 4294901760
        %v3041 = vsub.f32 %v238, %v3040
        %v3042 = vand.u32 %v3041, 4294901760
        %v3043 = vsub.f32 %v3041, %v3042
        %v3044 = vand.u32 %v3043, 4294901760
        %3045 = vmatprep.subr.mxu0 %v3044
        %v3046 = vand.u32 %v237, 4294901760
        %v3047 = vsub.f32 %v237, %v3046
        %v3048 = vand.u32 %v3047, 4294901760
        %v3049 = vsub.f32 %v3047, %v3048
        %v3050 = vand.u32 %v3049, 4294901760
        %3051 = vmatpush1.msra.mxu0 %v3050
        %v3052 = vand.u32 %v246, 4294901760
        %v3053 = vsub.f32 %v246, %v3052
        %v3054 = vand.u32 %v3053, 4294901760
        %v3055 = vsub.f32 %v3053, %v3054
        %v3056 = vand.u32 %v3055, 4294901760
        %3057 = vmatprep.subr.mxu0 %v3056
        %v3058 = vand.u32 %v245, 4294901760
        %v3059 = vsub.f32 %v245, %v3058
        %v3060 = vand.u32 %v3059, 4294901760
        %v3061 = vsub.f32 %v3059, %v3060
        %v3062 = vand.u32 %v3061, 4294901760
        %3063 = vmatpush1.msra.mxu0 %v3062
        %v3064 = vand.u32 %v254, 4294901760
        %v3065 = vsub.f32 %v254, %v3064
        %v3066 = vand.u32 %v3065, 4294901760
        %v3067 = vsub.f32 %v3065, %v3066
        %v3068 = vand.u32 %v3067, 4294901760
        %3069 = vmatprep.subr.mxu0 %v3068
        %v3070 = vand.u32 %v253, 4294901760
        %v3071 = vsub.f32 %v253, %v3070
        %v3072 = vand.u32 %v3071, 4294901760
        %v3073 = vsub.f32 %v3071, %v3072
        %v3074 = vand.u32 %v3073, 4294901760
        %3075 = vmatpush1.msra.mxu0 %v3074
        %v3076 = vand.u32 %v262, 4294901760
        %v3077 = vsub.f32 %v262, %v3076
        %v3078 = vand.u32 %v3077, 4294901760
        %v3079 = vsub.f32 %v3077, %v3078
        %v3080 = vand.u32 %v3079, 4294901760
        %3081 = vmatprep.subr.mxu0 %v3080
        %v3082 = vand.u32 %v261, 4294901760
        %v3083 = vsub.f32 %v261, %v3082
        %v3084 = vand.u32 %v3083, 4294901760
        %v3085 = vsub.f32 %v3083, %v3084
        %v3086 = vand.u32 %v3085, 4294901760
        %3087 = vmatpush1.msra.mxu0 %v3086
        %v3088 = vand.u32 %v270, 4294901760
        %v3089 = vsub.f32 %v270, %v3088
        %v3090 = vand.u32 %v3089, 4294901760
        %v3091 = vsub.f32 %v3089, %v3090
        %v3092 = vand.u32 %v3091, 4294901760
        %3093 = vmatprep.subr.mxu0 %v3092
        %v3094 = vand.u32 %v269, 4294901760
        %v3095 = vsub.f32 %v269, %v3094
        %v3096 = vand.u32 %v3095, 4294901760
        %v3097 = vsub.f32 %v3095, %v3096
        %v3098 = vand.u32 %v3097, 4294901760
        %3099 = vmatpush1.msra.mxu0 %v3098
        %v3100 = vand.u32 %v278, 4294901760
        %v3101 = vsub.f32 %v278, %v3100
        %v3102 = vand.u32 %v3101, 4294901760
        %v3103 = vsub.f32 %v3101, %v3102
        %v3104 = vand.u32 %v3103, 4294901760
        %3105 = vmatprep.subr.mxu0 %v3104
        %v3106 = vand.u32 %v277, 4294901760
        %v3107 = vsub.f32 %v277, %v3106
        %v3108 = vand.u32 %v3107, 4294901760
        %v3109 = vsub.f32 %v3107, %v3108
        %v3110 = vand.u32 %v3109, 4294901760
        %3111 = vmatpush1.msra.mxu0 %v3110
        %v3112 = vand.u32 %v286, 4294901760
        %v3113 = vsub.f32 %v286, %v3112
        %v3114 = vand.u32 %v3113, 4294901760
        %v3115 = vsub.f32 %v3113, %v3114
        %v3116 = vand.u32 %v3115, 4294901760
        %3117 = vmatprep.subr.mxu0 %v3116
        %v3118 = vand.u32 %v285, 4294901760
        %v3119 = vsub.f32 %v285, %v3118
        %v3120 = vand.u32 %v3119, 4294901760
        %v3121 = vsub.f32 %v3119, %v3120
        %v3122 = vand.u32 %v3121, 4294901760
        %3123 = vmatpush1.msra.mxu0 %v3122
        %v3124 = vand.u32 %v294, 4294901760
        %v3125 = vsub.f32 %v294, %v3124
        %v3126 = vand.u32 %v3125, 4294901760
        %v3127 = vsub.f32 %v3125, %v3126
        %v3128 = vand.u32 %v3127, 4294901760
        %3129 = vmatprep.subr.mxu0 %v3128
        %v3130 = vand.u32 %v293, 4294901760
        %v3131 = vsub.f32 %v293, %v3130
        %v3132 = vand.u32 %v3131, 4294901760
        %v3133 = vsub.f32 %v3131, %v3132
        %v3134 = vand.u32 %v3133, 4294901760
        %3135 = vmatpush1.msra.mxu0 %v3134
        %v3136 = vand.u32 %v302, 4294901760
        %v3137 = vsub.f32 %v302, %v3136
        %v3138 = vand.u32 %v3137, 4294901760
        %v3139 = vsub.f32 %v3137, %v3138
        %v3140 = vand.u32 %v3139, 4294901760
        %3141 = vmatprep.subr.mxu0 %v3140
        %v3142 = vand.u32 %v301, 4294901760
        %v3143 = vsub.f32 %v301, %v3142
        %v3144 = vand.u32 %v3143, 4294901760
        %v3145 = vsub.f32 %v3143, %v3144
        %v3146 = vand.u32 %v3145, 4294901760
        %3147 = vmatpush1.msra.mxu0 %v3146
        %v3148 = vand.u32 %v310, 4294901760
        %v3149 = vsub.f32 %v310, %v3148
        %v3150 = vand.u32 %v3149, 4294901760
        %v3151 = vsub.f32 %v3149, %v3150
        %v3152 = vand.u32 %v3151, 4294901760
        %3153 = vmatprep.subr.mxu0 %v3152
        %v3154 = vand.u32 %v309, 4294901760
        %v3155 = vsub.f32 %v309, %v3154
        %v3156 = vand.u32 %v3155, 4294901760
        %v3157 = vsub.f32 %v3155, %v3156
        %v3158 = vand.u32 %v3157, 4294901760
        %3159 = vmatpush1.msra.mxu0 %v3158
        %v3160 = vand.u32 %v318, 4294901760
        %v3161 = vsub.f32 %v318, %v3160
        %v3162 = vand.u32 %v3161, 4294901760
        %v3163 = vsub.f32 %v3161, %v3162
        %v3164 = vand.u32 %v3163, 4294901760
        %3165 = vmatprep.subr.mxu0 %v3164
        %v3166 = vand.u32 %v317, 4294901760
        %v3167 = vsub.f32 %v317, %v3166
        %v3168 = vand.u32 %v3167, 4294901760
        %v3169 = vsub.f32 %v3167, %v3168
        %v3170 = vand.u32 %v3169, 4294901760
        %3171 = vmatpush1.msra.mxu0 %v3170
        %v3172 = vand.u32 %v326, 4294901760
        %v3173 = vsub.f32 %v326, %v3172
        %v3174 = vand.u32 %v3173, 4294901760
        %v3175 = vsub.f32 %v3173, %v3174
        %v3176 = vand.u32 %v3175, 4294901760
        %3177 = vmatprep.subr.mxu0 %v3176
        %v3178 = vand.u32 %v325, 4294901760
        %v3179 = vsub.f32 %v325, %v3178
        %v3180 = vand.u32 %v3179, 4294901760
        %v3181 = vsub.f32 %v3179, %v3180
        %v3182 = vand.u32 %v3181, 4294901760
        %3183 = vmatpush1.msra.mxu0 %v3182
        %v3184 = vand.u32 %v334, 4294901760
        %v3185 = vsub.f32 %v334, %v3184
        %v3186 = vand.u32 %v3185, 4294901760
        %v3187 = vsub.f32 %v3185, %v3186
        %v3188 = vand.u32 %v3187, 4294901760
        %3189 = vmatprep.subr.mxu0 %v3188
        %v3190 = vand.u32 %v333, 4294901760
        %v3191 = vsub.f32 %v333, %v3190
        %v3192 = vand.u32 %v3191, 4294901760
        %v3193 = vsub.f32 %v3191, %v3192
        %v3194 = vand.u32 %v3193, 4294901760
        %3195 = vmatpush1.msra.mxu0 %v3194
        %v3196 = vand.u32 %v342, 4294901760
        %v3197 = vsub.f32 %v342, %v3196
        %v3198 = vand.u32 %v3197, 4294901760
        %v3199 = vsub.f32 %v3197, %v3198
        %v3200 = vand.u32 %v3199, 4294901760
        %3201 = vmatprep.subr.mxu0 %v3200
        %v3202 = vand.u32 %v341, 4294901760
        %v3203 = vsub.f32 %v341, %v3202
        %v3204 = vand.u32 %v3203, 4294901760
        %v3205 = vsub.f32 %v3203, %v3204
        %v3206 = vand.u32 %v3205, 4294901760
        %3207 = vmatpush1.msra.mxu0 %v3206
        %3208 = vmatprep.subr.mxu0 0.0
        %3209 = vmatpush1.msra.mxu0 0.0
        %3210 = vmatprep.subr.mxu0 0.0
        %3211 = vmatpush1.msra.mxu0 0.0
        %3212 = vmatprep.subr.mxu0 0.0
        %3213 = vmatpush1.msra.mxu0 0.0
        %3214 = vmatprep.subr.mxu0 0.0
        %3215 = vmatpush1.msra.mxu0 0.0
        %3216 = vmatprep.subr.mxu0 0.0
        %3217 = vmatpush1.msra.mxu0 0.0
        %3218 = vmatprep.subr.mxu0 0.0
        %3219 = vmatpush1.msra.mxu0 0.0
        %3220 = vmatprep.subr.mxu0 0.0
        %3221 = vmatpush1.msra.mxu0 0.0
        %3222 = vmatprep.subr.mxu0 0.0
        %3223 = vmatpush1.msra.mxu0 0.0
        %3224 = vmatprep.subr.mxu0 0.0
        %3225 = vmatpush1.msra.mxu0 0.0
        %3226 = vmatprep.subr.mxu0 0.0
        %3227 = vmatpush1.msra.mxu0 0.0
        %3228 = vmatprep.subr.mxu0 0.0
        %3229 = vmatpush1.msra.mxu0 0.0
        %3230 = vmatprep.subr.mxu0 0.0
        %3231 = vmatpush1.msra.mxu0 0.0
        %3232 = vmatprep.subr.mxu0 0.0
        %3233 = vmatpush1.msra.mxu0 0.0
        %3234 = vmatprep.subr.mxu0 0.0
        %3235 = vmatpush1.msra.mxu0 0.0
        %3236 = vmatprep.subr.mxu0 0.0
        %3237 = vmatpush1.msra.mxu0 0.0
        %3238 = vmatprep.subr.mxu0 0.0
        %3239 = vmatpush1.msra.mxu0 0.0
        %3240 = vmatprep.mubr.f32.mxu0 0.0
        %v3241 = vand.u32 %v214, 4294901760
        %3242 = vmatmul.mubr.f32.gmra.mrb[0].mxu0 %v3241
        %v3243 = vpop.f32.mrb[0].mxu0
        %v3244 = vadd.f32 %v3012, %v3243
        %v3245 = vpop.f32.mrb[0].mxu0
        %v3246 = vadd.f32 %v3014, %v3245
        %3247 = vdwg.mxu0
        %v3248 = vand.u32 %v222, 4294901760
        %v3249 = vsub.f32 %v222, %v3248
        %3250 = vmatprep.subr.mxu0 %v3249
        %v3251 = vand.u32 %v221, 4294901760
        %v3252 = vsub.f32 %v221, %v3251
        %3253 = vmatpush1.msra.mxu0 %v3252
        %v3254 = vand.u32 %v230, 4294901760
        %v3255 = vsub.f32 %v230, %v3254
        %3256 = vmatprep.subr.mxu0 %v3255
        %v3257 = vand.u32 %v229, 4294901760
        %v3258 = vsub.f32 %v229, %v3257
        %3259 = vmatpush1.msra.mxu0 %v3258
        %v3260 = vand.u32 %v238, 4294901760
        %v3261 = vsub.f32 %v238, %v3260
        %3262 = vmatprep.subr.mxu0 %v3261
        %v3263 = vand.u32 %v237, 4294901760
        %v3264 = vsub.f32 %v237, %v3263
        %3265 = vmatpush1.msra.mxu0 %v3264
        %v3266 = vand.u32 %v246, 4294901760
        %v3267 = vsub.f32 %v246, %v3266
        %3268 = vmatprep.subr.mxu0 %v3267
        %v3269 = vand.u32 %v245, 4294901760
        %v3270 = vsub.f32 %v245, %v3269
        %3271 = vmatpush1.msra.mxu0 %v3270
        %v3272 = vand.u32 %v254, 4294901760
        %v3273 = vsub.f32 %v254, %v3272
        %3274 = vmatprep.subr.mxu0 %v3273
        %v3275 = vand.u32 %v253, 4294901760
        %v3276 = vsub.f32 %v253, %v3275
        %3277 = vmatpush1.msra.mxu0 %v3276
        %v3278 = vand.u32 %v262, 4294901760
        %v3279 = vsub.f32 %v262, %v3278
        %3280 = vmatprep.subr.mxu0 %v3279
        %v3281 = vand.u32 %v261, 4294901760
        %v3282 = vsub.f32 %v261, %v3281
        %3283 = vmatpush1.msra.mxu0 %v3282
        %v3284 = vand.u32 %v270, 4294901760
        %v3285 = vsub.f32 %v270, %v3284
        %3286 = vmatprep.subr.mxu0 %v3285
        %v3287 = vand.u32 %v269, 4294901760
        %v3288 = vsub.f32 %v269, %v3287
        %3289 = vmatpush1.msra.mxu0 %v3288
        %v3290 = vand.u32 %v278, 4294901760
        %v3291 = vsub.f32 %v278, %v3290
        %3292 = vmatprep.subr.mxu0 %v3291
        %v3293 = vand.u32 %v277, 4294901760
        %v3294 = vsub.f32 %v277, %v3293
        %3295 = vmatpush1.msra.mxu0 %v3294
        %v3296 = vand.u32 %v286, 4294901760
        %v3297 = vsub.f32 %v286, %v3296
        %3298 = vmatprep.subr.mxu0 %v3297
        %v3299 = vand.u32 %v285, 4294901760
        %v3300 = vsub.f32 %v285, %v3299
        %3301 = vmatpush1.msra.mxu0 %v3300
        %v3302 = vand.u32 %v294, 4294901760
        %v3303 = vsub.f32 %v294, %v3302
        %3304 = vmatprep.subr.mxu0 %v3303
        %v3305 = vand.u32 %v293, 4294901760
        %v3306 = vsub.f32 %v293, %v3305
        %3307 = vmatpush1.msra.mxu0 %v3306
        %v3308 = vand.u32 %v302, 4294901760
        %v3309 = vsub.f32 %v302, %v3308
        %3310 = vmatprep.subr.mxu0 %v3309
        %v3311 = vand.u32 %v301, 4294901760
        %v3312 = vsub.f32 %v301, %v3311
        %3313 = vmatpush1.msra.mxu0 %v3312
        %v3314 = vand.u32 %v310, 4294901760
        %v3315 = vsub.f32 %v310, %v3314
        %3316 = vmatprep.subr.mxu0 %v3315
        %v3317 = vand.u32 %v309, 4294901760
        %v3318 = vsub.f32 %v309, %v3317
        %3319 = vmatpush1.msra.mxu0 %v3318
        %v3320 = vand.u32 %v318, 4294901760
        %v3321 = vsub.f32 %v318, %v3320
        %3322 = vmatprep.subr.mxu0 %v3321
        %v3323 = vand.u32 %v317, 4294901760
        %v3324 = vsub.f32 %v317, %v3323
        %3325 = vmatpush1.msra.mxu0 %v3324
        %v3326 = vand.u32 %v326, 4294901760
        %v3327 = vsub.f32 %v326, %v3326
        %3328 = vmatprep.subr.mxu0 %v3327
        %v3329 = vand.u32 %v325, 4294901760
        %v3330 = vsub.f32 %v325, %v3329
        %3331 = vmatpush1.msra.mxu0 %v3330
        %v3332 = vand.u32 %v334, 4294901760
        %v3333 = vsub.f32 %v334, %v3332
        %3334 = vmatprep.subr.mxu0 %v3333
        %v3335 = vand.u32 %v333, 4294901760
        %v3336 = vsub.f32 %v333, %v3335
        %3337 = vmatpush1.msra.mxu0 %v3336
        %v3338 = vand.u32 %v342, 4294901760
        %v3339 = vsub.f32 %v342, %v3338
        %3340 = vmatprep.subr.mxu0 %v3339
        %v3341 = vand.u32 %v341, 4294901760
        %v3342 = vsub.f32 %v341, %v3341
        %3343 = vmatpush1.msra.mxu0 %v3342
        %3344 = vmatprep.subr.mxu0 0.0
        %3345 = vmatpush1.msra.mxu0 0.0
        %3346 = vmatprep.subr.mxu0 0.0
        %3347 = vmatpush1.msra.mxu0 0.0
        %3348 = vmatprep.subr.mxu0 0.0
        %3349 = vmatpush1.msra.mxu0 0.0
        %3350 = vmatprep.subr.mxu0 0.0
        %3351 = vmatpush1.msra.mxu0 0.0
        %3352 = vmatprep.subr.mxu0 0.0
        %3353 = vmatpush1.msra.mxu0 0.0
        %3354 = vmatprep.subr.mxu0 0.0
        %3355 = vmatpush1.msra.mxu0 0.0
        %3356 = vmatprep.subr.mxu0 0.0
        %3357 = vmatpush1.msra.mxu0 0.0
        %3358 = vmatprep.subr.mxu0 0.0
        %3359 = vmatpush1.msra.mxu0 0.0
        %3360 = vmatprep.subr.mxu0 0.0
        %3361 = vmatpush1.msra.mxu0 0.0
        %3362 = vmatprep.subr.mxu0 0.0
        %3363 = vmatpush1.msra.mxu0 0.0
        %3364 = vmatprep.subr.mxu0 0.0
        %3365 = vmatpush1.msra.mxu0 0.0
        %3366 = vmatprep.subr.mxu0 0.0
        %3367 = vmatpush1.msra.mxu0 0.0
        %3368 = vmatprep.subr.mxu0 0.0
        %3369 = vmatpush1.msra.mxu0 0.0
        %3370 = vmatprep.subr.mxu0 0.0
        %3371 = vmatpush1.msra.mxu0 0.0
        %3372 = vmatprep.subr.mxu0 0.0
        %3373 = vmatpush1.msra.mxu0 0.0
        %3374 = vmatprep.subr.mxu0 0.0
        %3375 = vmatpush1.msra.mxu0 0.0
        %3376 = vmatprep.mubr.f32.mxu0 0.0
        %v3377 = vand.u32 %v214, 4294901760
        %v3378 = vsub.f32 %v214, %v3377
        %3379 = vmatmul.mubr.f32.gmra.mrb[0].mxu0 %v3378
        %v3380 = vpop.f32.mrb[0].mxu0
        %v3381 = vadd.f32 %v3244, %v3380
        %v3382 = vpop.f32.mrb[0].mxu0
        %v3383 = vadd.f32 %v3246, %v3382
        %3384 = vdwg.mxu0
        %v3385 = vand.u32 %v222, 4294901760
        %3386 = vmatprep.subr.mxu0 %v3385
        %v3387 = vand.u32 %v221, 4294901760
        %3388 = vmatpush1.msra.mxu0 %v3387
        %v3389 = vand.u32 %v230, 4294901760
        %3390 = vmatprep.subr.mxu0 %v3389
        %v3391 = vand.u32 %v229, 4294901760
        %3392 = vmatpush1.msra.mxu0 %v3391
        %v3393 = vand.u32 %v238, 4294901760
        %3394 = vmatprep.subr.mxu0 %v3393
        %v3395 = vand.u32 %v237, 4294901760
        %3396 = vmatpush1.msra.mxu0 %v3395
        %v3397 = vand.u32 %v246, 4294901760
        %3398 = vmatprep.subr.mxu0 %v3397
        %v3399 = vand.u32 %v245, 4294901760
        %3400 = vmatpush1.msra.mxu0 %v3399
        %v3401 = vand.u32 %v254, 4294901760
        %3402 = vmatprep.subr.mxu0 %v3401
        %v3403 = vand.u32 %v253, 4294901760
        %3404 = vmatpush1.msra.mxu0 %v3403
        %v3405 = vand.u32 %v262, 4294901760
        %3406 = vmatprep.subr.mxu0 %v3405
        %v3407 = vand.u32 %v261, 4294901760
        %3408 = vmatpush1.msra.mxu0 %v3407
        %v3409 = vand.u32 %v270, 4294901760
        %3410 = vmatprep.subr.mxu0 %v3409
        %v3411 = vand.u32 %v269, 4294901760
        %3412 = vmatpush1.msra.mxu0 %v3411
        %v3413 = vand.u32 %v278, 4294901760
        %3414 = vmatprep.subr.mxu0 %v3413
        %v3415 = vand.u32 %v277, 4294901760
        %3416 = vmatpush1.msra.mxu0 %v3415
        %v3417 = vand.u32 %v286, 4294901760
        %3418 = vmatprep.subr.mxu0 %v3417
        %v3419 = vand.u32 %v285, 4294901760
        %3420 = vmatpush1.msra.mxu0 %v3419
        %v3421 = vand.u32 %v294, 4294901760
        %3422 = vmatprep.subr.mxu0 %v3421
        %v3423 = vand.u32 %v293, 4294901760
        %3424 = vmatpush1.msra.mxu0 %v3423
        %v3425 = vand.u32 %v302, 4294901760
        %3426 = vmatprep.subr.mxu0 %v3425
        %v3427 = vand.u32 %v301, 4294901760
        %3428 = vmatpush1.msra.mxu0 %v3427
        %v3429 = vand.u32 %v310, 4294901760
        %3430 = vmatprep.subr.mxu0 %v3429
        %v3431 = vand.u32 %v309, 4294901760
        %3432 = vmatpush1.msra.mxu0 %v3431
        %v3433 = vand.u32 %v318, 4294901760
        %3434 = vmatprep.subr.mxu0 %v3433
        %v3435 = vand.u32 %v317, 4294901760
        %3436 = vmatpush1.msra.mxu0 %v3435
        %v3437 = vand.u32 %v326, 4294901760
        %3438 = vmatprep.subr.mxu0 %v3437
        %v3439 = vand.u32 %v325, 4294901760
        %3440 = vmatpush1.msra.mxu0 %v3439
        %v3441 = vand.u32 %v334, 4294901760
        %3442 = vmatprep.subr.mxu0 %v3441
        %v3443 = vand.u32 %v333, 4294901760
        %3444 = vmatpush1.msra.mxu0 %v3443
        %v3445 = vand.u32 %v342, 4294901760
        %3446 = vmatprep.subr.mxu0 %v3445
        %v3447 = vand.u32 %v341, 4294901760
        %3448 = vmatpush1.msra.mxu0 %v3447
        %3449 = vmatprep.subr.mxu0 0.0
        %3450 = vmatpush1.msra.mxu0 0.0
        %3451 = vmatprep.subr.mxu0 0.0
        %3452 = vmatpush1.msra.mxu0 0.0
        %3453 = vmatprep.subr.mxu0 0.0
        %3454 = vmatpush1.msra.mxu0 0.0
        %3455 = vmatprep.subr.mxu0 0.0
        %3456 = vmatpush1.msra.mxu0 0.0
        %3457 = vmatprep.subr.mxu0 0.0
        %3458 = vmatpush1.msra.mxu0 0.0
        %3459 = vmatprep.subr.mxu0 0.0
        %3460 = vmatpush1.msra.mxu0 0.0
        %3461 = vmatprep.subr.mxu0 0.0
        %3462 = vmatpush1.msra.mxu0 0.0
        %3463 = vmatprep.subr.mxu0 0.0
        %3464 = vmatpush1.msra.mxu0 0.0
        %3465 = vmatprep.subr.mxu0 0.0
        %3466 = vmatpush1.msra.mxu0 0.0
        %3467 = vmatprep.subr.mxu0 0.0
        %3468 = vmatpush1.msra.mxu0 0.0
        %3469 = vmatprep.subr.mxu0 0.0
        %3470 = vmatpush1.msra.mxu0 0.0
        %3471 = vmatprep.subr.mxu0 0.0
        %3472 = vmatpush1.msra.mxu0 0.0
        %3473 = vmatprep.subr.mxu0 0.0
        %3474 = vmatpush1.msra.mxu0 0.0
        %3475 = vmatprep.subr.mxu0 0.0
        %3476 = vmatpush1.msra.mxu0 0.0
        %3477 = vmatprep.subr.mxu0 0.0
        %3478 = vmatpush1.msra.mxu0 0.0
        %3479 = vmatprep.subr.mxu0 0.0
        %3480 = vmatpush1.msra.mxu0 0.0
        %3481 = vmatprep.mubr.f32.mxu0 0.0
        %v3482 = vand.u32 %v214, 4294901760
        %v3483 = vsub.f32 %v214, %v3482
        %v3484 = vand.u32 %v3483, 4294901760
        %3485 = vmatmul.mubr.f32.gmra.mrb[0].mxu0 %v3484
        %v3486 = vpop.f32.mrb[0].mxu0
        %v3487 = vadd.f32 %v3381, %v3486
        %v3488 = vpop.f32.mrb[0].mxu0
        %v3489 = vadd.f32 %v3383, %v3488
        %3490 = vdwg.mxu0
        %v3491 = vand.u32 %v222, 4294901760
        %v3492 = vsub.f32 %v222, %v3491
        %v3493 = vand.u32 %v3492, 4294901760
        %3494 = vmatprep.subr.mxu0 %v3493
        %v3495 = vand.u32 %v221, 4294901760
        %v3496 = vsub.f32 %v221, %v3495
        %v3497 = vand.u32 %v3496, 4294901760
        %3498 = vmatpush1.msra.mxu0 %v3497
        %v3499 = vand.u32 %v230, 4294901760
        %v3500 = vsub.f32 %v230, %v3499
        %v3501 = vand.u32 %v3500, 4294901760
        %3502 = vmatprep.subr.mxu0 %v3501
        %v3503 = vand.u32 %v229, 4294901760
        %v3504 = vsub.f32 %v229, %v3503
        %v3505 = vand.u32 %v3504, 4294901760
        %3506 = vmatpush1.msra.mxu0 %v3505
        %v3507 = vand.u32 %v238, 4294901760
        %v3508 = vsub.f32 %v238, %v3507
        %v3509 = vand.u32 %v3508, 4294901760
        %3510 = vmatprep.subr.mxu0 %v3509
        %v3511 = vand.u32 %v237, 4294901760
        %v3512 = vsub.f32 %v237, %v3511
        %v3513 = vand.u32 %v3512, 4294901760
        %3514 = vmatpush1.msra.mxu0 %v3513
        %v3515 = vand.u32 %v246, 4294901760
        %v3516 = vsub.f32 %v246, %v3515
        %v3517 = vand.u32 %v3516, 4294901760
        %3518 = vmatprep.subr.mxu0 %v3517
        %v3519 = vand.u32 %v245, 4294901760
        %v3520 = vsub.f32 %v245, %v3519
        %v3521 = vand.u32 %v3520, 4294901760
        %3522 = vmatpush1.msra.mxu0 %v3521
        %v3523 = vand.u32 %v254, 4294901760
        %v3524 = vsub.f32 %v254, %v3523
        %v3525 = vand.u32 %v3524, 4294901760
        %3526 = vmatprep.subr.mxu0 %v3525
        %v3527 = vand.u32 %v253, 4294901760
        %v3528 = vsub.f32 %v253, %v3527
        %v3529 = vand.u32 %v3528, 4294901760
        %3530 = vmatpush1.msra.mxu0 %v3529
        %v3531 = vand.u32 %v262, 4294901760
        %v3532 = vsub.f32 %v262, %v3531
        %v3533 = vand.u32 %v3532, 4294901760
        %3534 = vmatprep.subr.mxu0 %v3533
        %v3535 = vand.u32 %v261, 4294901760
        %v3536 = vsub.f32 %v261, %v3535
        %v3537 = vand.u32 %v3536, 4294901760
        %3538 = vmatpush1.msra.mxu0 %v3537
        %v3539 = vand.u32 %v270, 4294901760
        %v3540 = vsub.f32 %v270, %v3539
        %v3541 = vand.u32 %v3540, 4294901760
        %3542 = vmatprep.subr.mxu0 %v3541
        %v3543 = vand.u32 %v269, 4294901760
        %v3544 = vsub.f32 %v269, %v3543
        %v3545 = vand.u32 %v3544, 4294901760
        %3546 = vmatpush1.msra.mxu0 %v3545
        %v3547 = vand.u32 %v278, 4294901760
        %v3548 = vsub.f32 %v278, %v3547
        %v3549 = vand.u32 %v3548, 4294901760
        %3550 = vmatprep.subr.mxu0 %v3549
        %v3551 = vand.u32 %v277, 4294901760
        %v3552 = vsub.f32 %v277, %v3551
        %v3553 = vand.u32 %v3552, 4294901760
        %3554 = vmatpush1.msra.mxu0 %v3553
        %v3555 = vand.u32 %v286, 4294901760
        %v3556 = vsub.f32 %v286, %v3555
        %v3557 = vand.u32 %v3556, 4294901760
        %3558 = vmatprep.subr.mxu0 %v3557
        %v3559 = vand.u32 %v285, 4294901760
        %v3560 = vsub.f32 %v285, %v3559
        %v3561 = vand.u32 %v3560, 4294901760
        %3562 = vmatpush1.msra.mxu0 %v3561
        %v3563 = vand.u32 %v294, 4294901760
        %v3564 = vsub.f32 %v294, %v3563
        %v3565 = vand.u32 %v3564, 4294901760
        %3566 = vmatprep.subr.mxu0 %v3565
        %v3567 = vand.u32 %v293, 4294901760
        %v3568 = vsub.f32 %v293, %v3567
        %v3569 = vand.u32 %v3568, 4294901760
        %3570 = vmatpush1.msra.mxu0 %v3569
        %v3571 = vand.u32 %v302, 4294901760
        %v3572 = vsub.f32 %v302, %v3571
        %v3573 = vand.u32 %v3572, 4294901760
        %3574 = vmatprep.subr.mxu0 %v3573
        %v3575 = vand.u32 %v301, 4294901760
        %v3576 = vsub.f32 %v301, %v3575
        %v3577 = vand.u32 %v3576, 4294901760
        %3578 = vmatpush1.msra.mxu0 %v3577
        %v3579 = vand.u32 %v310, 4294901760
        %v3580 = vsub.f32 %v310, %v3579
        %v3581 = vand.u32 %v3580, 4294901760
        %3582 = vmatprep.subr.mxu0 %v3581
        %v3583 = vand.u32 %v309, 4294901760
        %v3584 = vsub.f32 %v309, %v3583
        %v3585 = vand.u32 %v3584, 4294901760
        %3586 = vmatpush1.msra.mxu0 %v3585
        %v3587 = vand.u32 %v318, 4294901760
        %v3588 = vsub.f32 %v318, %v3587
        %v3589 = vand.u32 %v3588, 4294901760
        %3590 = vmatprep.subr.mxu0 %v3589
        %v3591 = vand.u32 %v317, 4294901760
        %v3592 = vsub.f32 %v317, %v3591
        %v3593 = vand.u32 %v3592, 4294901760
        %3594 = vmatpush1.msra.mxu0 %v3593
        %v3595 = vand.u32 %v326, 4294901760
        %v3596 = vsub.f32 %v326, %v3595
        %v3597 = vand.u32 %v3596, 4294901760
        %3598 = vmatprep.subr.mxu0 %v3597
        %v3599 = vand.u32 %v325, 4294901760
        %v3600 = vsub.f32 %v325, %v3599
        %v3601 = vand.u32 %v3600, 4294901760
        %3602 = vmatpush1.msra.mxu0 %v3601
        %v3603 = vand.u32 %v334, 4294901760
        %v3604 = vsub.f32 %v334, %v3603
        %v3605 = vand.u32 %v3604, 4294901760
        %3606 = vmatprep.subr.mxu0 %v3605
        %v3607 = vand.u32 %v333, 4294901760
        %v3608 = vsub.f32 %v333, %v3607
        %v3609 = vand.u32 %v3608, 4294901760
        %3610 = vmatpush1.msra.mxu0 %v3609
        %v3611 = vand.u32 %v342, 4294901760
        %v3612 = vsub.f32 %v342, %v3611
        %v3613 = vand.u32 %v3612, 4294901760
        %3614 = vmatprep.subr.mxu0 %v3613
        %v3615 = vand.u32 %v341, 4294901760
        %v3616 = vsub.f32 %v341, %v3615
        %v3617 = vand.u32 %v3616, 4294901760
        %3618 = vmatpush1.msra.mxu0 %v3617
        %3619 = vmatprep.subr.mxu0 0.0
        %3620 = vmatpush1.msra.mxu0 0.0
        %3621 = vmatprep.subr.mxu0 0.0
        %3622 = vmatpush1.msra.mxu0 0.0
        %3623 = vmatprep.subr.mxu0 0.0
        %3624 = vmatpush1.msra.mxu0 0.0
        %3625 = vmatprep.subr.mxu0 0.0
        %3626 = vmatpush1.msra.mxu0 0.0
        %3627 = vmatprep.subr.mxu0 0.0
        %3628 = vmatpush1.msra.mxu0 0.0
        %3629 = vmatprep.subr.mxu0 0.0
        %3630 = vmatpush1.msra.mxu0 0.0
        %3631 = vmatprep.subr.mxu0 0.0
        %3632 = vmatpush1.msra.mxu0 0.0
        %3633 = vmatprep.subr.mxu0 0.0
        %3634 = vmatpush1.msra.mxu0 0.0
        %3635 = vmatprep.subr.mxu0 0.0
        %3636 = vmatpush1.msra.mxu0 0.0
        %3637 = vmatprep.subr.mxu0 0.0
        %3638 = vmatpush1.msra.mxu0 0.0
        %3639 = vmatprep.subr.mxu0 0.0
        %3640 = vmatpush1.msra.mxu0 0.0
        %3641 = vmatprep.subr.mxu0 0.0
        %3642 = vmatpush1.msra.mxu0 0.0
        %3643 = vmatprep.subr.mxu0 0.0
        %3644 = vmatpush1.msra.mxu0 0.0
        %3645 = vmatprep.subr.mxu0 0.0
        %3646 = vmatpush1.msra.mxu0 0.0
        %3647 = vmatprep.subr.mxu0 0.0
        %3648 = vmatpush1.msra.mxu0 0.0
        %3649 = vmatprep.subr.mxu0 0.0
        %3650 = vmatpush1.msra.mxu0 0.0
        %3651 = vmatprep.mubr.f32.mxu0 0.0
        %v3652 = vand.u32 %v214, 4294901760
        %3653 = vmatmul.mubr.f32.gmra.mrb[0].mxu0 %v3652
        %v3654 = vpop.f32.mrb[0].mxu0
        %v3655 = vadd.f32 %v3487, %v3654
        %v3656 = vpop.f32.mrb[0].mxu0
        %v3657 = vadd.f32 %v3489, %v3656
        %3658 = vdwg.mxu0
        %v3659 = vand.u32 %v222, 4294901760
        %3660 = vmatprep.subr.mxu0 %v3659
        %v3661 = vand.u32 %v221, 4294901760
        %3662 = vmatpush1.msra.mxu0 %v3661
        %v3663 = vand.u32 %v230, 4294901760
        %3664 = vmatprep.subr.mxu0 %v3663
        %v3665 = vand.u32 %v229, 4294901760
        %3666 = vmatpush1.msra.mxu0 %v3665
        %v3667 = vand.u32 %v238, 4294901760
        %3668 = vmatprep.subr.mxu0 %v3667
        %v3669 = vand.u32 %v237, 4294901760
        %3670 = vmatpush1.msra.mxu0 %v3669
        %v3671 = vand.u32 %v246, 4294901760
        %3672 = vmatprep.subr.mxu0 %v3671
        %v3673 = vand.u32 %v245, 4294901760
        %3674 = vmatpush1.msra.mxu0 %v3673
        %v3675 = vand.u32 %v254, 4294901760
        %3676 = vmatprep.subr.mxu0 %v3675
        %v3677 = vand.u32 %v253, 4294901760
        %3678 = vmatpush1.msra.mxu0 %v3677
        %v3679 = vand.u32 %v262, 4294901760
        %3680 = vmatprep.subr.mxu0 %v3679
        %v3681 = vand.u32 %v261, 4294901760
        %3682 = vmatpush1.msra.mxu0 %v3681
        %v3683 = vand.u32 %v270, 4294901760
        %3684 = vmatprep.subr.mxu0 %v3683
        %v3685 = vand.u32 %v269, 4294901760
        %3686 = vmatpush1.msra.mxu0 %v3685
        %v3687 = vand.u32 %v278, 4294901760
        %3688 = vmatprep.subr.mxu0 %v3687
        %v3689 = vand.u32 %v277, 4294901760
        %3690 = vmatpush1.msra.mxu0 %v3689
        %v3691 = vand.u32 %v286, 4294901760
        %3692 = vmatprep.subr.mxu0 %v3691
        %v3693 = vand.u32 %v285, 4294901760
        %3694 = vmatpush1.msra.mxu0 %v3693
        %v3695 = vand.u32 %v294, 4294901760
        %3696 = vmatprep.subr.mxu0 %v3695
        %v3697 = vand.u32 %v293, 4294901760
        %3698 = vmatpush1.msra.mxu0 %v3697
        %v3699 = vand.u32 %v302, 4294901760
        %3700 = vmatprep.subr.mxu0 %v3699
        %v3701 = vand.u32 %v301, 4294901760
        %3702 = vmatpush1.msra.mxu0 %v3701
        %v3703 = vand.u32 %v310, 4294901760
        %3704 = vmatprep.subr.mxu0 %v3703
        %v3705 = vand.u32 %v309, 4294901760
        %3706 = vmatpush1.msra.mxu0 %v3705
        %v3707 = vand.u32 %v318, 4294901760
        %3708 = vmatprep.subr.mxu0 %v3707
        %v3709 = vand.u32 %v317, 4294901760
        %3710 = vmatpush1.msra.mxu0 %v3709
        %v3711 = vand.u32 %v326, 4294901760
        %3712 = vmatprep.subr.mxu0 %v3711
        %v3713 = vand.u32 %v325, 4294901760
        %3714 = vmatpush1.msra.mxu0 %v3713
        %v3715 = vand.u32 %v334, 4294901760
        %3716 = vmatprep.subr.mxu0 %v3715
        %v3717 = vand.u32 %v333, 4294901760
        %3718 = vmatpush1.msra.mxu0 %v3717
        %v3719 = vand.u32 %v342, 4294901760
        %3720 = vmatprep.subr.mxu0 %v3719
        %v3721 = vand.u32 %v341, 4294901760
        %3722 = vmatpush1.msra.mxu0 %v3721
        %3723 = vmatprep.subr.mxu0 0.0
        %3724 = vmatpush1.msra.mxu0 0.0
        %3725 = vmatprep.subr.mxu0 0.0
        %3726 = vmatpush1.msra.mxu0 0.0
        %3727 = vmatprep.subr.mxu0 0.0
        %3728 = vmatpush1.msra.mxu0 0.0
        %3729 = vmatprep.subr.mxu0 0.0
        %3730 = vmatpush1.msra.mxu0 0.0
        %3731 = vmatprep.subr.mxu0 0.0
        %3732 = vmatpush1.msra.mxu0 0.0
        %3733 = vmatprep.subr.mxu0 0.0
        %3734 = vmatpush1.msra.mxu0 0.0
        %3735 = vmatprep.subr.mxu0 0.0
        %3736 = vmatpush1.msra.mxu0 0.0
        %3737 = vmatprep.subr.mxu0 0.0
        %3738 = vmatpush1.msra.mxu0 0.0
        %3739 = vmatprep.subr.mxu0 0.0
        %3740 = vmatpush1.msra.mxu0 0.0
        %3741 = vmatprep.subr.mxu0 0.0
        %3742 = vmatpush1.msra.mxu0 0.0
        %3743 = vmatprep.subr.mxu0 0.0
        %3744 = vmatpush1.msra.mxu0 0.0
        %3745 = vmatprep.subr.mxu0 0.0
        %3746 = vmatpush1.msra.mxu0 0.0
        %3747 = vmatprep.subr.mxu0 0.0
        %3748 = vmatpush1.msra.mxu0 0.0
        %3749 = vmatprep.subr.mxu0 0.0
        %3750 = vmatpush1.msra.mxu0 0.0
        %3751 = vmatprep.subr.mxu0 0.0
        %3752 = vmatpush1.msra.mxu0 0.0
        %3753 = vmatprep.subr.mxu0 0.0
        %3754 = vmatpush1.msra.mxu0 0.0
        %3755 = vmatprep.mubr.f32.mxu0 0.0
        %v3756 = vand.u32 %v214, 4294901760
        %3757 = vmatmul.mubr.f32.gmra.mrb[0].mxu0 %v3756
        %v3758 = vpop.f32.mrb[0].mxu0
        %v3759 = vadd.f32 %v3655, %v3758
        %v3760 = vpop.f32.mrb[0].mxu0
        %v3761 = vadd.f32 %v3657, %v3760
        %3762 = vdwg.mxu0
        %v3763 = vld [vmem:[#allocation7] sm:$0xff]
        %v3765 = vlaneseq
        %v3766 = vshrl.u32 %v3765, 7
        %v3767 = vsub.s32 0, %v3766
        %v3768 = vrot.slane %v3763, %v3767
        %v3769 = vlaneseq
        %v3770 = vshrl.u32 %v3769, 7
        %v3771 = vsub.s32 1, %v3770
        %v3772 = vrot.slane %v3763, %v3771
        %v3773 = vlaneseq
        %v3774 = vshrl.u32 %v3773, 7
        %v3775 = vsub.s32 2, %v3774
        %v3776 = vrot.slane %v3763, %v3775
        %v3777 = vlaneseq
        %v3778 = vshrl.u32 %v3777, 7
        %v3779 = vsub.s32 3, %v3778
        %v3780 = vrot.slane %v3763, %v3779
        %v3781 = vlaneseq
        %v3782 = vshrl.u32 %v3781, 7
        %v3783 = vsub.s32 4, %v3782
        %v3784 = vrot.slane %v3763, %v3783
        %v3785 = vlaneseq
        %v3786 = vshrl.u32 %v3785, 7
        %v3787 = vsub.s32 5, %v3786
        %v3788 = vrot.slane %v3763, %v3787
        %v3789 = vlaneseq
        %v3790 = vshrl.u32 %v3789, 7
        %v3791 = vsub.s32 6, %v3790
        %v3792 = vrot.slane %v3763, %v3791
        %v3793 = vlaneseq
        %v3794 = vshrl.u32 %v3793, 7
        %v3795 = vsub.s32 7, %v3794
        %v3796 = vrot.slane %v3763, %v3795
        %v3805 = vsub.f32 %v1194, %v3768
        %v3806 = vsub.f32 %v1196, %v3772
        %v3807 = vsub.f32 %v2049, %v3776
        %v3808 = vsub.f32 %v2051, %v3780
        %v3809 = vsub.f32 %v2904, %v3784
        %v3810 = vsub.f32 %v2906, %v3788
        %v3811 = vsub.f32 %v3759, %v3792
        %v3812 = vsub.f32 %v3761, %v3796
        %v3813 = vmul.f32 %v3805, %v3805
        %v3814 = vmul.f32 %v3806, %v3806
        %v3815 = vmul.f32 %v3807, %v3807
        %v3816 = vmul.f32 %v3808, %v3808
        %v3817 = vmul.f32 %v3809, %v3809
        %v3818 = vmul.f32 %v3810, %v3810
        %v3819 = vmul.f32 %v3811, %v3811
        %v3820 = vmul.f32 %v3812, %v3812
        %v3821 = vsub.f32 0.0, %v3813
        %v3822 = vsub.f32 0.0, %v3814
        %v3823 = vsub.f32 0.0, %v3815
        %v3824 = vsub.f32 0.0, %v3816
        %v3825 = vsub.f32 0.0, %v3817
        %v3826 = vsub.f32 0.0, %v3818
        %v3827 = vsub.f32 0.0, %v3819
        %v3828 = vsub.f32 0.0, %v3820
        %v3829 = vmul.f32 %v3821, 1.442695
        %v3830 = vpow.pop %v3829
        %v3831 = vmul.f32 %v3822, 1.442695
        %v3832 = vpow.pop %v3831
        %v3833 = vmul.f32 %v3823, 1.442695
        %v3834 = vpow.pop %v3833
        %v3835 = vmul.f32 %v3824, 1.442695
        %v3836 = vpow.pop %v3835
        %v3837 = vmul.f32 %v3825, 1.442695
        %v3838 = vpow.pop %v3837
        %v3839 = vmul.f32 %v3826, 1.442695
        %v3840 = vpow.pop %v3839
        %v3841 = vmul.f32 %v3827, 1.442695
        %v3842 = vpow.pop %v3841
        %v3843 = vmul.f32 %v3828, 1.442695
        %v3844 = vpow.pop %v3843
        %3845 = vst [vmem:[%s212] sm:$0xff] %v3830
        %3846 = vst [vmem:[%s212 + $0x8] sm:$0xff] %v3832
        %3847 = vst [vmem:[%s212 + $0x10] sm:$0xff] %v3834
        %3848 = vst [vmem:[%s212 + $0x18] sm:$0xff] %v3836
        %3849 = vst [vmem:[%s212 + $0x20] sm:$0xff] %v3838
        %3850 = vst [vmem:[%s212 + $0x28] sm:$0xff] %v3840
        %3851 = vst [vmem:[%s212 + $0x30] sm:$0xff] %v3842
        %3852 = vst [vmem:[%s212 + $0x38] sm:$0xff] %v3844
        %s3853 = sand.u32 %s97, 1
        %s3854 = scalar_lea.sflag [#allocation4], %s3853
        %s3855 = sand.u32 %s97, 1
        %s3856 = smul.addr %s3855, 64
        %s3857 = scalar_lea.vmem [#allocation8], %s3856
        // Predicated region
        $region45: #{tpu_custom_call.1} parent=31 // pred_check
          %p3858 = pneg %p107
        $region46: #{tpu_custom_call.1} parent=31 // pred_check_branch
          %3860 = sbr.rel (%p3858) target = $region48
        $region47: #{tpu_custom_call.1} parent=31 // pred_region
          %s3862 = ssub.s32 1024, 1024
          %3863 = vsyncadd %s3854, %s3862
          %s3864 = smul.addr %s21, 8
          %s3865 = smul.addr %s3864, 128
          %s3866 = scalar_lea.hbm %s3, %s3865
          %s3868 = sshll.u32 %s3857, 4
          %s3869 = int_to_ptr.vmem [resolvable:$true] %s3868
          %3871 = dma.vmem_to_hbm [thread:$0]  %s3869, 1024, %s3866, %s3854
        $region48: #{tpu_custom_call.1} parent=31 // pred_fallthru
          _
      $region32: #{tpu_custom_call.1} parent=5 // pred_fallthru
        _
      %p3872 = scmp.le.s32.totalorder 2, %s16
      // Predicated region
      $region49: #{tpu_custom_call.1} parent=5 // pred_check
        %p3873 = pneg %p3872
      $region50: #{tpu_custom_call.1} parent=5 // pred_check_branch
        %3875 = sbr.rel (%p3873) target = $region52
      $region51: #{tpu_custom_call.1} parent=5 // pred_region
        %s3876 = ssub.s32 %s16, 2
        // Predicated region
        $region53: #{tpu_custom_call.1} parent=51 // pred_check
          %p3877 = pneg %p113
        $region54: #{tpu_custom_call.1} parent=51 // pred_check_branch
          %3879 = sbr.rel (%p3877) target = $region56
        $region55: #{tpu_custom_call.1} parent=51 // pred_region
          %s3880 = sand.u32 %s98, 1
          %s3881 = scalar_lea.sflag [#allocation4], %s3880
          %s3882 = sand.u32 %s98, 1
          %s3883 = smul.addr %s3882, 64
          %s3884 = scalar_lea.vmem [#allocation8], %s3883
          %3885 = dma.done %s3881, 1024
        $region56: #{tpu_custom_call.1} parent=51 // pred_fallthru
          _
      $region52: #{tpu_custom_call.1} parent=5 // pred_fallthru
        _
    $region6: #{tpu_custom_call.1} parent=1 // loop_footer
      %s20 = sadd.s32 1, %s16
    $region7: #{tpu_custom_call.1} parent=1 // loop_footer_branch
      %15 = sbr.rel target = $region3
    $region8: #{tpu_custom_call.1} parent=1 // loop_exit
      _
    %3886 = vsyncpa [#allocation3], 1
    %s3887 = scalar_lea.sflag [#allocation3], 1
    %3888 = vsyncpa %s3887, 1
    %3889 = vsyncpa [#allocation6], 1
    %3890 = vsyncpa [#allocation4], 1
    %s3891 = scalar_lea.sflag [#allocation4], 1
    %3892 = vsyncpa %s3891, 1

</llo_original>
